<compile_context>
chip_gen: v5e
topology: v5e:2x2
jax: 0.10.0
libtpu: 0.0.40
codegen_flags: <defaults>
</compile_context>

<pallas_src>
import functools

import jax
import jax.numpy as jnp
import numpy as np
from jax import lax
from jax.experimental import pallas as pl
from jax.experimental.pallas import tpu as pltpu


# ----------------------------------------------------------------------------
# Fused Up1D kernel
# ----------------------------------------------------------------------------
def _up1d_fused_kernel(x_ref, skip_ref, wup_ref, bup_ref, w1_ref, b1_ref,
                       w2_ref, b2_ref, o_ref, xpad, hpad, acc,
                       *, K, pad, cskip, chalf, cout, tin, t_out, off, chunk,
                       cdtype):
    T = t_out
    c1 = cskip + chalf

    # ---- zero only the halo columns (interiors are fully overwritten) ----
    xpad[:, 0:pad] = jnp.zeros((c1, pad), cdtype)
    xpad[:, pad + T:2 * pad + T] = jnp.zeros((c1, pad), cdtype)
    hpad[:, 0:pad] = jnp.zeros((cout, pad), cdtype)
    hpad[:, pad + T:2 * pad + T] = jnp.zeros((cout, pad), cdtype)

    # ---- skip channels straight into the conv1 input slab ----
    xpad[0:cskip, pad:pad + T] = skip_ref[0].astype(cdtype)

    # ---- ConvTranspose1d(k=2,s=2) + center crop/pad, fused, all in VMEM ----
    # up_full[:, 2t+k] = W_k @ x[:, t] + b ; up_cc[tau] = up_full[tau + off].
    tu = 2 * tin
    cov_lo = max(0, -off)          # covered region of the cropped/padded `up`
    cov_hi = min(T, tu - off)
    if cov_lo > 0:                 # zero-pad region (only when 2*tin < T)
        xpad[cskip:c1, pad:pad + cov_lo] = jnp.zeros((chalf, cov_lo), cdtype)
    if cov_hi < T:
        xpad[cskip:c1, pad + cov_hi:pad + T] = (
            jnp.zeros((chalf, T - cov_hi), cdtype))

    w_even = wup_ref[0]            # (chalf, cin)
    w_odd = wup_ref[1]
    b_up = bup_ref[...]            # (chalf, 1) f32

    # 0/1 spread matrices (hoisted out of the chunk loop): column 2t takes the
    # even tap, column 2t+1 the odd tap.  Interleave == two small MXU matmuls.
    col = lax.broadcasted_iota(jnp.int32, (chunk, 2 * chunk), 1)
    row = lax.broadcasted_iota(jnp.int32, (chunk, 2 * chunk), 0)
    s_even = (col == 2 * row).astype(cdtype)
    s_odd = (col == 2 * row + 1).astype(cdtype)

    for c0 in range(0, tin, chunk):
        cs = min(chunk, tin - c0)
        dst_lo = max(2 * c0 - off, 0)
        dst_hi = min(2 * c0 + 2 * cs - off, T)
        if dst_hi <= dst_lo:       # this chunk is fully cropped away
            continue
        xc = x_ref[0, :, c0:c0 + cs].astype(cdtype)
        y_even = jnp.dot(w_even, xc, preferred_element_type=jnp.float32)
        y_odd = jnp.dot(w_odd, xc, preferred_element_type=jnp.float32)
        up_chunk = (
            jnp.dot(y_even.astype(cdtype), s_even[0:cs, 0:2 * cs],
                    preferred_element_type=jnp.float32)
            + jnp.dot(y_odd.astype(cdtype), s_odd[0:cs, 0:2 * cs],
                      preferred_element_type=jnp.float32)
            + b_up)                                    # (chalf, 2*cs) f32
        src_lo = dst_lo - (2 * c0 - off)
        xpad[cskip:c1, pad + dst_lo:pad + dst_hi] = (
            up_chunk[:, src_lo:src_lo + (dst_hi - dst_lo)].astype(cdtype))

    # ---- conv1 (k=21) as K accumulated MXU matmuls; BN scale pre-folded ----
    acc[...] = jnp.dot(w1_ref[0], xpad[:, 0:T],
                       preferred_element_type=jnp.float32)
    for j in range(1, K):
        acc[...] += jnp.dot(w1_ref[j], xpad[:, j:j + T],
                            preferred_element_type=jnp.float32)
    hpad[:, pad:pad + T] = jnp.maximum(acc[...] + b1_ref[...], 0.0).astype(cdtype)

    # ---- conv2 (k=21), same pattern; intermediate never leaves VMEM ----
    acc[...] = jnp.dot(w2_ref[0], hpad[:, 0:T],
                       preferred_element_type=jnp.float32)
    for j in range(1, K):
        acc[...] += jnp.dot(w2_ref[j], hpad[:, j:j + T],
                            preferred_element_type=jnp.float32)
    o_ref[0] = jnp.maximum(acc[...] + b2_ref[...], 0.0).astype(o_ref.dtype)


def up1d_forward(params, x, skip, eps=1e-5, compute_dtype=jnp.float32,
                 up_chunk=256):
    """x: (B, Cin, Tin); skip: (B, Cskip, T). Returns (B, Cout, T)."""
    B, cin, tin = x.shape
    _, cskip, T = skip.shape
    wup = params["up_w"]                               # (cin, chalf, 2) torch layout
    chalf = wup.shape[1]
    p1, p2 = params["conv1"], params["conv2"]
    cout, c1, K = p1["w"].shape
    assert c1 == cskip + chalf and p2["w"].shape == (cout, cout, K)
    pad = (K - 1) // 2
    assert 2 * pad == K - 1, "same-length conv expected"

    tu = 2 * tin
    off = (tu - T) // 2 if tu >= T else -((T - tu) // 2)   # crop(+)/pad(-) offset

    # Up weights tap-major: W_k = wup[:, :, k].T  -> (2, chalf, cin).
    wup_s = jnp.transpose(wup, (2, 1, 0)).astype(compute_dtype)
    bup = params["up_b"].reshape(chalf, 1).astype(jnp.float32)

    def fold(p):
        # Eval-mode BN folded: scale into the weights, bias into the epilogue.
        scale = p["gamma"] / jnp.sqrt(p["var"] + eps)
        w = jnp.transpose(p["w"], (2, 0, 1)) * scale[None, :, None]  # (K,cout,cin)
        bias = (p["b"] - p["mean"]) * scale + p["beta"]
        return w.astype(compute_dtype), bias.reshape(cout, 1).astype(jnp.float32)

    w1, b1 = fold(p1)
    w2, b2 = fold(p2)

    chunk = min(up_chunk, tin)

    kern = functools.partial(
        _up1d_fused_kernel, K=K, pad=pad, cskip=cskip, chalf=chalf, cout=cout,
        tin=tin, t_out=T, off=off, chunk=chunk, cdtype=compute_dtype)

    esize = jnp.dtype(compute_dtype).itemsize
    scratch_bytes = (c1 + cout) * (T + 2 * pad) * esize + cout * T * 4
    io_bytes = (cin * tin + cskip * T + cout * T) * x.dtype.itemsize
    w_bytes = (2 * chalf * cin + K * cout * (c1 + cout)) * esize + 2 * cout * 4
    vmem_limit = int(min(scratch_bytes + 2 * (io_bytes + w_bytes) + (8 << 20),
                         100 << 20))

    return pl.pallas_call(
        kern,
        out_shape=jax.ShapeDtypeStruct((B, cout, T), skip.dtype),
        grid=(B,),
        in_specs=[
            pl.BlockSpec((1, cin, tin), lambda b: (b, 0, 0)),
            pl.BlockSpec((1, cskip, T), lambda b: (b, 0, 0)),
            pl.BlockSpec((2, chalf, cin), lambda b: (0, 0, 0)),
            pl.BlockSpec((chalf, 1), lambda b: (0, 0)),
            pl.BlockSpec((K, cout, c1), lambda b: (0, 0, 0)),
            pl.BlockSpec((cout, 1), lambda b: (0, 0)),
            pl.BlockSpec((K, cout, cout), lambda b: (0, 0, 0)),
            pl.BlockSpec((cout, 1), lambda b: (0, 0)),
        ],
        out_specs=pl.BlockSpec((1, cout, T), lambda b: (b, 0, 0)),
        scratch_shapes=[
            pltpu.VMEM((c1, T + 2 * pad), compute_dtype),     # conv1 input slab
            pltpu.VMEM((cout, T + 2 * pad), compute_dtype),   # conv1 output slab
            pltpu.VMEM((cout, T), jnp.float32),               # shared f32 acc
        ],
        compiler_params=pltpu.CompilerParams(
            dimension_semantics=("parallel",),
            vmem_limit_bytes=vmem_limit),
    )(x, skip, wup_s, bup, w1, b1, w2, b2)


# ----------------------------------------------------------------------------
# Parameter setup + pure-JAX reference (no Pallas) for correctness checking.
# ----------------------------------------------------------------------------
def center_crop_or_pad_1d(x, target_t):
    B, C, T = x.shape
    if T > target_t:
        start = (T - target_t) // 2
        x = x[:, :, start:start + target_t]
    elif T < target_t:
        diff = target_t - T
        pb = diff // 2
        x = jnp.pad(x, ((0, 0), (0, 0), (pb, diff - pb)))
    return x


def init_up1d_params(key, in_ch, out_ch, kernel_size=21):
    c_half = in_ch // 2
    c_cat = c_half + out_ch
    ks = jax.random.split(key, 6)

    def conv_block(kw, kb, cin, cout):
        a = jnp.arange(cout, dtype=jnp.float32)
        return {
            "w": 0.1 * jax.random.normal(kw, (cout, cin, kernel_size), jnp.float32),
            "b": 0.1 * jax.random.normal(kb, (cout,), jnp.float32),
            "gamma": 1.0 + 0.1 * a / max(cout, 1),
            "beta": 0.05 * a,
            "mean": 0.02 * a,
            "var": 1.0 + 0.03 * a,
        }

    return {
        "up_w": 0.1 * jax.random.normal(ks[0], (in_ch, c_half, 2), jnp.float32),
        "up_b": 0.1 * jax.random.normal(ks[1], (c_half,), jnp.float32),
        "conv1": conv_block(ks[2], ks[3], c_cat, out_ch),
        "conv2": conv_block(ks[4], ks[5], out_ch, out_ch),
    }


def up1d_reference(params, x, skip, eps=1e-5):
    B, Cin, T = x.shape
    w, b = params["up_w"], params["up_b"]
    y = jnp.einsum("bci,cok->boik", x, w) + b[None, :, None, None]
    up = y.reshape(B, w.shape[1], 2 * T)
    up = center_crop_or_pad_1d(up, skip.shape[2])
    h = jnp.concatenate([skip, up], axis=1)
    for name in ("conv1", "conv2"):
        c = params[name]
        h = lax.conv_general_dilated(h, c["w"], (1,), [(10, 10)],
                                     dimension_numbers=("NCH", "OIH", "NCH"))
        h = h + c["b"][None, :, None]
        h = (h - c["mean"][None, :, None]) / jnp.sqrt(c["var"][None, :, None] + eps)
        h = h * c["gamma"][None, :, None] + c["beta"][None, :, None]
        h = jnp.maximum(h, 0.0)
    return h


if __name__ == "__main__":
    in_ch, out_ch = 8, 4                 # Up1D(in_ch=8, out_ch=4)
    B = 2
    key = jax.random.PRNGKey(0)
    kx, ks, kp = jax.random.split(key, 3)
    params = init_up1d_params(kp, in_ch, out_ch)

    # (Tin, Tskip): exact 2x, crop branch, pad branch — all non-multiples of 128.
    for t_in, t_skip in ((16, 32), (16, 26), (16, 38)):
        x = jax.random.normal(kx, (B, in_ch, t_in), jnp.float32)
        skip = jax.random.normal(ks, (B, out_ch, t_skip), jnp.float32)
        out = jax.block_until_ready(up1d_forward(params, x, skip))
        ref = jax.block_until_ready(up1d_reference(params, x, skip))
        np.testing.assert_allclose(np.asarray(out), np.asarray(ref),
                                   rtol=2e-4, atol=2e-4)

    # bf16 MXU / bf16-staging path: f32 accumulation + f32 epilogue.
    x = jax.random.normal(kx, (B, in_ch, 16), jnp.float32)
    skip = jax.random.normal(ks, (B, out_ch, 32), jnp.float32)
    out_bf16 = jax.block_until_ready(
        up1d_forward(params, x, skip, compute_dtype=jnp.bfloat16))
    ref = up1d_reference(params, x, skip)
    np.testing.assert_allclose(np.asarray(out_bf16), np.asarray(ref),
                               rtol=1e-1, atol=1e-1)

    print("KERNEL_OK")
</pallas_src>

<mosaic_0001>
module attributes {stable_mosaic.version = 11 : i64} {
  func.func @_up1d_fused_kernel(%arg0: i32, %arg1: memref<1x8x16xf32, #tpu.memory_space<vmem>>, %arg2: memref<1x4x32xf32, #tpu.memory_space<vmem>>, %arg3: memref<2x4x8xf32, #tpu.memory_space<vmem>>, %arg4: memref<4x1xf32, #tpu.memory_space<vmem>>, %arg5: memref<21x4x8xf32, #tpu.memory_space<vmem>>, %arg6: memref<4x1xf32, #tpu.memory_space<vmem>>, %arg7: memref<21x4x4xf32, #tpu.memory_space<vmem>>, %arg8: memref<4x1xf32, #tpu.memory_space<vmem>>, %arg9: memref<1x4x32xf32, #tpu.memory_space<vmem>>, %arg10: memref<8x52xf32, #tpu.memory_space<vmem>>, %arg11: memref<4x52xf32, #tpu.memory_space<vmem>>, %arg12: memref<4x32xf32, #tpu.memory_space<vmem>>) attributes {dimension_semantics = [#tpu.dimension_semantics<parallel>], iteration_bounds = array<i64: 2>, scalar_prefetch = 0 : i64, scratch_operands = 3 : i64, tpu.core_type = #tpu.core_type<tc>, window_params = [{transform_indices = @transform_0, window_bounds = array<i64: 1, 8, 16>}, {transform_indices = @transform_1, window_bounds = array<i64: 1, 4, 32>}, {pipeline_mode = #tpu.pipeline_mode<synchronous>, transform_indices = @transform_2, window_bounds = array<i64: 2, 4, 8>}, {pipeline_mode = #tpu.pipeline_mode<synchronous>, transform_indices = @transform_3, window_bounds = array<i64: 4, 1>}, {pipeline_mode = #tpu.pipeline_mode<synchronous>, transform_indices = @transform_4, window_bounds = array<i64: 21, 4, 8>}, {pipeline_mode = #tpu.pipeline_mode<synchronous>, transform_indices = @transform_5, window_bounds = array<i64: 4, 1>}, {pipeline_mode = #tpu.pipeline_mode<synchronous>, transform_indices = @transform_6, window_bounds = array<i64: 21, 4, 4>}, {pipeline_mode = #tpu.pipeline_mode<synchronous>, transform_indices = @transform_7, window_bounds = array<i64: 4, 1>}, {transform_indices = @transform_8, window_bounds = array<i64: 1, 4, 32>}]} {
    %cst = arith.constant 0.000000e+00 : f32
    %0 = vector.broadcast %cst : f32 to vector<8x10xf32>
    %c0 = arith.constant 0 : index
    %c0_0 = arith.constant 0 : index
    %1 = vector.load %arg10[%c0, %c0_0] : memref<8x52xf32, #tpu.memory_space<vmem>>, vector<8x10xf32>
    tpu.vector_store %arg10[%c0, %c0_0], %0 {strides = array<i32>} : memref<8x52xf32, #tpu.memory_space<vmem>>, vector<8x10xf32>,
    %cst_1 = arith.constant 0.000000e+00 : f32
    %2 = vector.broadcast %cst_1 : f32 to vector<8x10xf32>
    %c0_2 = arith.constant 0 : index
    %c42 = arith.constant 42 : index
    %3 = vector.load %arg10[%c0_2, %c42] : memref<8x52xf32, #tpu.memory_space<vmem>>, vector<8x10xf32>
    tpu.vector_store %arg10[%c0_2, %c42], %2 {strides = array<i32>} : memref<8x52xf32, #tpu.memory_space<vmem>>, vector<8x10xf32>,
    %cst_3 = arith.constant 0.000000e+00 : f32
    %4 = vector.broadcast %cst_3 : f32 to vector<4x10xf32>
    %c0_4 = arith.constant 0 : index
    %c0_5 = arith.constant 0 : index
    %5 = vector.load %arg11[%c0_4, %c0_5] : memref<4x52xf32, #tpu.memory_space<vmem>>, vector<4x10xf32>
    tpu.vector_store %arg11[%c0_4, %c0_5], %4 {strides = array<i32>} : memref<4x52xf32, #tpu.memory_space<vmem>>, vector<4x10xf32>,
    %cst_6 = arith.constant 0.000000e+00 : f32
    %6 = vector.broadcast %cst_6 : f32 to vector<4x10xf32>
    %c0_7 = arith.constant 0 : index
    %c42_8 = arith.constant 42 : index
    %7 = vector.load %arg11[%c0_7, %c42_8] : memref<4x52xf32, #tpu.memory_space<vmem>>, vector<4x10xf32>
    tpu.vector_store %arg11[%c0_7, %c42_8], %6 {strides = array<i32>} : memref<4x52xf32, #tpu.memory_space<vmem>>, vector<4x10xf32>,
    %c0_9 = arith.constant 0 : index
    %c0_10 = arith.constant 0 : index
    %c0_11 = arith.constant 0 : index
    %8 = vector.load %arg2[%c0_9, %c0_10, %c0_11] : memref<1x4x32xf32, #tpu.memory_space<vmem>>, vector<1x4x32xf32>
    %9 = vector.shape_cast %8 : vector<1x4x32xf32> to vector<4x32xf32>
    %c0_12 = arith.constant 0 : index
    %c10 = arith.constant 10 : index
    %10 = vector.load %arg10[%c0_12, %c10] : memref<8x52xf32, #tpu.memory_space<vmem>>, vector<4x32xf32>
    tpu.vector_store %arg10[%c0_12, %c10], %9 {strides = array<i32>} : memref<8x52xf32, #tpu.memory_space<vmem>>, vector<4x32xf32>,
    %c0_13 = arith.constant 0 : index
    %c0_14 = arith.constant 0 : index
    %c0_15 = arith.constant 0 : index
    %11 = vector.load %arg3[%c0_13, %c0_14, %c0_15] : memref<2x4x8xf32, #tpu.memory_space<vmem>>, vector<1x4x8xf32>
    %12 = vector.shape_cast %11 : vector<1x4x8xf32> to vector<4x8xf32>
    %c1 = arith.constant 1 : index
    %c0_16 = arith.constant 0 : index
    %c0_17 = arith.constant 0 : index
    %13 = vector.load %arg3[%c1, %c0_16, %c0_17] : memref<2x4x8xf32, #tpu.memory_space<vmem>>, vector<1x4x8xf32>
    %14 = vector.shape_cast %13 : vector<1x4x8xf32> to vector<4x8xf32>
    %c0_18 = arith.constant 0 : index
    %c0_19 = arith.constant 0 : index
    %15 = vector.load %arg4[%c0_18, %c0_19] : memref<4x1xf32, #tpu.memory_space<vmem>>, vector<4x1xf32>
    %16 = tpu.iota {dimensions = array<i32: 1>} : vector<16x32xi32>
    %17 = tpu.iota {dimensions = array<i32: 0>} : vector<16x32xi32>
    %c2_i32 = arith.constant 2 : i32
    %18 = vector.broadcast %c2_i32 : i32 to vector<16x32xi32>
    %19 = arith.muli %18, %17 : vector<16x32xi32>
    %20 = arith.cmpi eq, %16, %19 : vector<16x32xi32>
    %21 = arith.extui %20 : vector<16x32xi1> to vector<16x32xi32>
    %22 = arith.sitofp %21 : vector<16x32xi32> to vector<16x32xf32>
    %c2_i32_20 = arith.constant 2 : i32
    %23 = vector.broadcast %c2_i32_20 : i32 to vector<16x32xi32>
    %24 = arith.muli %23, %17 : vector<16x32xi32>
    %c1_i32 = arith.constant 1 : i32
    %25 = vector.broadcast %c1_i32 : i32 to vector<16x32xi32>
    %26 = arith.addi %24, %25 : vector<16x32xi32>
    %27 = arith.cmpi eq, %16, %26 : vector<16x32xi32>
    %28 = arith.extui %27 : vector<16x32xi1> to vector<16x32xi32>
    %29 = arith.sitofp %28 : vector<16x32xi32> to vector<16x32xf32>
    %c0_21 = arith.constant 0 : index
    %c0_22 = arith.constant 0 : index
    %c0_23 = arith.constant 0 : index
    %30 = vector.load %arg1[%c0_21, %c0_22, %c0_23] : memref<1x8x16xf32, #tpu.memory_space<vmem>>, vector<1x8x16xf32>
    %31 = vector.shape_cast %30 : vector<1x8x16xf32> to vector<8x16xf32>
    %cst_24 = arith.constant dense<0.000000e+00> : vector<4x16xf32>
    %32 = tpu.matmul %12, %31, %cst_24 {dimension_numbers = #tpu.dot_dimension_numbers<[1], [0], [0], [1], [0, 0, 1, 1], [], []>} : vector<4x8xf32>, vector<8x16xf32>, vector<4x16xf32> -> vector<4x16xf32>
    %cst_25 = arith.constant dense<0.000000e+00> : vector<4x16xf32>
    %33 = tpu.matmul %14, %31, %cst_25 {dimension_numbers = #tpu.dot_dimension_numbers<[1], [0], [0], [1], [0, 0, 1, 1], [], []>} : vector<4x8xf32>, vector<8x16xf32>, vector<4x16xf32> -> vector<4x16xf32>
    %cst_26 = arith.constant dense<0.000000e+00> : vector<4x32xf32>
    %34 = tpu.matmul %32, %22, %cst_26 {dimension_numbers = #tpu.dot_dimension_numbers<[1], [0], [0], [1], [0, 0, 1, 1], [], []>} : vector<4x16xf32>, vector<16x32xf32>, vector<4x32xf32> -> vector<4x32xf32>
    %cst_27 = arith.constant dense<0.000000e+00> : vector<4x32xf32>
    %35 = tpu.matmul %33, %29, %cst_27 {dimension_numbers = #tpu.dot_dimension_numbers<[1], [0], [0], [1], [0, 0, 1, 1], [], []>} : vector<4x16xf32>, vector<16x32xf32>, vector<4x32xf32> -> vector<4x32xf32>
    %36 = arith.addf %34, %35 : vector<4x32xf32>
    %37 = vector.broadcast %15 : vector<4x1xf32> to vector<4x32xf32>
    %38 = arith.addf %36, %37 : vector<4x32xf32>
    %c4 = arith.constant 4 : index
    %c10_28 = arith.constant 10 : index
    %39 = vector.load %arg10[%c4, %c10_28] : memref<8x52xf32, #tpu.memory_space<vmem>>, vector<4x32xf32>
    tpu.vector_store %arg10[%c4, %c10_28], %38 {strides = array<i32>} : memref<8x52xf32, #tpu.memory_space<vmem>>, vector<4x32xf32>,
    %c0_29 = arith.constant 0 : index
    %c0_30 = arith.constant 0 : index
    %c0_31 = arith.constant 0 : index
    %40 = vector.load %arg5[%c0_29, %c0_30, %c0_31] : memref<21x4x8xf32, #tpu.memory_space<vmem>>, vector<1x4x8xf32>
    %41 = vector.shape_cast %40 : vector<1x4x8xf32> to vector<4x8xf32>
    %c0_32 = arith.constant 0 : index
    %c0_33 = arith.constant 0 : index
    %42 = vector.load %arg10[%c0_32, %c0_33] : memref<8x52xf32, #tpu.memory_space<vmem>>, vector<8x32xf32>
    %cst_34 = arith.constant dense<0.000000e+00> : vector<4x32xf32>
    %43 = tpu.matmul %41, %42, %cst_34 {dimension_numbers = #tpu.dot_dimension_numbers<[1], [0], [0], [1], [0, 0, 1, 1], [], []>} : vector<4x8xf32>, vector<8x32xf32>, vector<4x32xf32> -> vector<4x32xf32>
    %c0_35 = arith.constant 0 : index
    %c0_36 = arith.constant 0 : index
    %44 = vector.load %arg12[%c0_35, %c0_36] : memref<4x32xf32, #tpu.memory_space<vmem>>, vector<4x32xf32>
    tpu.vector_store %arg12[%c0_35, %c0_36], %43 {strides = array<i32>} : memref<4x32xf32, #tpu.memory_space<vmem>>, vector<4x32xf32>,
    %c0_37 = arith.constant 0 : index
    %c0_38 = arith.constant 0 : index
    %45 = vector.load %arg12[%c0_37, %c0_38] : memref<4x32xf32, #tpu.memory_space<vmem>>, vector<4x32xf32>
    %c1_39 = arith.constant 1 : index
    %c0_40 = arith.constant 0 : index
    %c0_41 = arith.constant 0 : index
    %46 = vector.load %arg5[%c1_39, %c0_40, %c0_41] : memref<21x4x8xf32, #tpu.memory_space<vmem>>, vector<1x4x8xf32>
    %47 = vector.shape_cast %46 : vector<1x4x8xf32> to vector<4x8xf32>
    %c0_42 = arith.constant 0 : index
    %c1_43 = arith.constant 1 : index
    %48 = vector.load %arg10[%c0_42, %c1_43] : memref<8x52xf32, #tpu.memory_space<vmem>>, vector<8x32xf32>
    %cst_44 = arith.constant dense<0.000000e+00> : vector<4x32xf32>
    %49 = tpu.matmul %47, %48, %cst_44 {dimension_numbers = #tpu.dot_dimension_numbers<[1], [0], [0], [1], [0, 0, 1, 1], [], []>} : vector<4x8xf32>, vector<8x32xf32>, vector<4x32xf32> -> vector<4x32xf32>
    %50 = arith.addf %45, %49 : vector<4x32xf32>
    %c0_45 = arith.constant 0 : index
    %c0_46 = arith.constant 0 : index
    %51 = vector.load %arg12[%c0_45, %c0_46] : memref<4x32xf32, #tpu.memory_space<vmem>>, vector<4x32xf32>
    tpu.vector_store %arg12[%c0_45, %c0_46], %50 {strides = array<i32>} : memref<4x32xf32, #tpu.memory_space<vmem>>, vector<4x32xf32>,
    %c0_47 = arith.constant 0 : index
    %c0_48 = arith.constant 0 : index
    %52 = vector.load %arg12[%c0_47, %c0_48] : memref<4x32xf32, #tpu.memory_space<vmem>>, vector<4x32xf32>
    %c2 = arith.constant 2 : index
    %c0_49 = arith.constant 0 : index
    %c0_50 = arith.constant 0 : index
    %53 = vector.load %arg5[%c2, %c0_49, %c0_50] : memref<21x4x8xf32, #tpu.memory_space<vmem>>, vector<1x4x8xf32>
    %54 = vector.shape_cast %53 : vector<1x4x8xf32> to vector<4x8xf32>
    %c0_51 = arith.constant 0 : index
    %c2_52 = arith.constant 2 : index
    %55 = vector.load %arg10[%c0_51, %c2_52] : memref<8x52xf32, #tpu.memory_space<vmem>>, vector<8x32xf32>
    %cst_53 = arith.constant dense<0.000000e+00> : vector<4x32xf32>
    %56 = tpu.matmul %54, %55, %cst_53 {dimension_numbers = #tpu.dot_dimension_numbers<[1], [0], [0], [1], [0, 0, 1, 1], [], []>} : vector<4x8xf32>, vector<8x32xf32>, vector<4x32xf32> -> vector<4x32xf32>
    %57 = arith.addf %52, %56 : vector<4x32xf32>
    %c0_54 = arith.constant 0 : index
    %c0_55 = arith.constant 0 : index
    %58 = vector.load %arg12[%c0_54, %c0_55] : memref<4x32xf32, #tpu.memory_space<vmem>>, vector<4x32xf32>
    tpu.vector_store %arg12[%c0_54, %c0_55], %57 {strides = array<i32>} : memref<4x32xf32, #tpu.memory_space<vmem>>, vector<4x32xf32>,
    %c0_56 = arith.constant 0 : index
    %c0_57 = arith.constant 0 : index
    %59 = vector.load %arg12[%c0_56, %c0_57] : memref<4x32xf32, #tpu.memory_space<vmem>>, vector<4x32xf32>
    %c3 = arith.constant 3 : index
    %c0_58 = arith.constant 0 : index
    %c0_59 = arith.constant 0 : index
    %60 = vector.load %arg5[%c3, %c0_58, %c0_59] : memref<21x4x8xf32, #tpu.memory_space<vmem>>, vector<1x4x8xf32>
    %61 = vector.shape_cast %60 : vector<1x4x8xf32> to vector<4x8xf32>
    %c0_60 = arith.constant 0 : index
    %c3_61 = arith.constant 3 : index
    %62 = vector.load %arg10[%c0_60, %c3_61] : memref<8x52xf32, #tpu.memory_space<vmem>>, vector<8x32xf32>
    %cst_62 = arith.constant dense<0.000000e+00> : vector<4x32xf32>
    %63 = tpu.matmul %61, %62, %cst_62 {dimension_numbers = #tpu.dot_dimension_numbers<[1], [0], [0], [1], [0, 0, 1, 1], [], []>} : vector<4x8xf32>, vector<8x32xf32>, vector<4x32xf32> -> vector<4x32xf32>
    %64 = arith.addf %59, %63 : vector<4x32xf32>
    %c0_63 = arith.constant 0 : index
    %c0_64 = arith.constant 0 : index
    %65 = vector.load %arg12[%c0_63, %c0_64] : memref<4x32xf32, #tpu.memory_space<vmem>>, vector<4x32xf32>
    tpu.vector_store %arg12[%c0_63, %c0_64], %64 {strides = array<i32>} : memref<4x32xf32, #tpu.memory_space<vmem>>, vector<4x32xf32>,
    %c0_65 = arith.constant 0 : index
    %c0_66 = arith.constant 0 : index
    %66 = vector.load %arg12[%c0_65, %c0_66] : memref<4x32xf32, #tpu.memory_space<vmem>>, vector<4x32xf32>
    %c4_67 = arith.constant 4 : index
    %c0_68 = arith.constant 0 : index
    %c0_69 = arith.constant 0 : index
    %67 = vector.load %arg5[%c4_67, %c0_68, %c0_69] : memref<21x4x8xf32, #tpu.memory_space<vmem>>, vector<1x4x8xf32>
    %68 = vector.shape_cast %67 : vector<1x4x8xf32> to vector<4x8xf32>
    %c0_70 = arith.constant 0 : index
    %c4_71 = arith.constant 4 : index
    %69 = vector.load %arg10[%c0_70, %c4_71] : memref<8x52xf32, #tpu.memory_space<vmem>>, vector<8x32xf32>
    %cst_72 = arith.constant dense<0.000000e+00> : vector<4x32xf32>
    %70 = tpu.matmul %68, %69, %cst_72 {dimension_numbers = #tpu.dot_dimension_numbers<[1], [0], [0], [1], [0, 0, 1, 1], [], []>} : vector<4x8xf32>, vector<8x32xf32>, vector<4x32xf32> -> vector<4x32xf32>
    %71 = arith.addf %66, %70 : vector<4x32xf32>
    %c0_73 = arith.constant 0 : index
    %c0_74 = arith.constant 0 : index
    %72 = vector.load %arg12[%c0_73, %c0_74] : memref<4x32xf32, #tpu.memory_space<vmem>>, vector<4x32xf32>
    tpu.vector_store %arg12[%c0_73, %c0_74], %71 {strides = array<i32>} : memref<4x32xf32, #tpu.memory_space<vmem>>, vector<4x32xf32>,
    %c0_75 = arith.constant 0 : index
    %c0_76 = arith.constant 0 : index
    %73 = vector.load %arg12[%c0_75, %c0_76] : memref<4x32xf32, #tpu.memory_space<vmem>>, vector<4x32xf32>
    %c5 = arith.constant 5 : index
    %c0_77 = arith.constant 0 : index
    %c0_78 = arith.constant 0 : index
    %74 = vector.load %arg5[%c5, %c0_77, %c0_78] : memref<21x4x8xf32, #tpu.memory_space<vmem>>, vector<1x4x8xf32>
    %75 = vector.shape_cast %74 : vector<1x4x8xf32> to vector<4x8xf32>
    %c0_79 = arith.constant 0 : index
    %c5_80 = arith.constant 5 : index
    %76 = vector.load %arg10[%c0_79, %c5_80] : memref<8x52xf32, #tpu.memory_space<vmem>>, vector<8x32xf32>
    %cst_81 = arith.constant dense<0.000000e+00> : vector<4x32xf32>
    %77 = tpu.matmul %75, %76, %cst_81 {dimension_numbers = #tpu.dot_dimension_numbers<[1], [0], [0], [1], [0, 0, 1, 1], [], []>} : vector<4x8xf32>, vector<8x32xf32>, vector<4x32xf32> -> vector<4x32xf32>
    %78 = arith.addf %73, %77 : vector<4x32xf32>
    %c0_82 = arith.constant 0 : index
    %c0_83 = arith.constant 0 : index
    %79 = vector.load %arg12[%c0_82, %c0_83] : memref<4x32xf32, #tpu.memory_space<vmem>>, vector<4x32xf32>
    tpu.vector_store %arg12[%c0_82, %c0_83], %78 {strides = array<i32>} : memref<4x32xf32, #tpu.memory_space<vmem>>, vector<4x32xf32>,
    %c0_84 = arith.constant 0 : index
    %c0_85 = arith.constant 0 : index
    %80 = vector.load %arg12[%c0_84, %c0_85] : memref<4x32xf32, #tpu.memory_space<vmem>>, vector<4x32xf32>
    %c6 = arith.constant 6 : index
    %c0_86 = arith.constant 0 : index
    %c0_87 = arith.constant 0 : index
    %81 = vector.load %arg5[%c6, %c0_86, %c0_87] : memref<21x4x8xf32, #tpu.memory_space<vmem>>, vector<1x4x8xf32>
    %82 = vector.shape_cast %81 : vector<1x4x8xf32> to vector<4x8xf32>
    %c0_88 = arith.constant 0 : index
    %c6_89 = arith.constant 6 : index
    %83 = vector.load %arg10[%c0_88, %c6_89] : memref<8x52xf32, #tpu.memory_space<vmem>>, vector<8x32xf32>
    %cst_90 = arith.constant dense<0.000000e+00> : vector<4x32xf32>
    %84 = tpu.matmul %82, %83, %cst_90 {dimension_numbers = #tpu.dot_dimension_numbers<[1], [0], [0], [1], [0, 0, 1, 1], [], []>} : vector<4x8xf32>, vector<8x32xf32>, vector<4x32xf32> -> vector<4x32xf32>
    %85 = arith.addf %80, %84 : vector<4x32xf32>
    %c0_91 = arith.constant 0 : index
    %c0_92 = arith.constant 0 : index
    %86 = vector.load %arg12[%c0_91, %c0_92] : memref<4x32xf32, #tpu.memory_space<vmem>>, vector<4x32xf32>
    tpu.vector_store %arg12[%c0_91, %c0_92], %85 {strides = array<i32>} : memref<4x32xf32, #tpu.memory_space<vmem>>, vector<4x32xf32>,
    %c0_93 = arith.constant 0 : index
    %c0_94 = arith.constant 0 : index
    %87 = vector.load %arg12[%c0_93, %c0_94] : memref<4x32xf32, #tpu.memory_space<vmem>>, vector<4x32xf32>
    %c7 = arith.constant 7 : index
    %c0_95 = arith.constant 0 : index
    %c0_96 = arith.constant 0 : index
    %88 = vector.load %arg5[%c7, %c0_95, %c0_96] : memref<21x4x8xf32, #tpu.memory_space<vmem>>, vector<1x4x8xf32>
    %89 = vector.shape_cast %88 : vector<1x4x8xf32> to vector<4x8xf32>
    %c0_97 = arith.constant 0 : index
    %c7_98 = arith.constant 7 : index
    %90 = vector.load %arg10[%c0_97, %c7_98] : memref<8x52xf32, #tpu.memory_space<vmem>>, vector<8x32xf32>
    %cst_99 = arith.constant dense<0.000000e+00> : vector<4x32xf32>
    %91 = tpu.matmul %89, %90, %cst_99 {dimension_numbers = #tpu.dot_dimension_numbers<[1], [0], [0], [1], [0, 0, 1, 1], [], []>} : vector<4x8xf32>, vector<8x32xf32>, vector<4x32xf32> -> vector<4x32xf32>
    %92 = arith.addf %87, %91 : vector<4x32xf32>
    %c0_100 = arith.constant 0 : index
    %c0_101 = arith.constant 0 : index
    %93 = vector.load %arg12[%c0_100, %c0_101] : memref<4x32xf32, #tpu.memory_space<vmem>>, vector<4x32xf32>
    tpu.vector_store %arg12[%c0_100, %c0_101], %92 {strides = array<i32>} : memref<4x32xf32, #tpu.memory_space<vmem>>, vector<4x32xf32>,
    %c0_102 = arith.constant 0 : index
    %c0_103 = arith.constant 0 : index
    %94 = vector.load %arg12[%c0_102, %c0_103] : memref<4x32xf32, #tpu.memory_space<vmem>>, vector<4x32xf32>
    %c8 = arith.constant 8 : index
    %c0_104 = arith.constant 0 : index
    %c0_105 = arith.constant 0 : index
    %95 = vector.load %arg5[%c8, %c0_104, %c0_105] : memref<21x4x8xf32, #tpu.memory_space<vmem>>, vector<1x4x8xf32>
    %96 = vector.shape_cast %95 : vector<1x4x8xf32> to vector<4x8xf32>
    %c0_106 = arith.constant 0 : index
    %c8_107 = arith.constant 8 : index
    %97 = vector.load %arg10[%c0_106, %c8_107] : memref<8x52xf32, #tpu.memory_space<vmem>>, vector<8x32xf32>
    %cst_108 = arith.constant dense<0.000000e+00> : vector<4x32xf32>
    %98 = tpu.matmul %96, %97, %cst_108 {dimension_numbers = #tpu.dot_dimension_numbers<[1], [0], [0], [1], [0, 0, 1, 1], [], []>} : vector<4x8xf32>, vector<8x32xf32>, vector<4x32xf32> -> vector<4x32xf32>
    %99 = arith.addf %94, %98 : vector<4x32xf32>
    %c0_109 = arith.constant 0 : index
    %c0_110 = arith.constant 0 : index
    %100 = vector.load %arg12[%c0_109, %c0_110] : memref<4x32xf32, #tpu.memory_space<vmem>>, vector<4x32xf32>
    tpu.vector_store %arg12[%c0_109, %c0_110], %99 {strides = array<i32>} : memref<4x32xf32, #tpu.memory_space<vmem>>, vector<4x32xf32>,
    %c0_111 = arith.constant 0 : index
    %c0_112 = arith.constant 0 : index
    %101 = vector.load %arg12[%c0_111, %c0_112] : memref<4x32xf32, #tpu.memory_space<vmem>>, vector<4x32xf32>
    %c9 = arith.constant 9 : index
    %c0_113 = arith.constant 0 : index
    %c0_114 = arith.constant 0 : index
    %102 = vector.load %arg5[%c9, %c0_113, %c0_114] : memref<21x4x8xf32, #tpu.memory_space<vmem>>, vector<1x4x8xf32>
    %103 = vector.shape_cast %102 : vector<1x4x8xf32> to vector<4x8xf32>
    %c0_115 = arith.constant 0 : index
    %c9_116 = arith.constant 9 : index
    %104 = vector.load %arg10[%c0_115, %c9_116] : memref<8x52xf32, #tpu.memory_space<vmem>>, vector<8x32xf32>
    %cst_117 = arith.constant dense<0.000000e+00> : vector<4x32xf32>
    %105 = tpu.matmul %103, %104, %cst_117 {dimension_numbers = #tpu.dot_dimension_numbers<[1], [0], [0], [1], [0, 0, 1, 1], [], []>} : vector<4x8xf32>, vector<8x32xf32>, vector<4x32xf32> -> vector<4x32xf32>
    %106 = arith.addf %101, %105 : vector<4x32xf32>
    %c0_118 = arith.constant 0 : index
    %c0_119 = arith.constant 0 : index
    %107 = vector.load %arg12[%c0_118, %c0_119] : memref<4x32xf32, #tpu.memory_space<vmem>>, vector<4x32xf32>
    tpu.vector_store %arg12[%c0_118, %c0_119], %106 {strides = array<i32>} : memref<4x32xf32, #tpu.memory_space<vmem>>, vector<4x32xf32>,
    %c0_120 = arith.constant 0 : index
    %c0_121 = arith.constant 0 : index
    %108 = vector.load %arg12[%c0_120, %c0_121] : memref<4x32xf32, #tpu.memory_space<vmem>>, vector<4x32xf32>
    %c10_122 = arith.constant 10 : index
    %c0_123 = arith.constant 0 : index
    %c0_124 = arith.constant 0 : index
    %109 = vector.load %arg5[%c10_122, %c0_123, %c0_124] : memref<21x4x8xf32, #tpu.memory_space<vmem>>, vector<1x4x8xf32>
    %110 = vector.shape_cast %109 : vector<1x4x8xf32> to vector<4x8xf32>
    %c0_125 = arith.constant 0 : index
    %c10_126 = arith.constant 10 : index
    %111 = vector.load %arg10[%c0_125, %c10_126] : memref<8x52xf32, #tpu.memory_space<vmem>>, vector<8x32xf32>
    %cst_127 = arith.constant dense<0.000000e+00> : vector<4x32xf32>
    %112 = tpu.matmul %110, %111, %cst_127 {dimension_numbers = #tpu.dot_dimension_numbers<[1], [0], [0], [1], [0, 0, 1, 1], [], []>} : vector<4x8xf32>, vector<8x32xf32>, vector<4x32xf32> -> vector<4x32xf32>
    %113 = arith.addf %108, %112 : vector<4x32xf32>
    %c0_128 = arith.constant 0 : index
    %c0_129 = arith.constant 0 : index
    %114 = vector.load %arg12[%c0_128, %c0_129] : memref<4x32xf32, #tpu.memory_space<vmem>>, vector<4x32xf32>
    tpu.vector_store %arg12[%c0_128, %c0_129], %113 {strides = array<i32>} : memref<4x32xf32, #tpu.memory_space<vmem>>, vector<4x32xf32>,
    %c0_130 = arith.constant 0 : index
    %c0_131 = arith.constant 0 : index
    %115 = vector.load %arg12[%c0_130, %c0_131] : memref<4x32xf32, #tpu.memory_space<vmem>>, vector<4x32xf32>
    %c11 = arith.constant 11 : index
    %c0_132 = arith.constant 0 : index
    %c0_133 = arith.constant 0 : index
    %116 = vector.load %arg5[%c11, %c0_132, %c0_133] : memref<21x4x8xf32, #tpu.memory_space<vmem>>, vector<1x4x8xf32>
    %117 = vector.shape_cast %116 : vector<1x4x8xf32> to vector<4x8xf32>
    %c0_134 = arith.constant 0 : index
    %c11_135 = arith.constant 11 : index
    %118 = vector.load %arg10[%c0_134, %c11_135] : memref<8x52xf32, #tpu.memory_space<vmem>>, vector<8x32xf32>
    %cst_136 = arith.constant dense<0.000000e+00> : vector<4x32xf32>
    %119 = tpu.matmul %117, %118, %cst_136 {dimension_numbers = #tpu.dot_dimension_numbers<[1], [0], [0], [1], [0, 0, 1, 1], [], []>} : vector<4x8xf32>, vector<8x32xf32>, vector<4x32xf32> -> vector<4x32xf32>
    %120 = arith.addf %115, %119 : vector<4x32xf32>
    %c0_137 = arith.constant 0 : index
    %c0_138 = arith.constant 0 : index
    %121 = vector.load %arg12[%c0_137, %c0_138] : memref<4x32xf32, #tpu.memory_space<vmem>>, vector<4x32xf32>
    tpu.vector_store %arg12[%c0_137, %c0_138], %120 {strides = array<i32>} : memref<4x32xf32, #tpu.memory_space<vmem>>, vector<4x32xf32>,
    %c0_139 = arith.constant 0 : index
    %c0_140 = arith.constant 0 : index
    %122 = vector.load %arg12[%c0_139, %c0_140] : memref<4x32xf32, #tpu.memory_space<vmem>>, vector<4x32xf32>
    %c12 = arith.constant 12 : index
    %c0_141 = arith.constant 0 : index
    %c0_142 = arith.constant 0 : index
    %123 = vector.load %arg5[%c12, %c0_141, %c0_142] : memref<21x4x8xf32, #tpu.memory_space<vmem>>, vector<1x4x8xf32>
    %124 = vector.shape_cast %123 : vector<1x4x8xf32> to vector<4x8xf32>
    %c0_143 = arith.constant 0 : index
    %c12_144 = arith.constant 12 : index
    %125 = vector.load %arg10[%c0_143, %c12_144] : memref<8x52xf32, #tpu.memory_space<vmem>>, vector<8x32xf32>
    %cst_145 = arith.constant dense<0.000000e+00> : vector<4x32xf32>
    %126 = tpu.matmul %124, %125, %cst_145 {dimension_numbers = #tpu.dot_dimension_numbers<[1], [0], [0], [1], [0, 0, 1, 1], [], []>} : vector<4x8xf32>, vector<8x32xf32>, vector<4x32xf32> -> vector<4x32xf32>
    %127 = arith.addf %122, %126 : vector<4x32xf32>
    %c0_146 = arith.constant 0 : index
    %c0_147 = arith.constant 0 : index
    %128 = vector.load %arg12[%c0_146, %c0_147] : memref<4x32xf32, #tpu.memory_space<vmem>>, vector<4x32xf32>
    tpu.vector_store %arg12[%c0_146, %c0_147], %127 {strides = array<i32>} : memref<4x32xf32, #tpu.memory_space<vmem>>, vector<4x32xf32>,
    %c0_148 = arith.constant 0 : index
    %c0_149 = arith.constant 0 : index
    %129 = vector.load %arg12[%c0_148, %c0_149] : memref<4x32xf32, #tpu.memory_space<vmem>>, vector<4x32xf32>
    %c13 = arith.constant 13 : index
    %c0_150 = arith.constant 0 : index
    %c0_151 = arith.constant 0 : index
    %130 = vector.load %arg5[%c13, %c0_150, %c0_151] : memref<21x4x8xf32, #tpu.memory_space<vmem>>, vector<1x4x8xf32>
    %131 = vector.shape_cast %130 : vector<1x4x8xf32> to vector<4x8xf32>
    %c0_152 = arith.constant 0 : index
    %c13_153 = arith.constant 13 : index
    %132 = vector.load %arg10[%c0_152, %c13_153] : memref<8x52xf32, #tpu.memory_space<vmem>>, vector<8x32xf32>
    %cst_154 = arith.constant dense<0.000000e+00> : vector<4x32xf32>
    %133 = tpu.matmul %131, %132, %cst_154 {dimension_numbers = #tpu.dot_dimension_numbers<[1], [0], [0], [1], [0, 0, 1, 1], [], []>} : vector<4x8xf32>, vector<8x32xf32>, vector<4x32xf32> -> vector<4x32xf32>
    %134 = arith.addf %129, %133 : vector<4x32xf32>
    %c0_155 = arith.constant 0 : index
    %c0_156 = arith.constant 0 : index
    %135 = vector.load %arg12[%c0_155, %c0_156] : memref<4x32xf32, #tpu.memory_space<vmem>>, vector<4x32xf32>
    tpu.vector_store %arg12[%c0_155, %c0_156], %134 {strides = array<i32>} : memref<4x32xf32, #tpu.memory_space<vmem>>, vector<4x32xf32>,
    %c0_157 = arith.constant 0 : index
    %c0_158 = arith.constant 0 : index
    %136 = vector.load %arg12[%c0_157, %c0_158] : memref<4x32xf32, #tpu.memory_space<vmem>>, vector<4x32xf32>
    %c14 = arith.constant 14 : index
    %c0_159 = arith.constant 0 : index
    %c0_160 = arith.constant 0 : index
    %137 = vector.load %arg5[%c14, %c0_159, %c0_160] : memref<21x4x8xf32, #tpu.memory_space<vmem>>, vector<1x4x8xf32>
    %138 = vector.shape_cast %137 : vector<1x4x8xf32> to vector<4x8xf32>
    %c0_161 = arith.constant 0 : index
    %c14_162 = arith.constant 14 : index
    %139 = vector.load %arg10[%c0_161, %c14_162] : memref<8x52xf32, #tpu.memory_space<vmem>>, vector<8x32xf32>
    %cst_163 = arith.constant dense<0.000000e+00> : vector<4x32xf32>
    %140 = tpu.matmul %138, %139, %cst_163 {dimension_numbers = #tpu.dot_dimension_numbers<[1], [0], [0], [1], [0, 0, 1, 1], [], []>} : vector<4x8xf32>, vector<8x32xf32>, vector<4x32xf32> -> vector<4x32xf32>
    %141 = arith.addf %136, %140 : vector<4x32xf32>
    %c0_164 = arith.constant 0 : index
    %c0_165 = arith.constant 0 : index
    %142 = vector.load %arg12[%c0_164, %c0_165] : memref<4x32xf32, #tpu.memory_space<vmem>>, vector<4x32xf32>
    tpu.vector_store %arg12[%c0_164, %c0_165], %141 {strides = array<i32>} : memref<4x32xf32, #tpu.memory_space<vmem>>, vector<4x32xf32>,
    %c0_166 = arith.constant 0 : index
    %c0_167 = arith.constant 0 : index
    %143 = vector.load %arg12[%c0_166, %c0_167] : memref<4x32xf32, #tpu.memory_space<vmem>>, vector<4x32xf32>
    %c15 = arith.constant 15 : index
    %c0_168 = arith.constant 0 : index
    %c0_169 = arith.constant 0 : index
    %144 = vector.load %arg5[%c15, %c0_168, %c0_169] : memref<21x4x8xf32, #tpu.memory_space<vmem>>, vector<1x4x8xf32>
    %145 = vector.shape_cast %144 : vector<1x4x8xf32> to vector<4x8xf32>
    %c0_170 = arith.constant 0 : index
    %c15_171 = arith.constant 15 : index
    %146 = vector.load %arg10[%c0_170, %c15_171] : memref<8x52xf32, #tpu.memory_space<vmem>>, vector<8x32xf32>
    %cst_172 = arith.constant dense<0.000000e+00> : vector<4x32xf32>
    %147 = tpu.matmul %145, %146, %cst_172 {dimension_numbers = #tpu.dot_dimension_numbers<[1], [0], [0], [1], [0, 0, 1, 1], [], []>} : vector<4x8xf32>, vector<8x32xf32>, vector<4x32xf32> -> vector<4x32xf32>
    %148 = arith.addf %143, %147 : vector<4x32xf32>
    %c0_173 = arith.constant 0 : index
    %c0_174 = arith.constant 0 : index
    %149 = vector.load %arg12[%c0_173, %c0_174] : memref<4x32xf32, #tpu.memory_space<vmem>>, vector<4x32xf32>
    tpu.vector_store %arg12[%c0_173, %c0_174], %148 {strides = array<i32>} : memref<4x32xf32, #tpu.memory_space<vmem>>, vector<4x32xf32>,
    %c0_175 = arith.constant 0 : index
    %c0_176 = arith.constant 0 : index
    %150 = vector.load %arg12[%c0_175, %c0_176] : memref<4x32xf32, #tpu.memory_space<vmem>>, vector<4x32xf32>
    %c16 = arith.constant 16 : index
    %c0_177 = arith.constant 0 : index
    %c0_178 = arith.constant 0 : index
    %151 = vector.load %arg5[%c16, %c0_177, %c0_178] : memref<21x4x8xf32, #tpu.memory_space<vmem>>, vector<1x4x8xf32>
    %152 = vector.shape_cast %151 : vector<1x4x8xf32> to vector<4x8xf32>
    %c0_179 = arith.constant 0 : index
    %c16_180 = arith.constant 16 : index
    %153 = vector.load %arg10[%c0_179, %c16_180] : memref<8x52xf32, #tpu.memory_space<vmem>>, vector<8x32xf32>
    %cst_181 = arith.constant dense<0.000000e+00> : vector<4x32xf32>
    %154 = tpu.matmul %152, %153, %cst_181 {dimension_numbers = #tpu.dot_dimension_numbers<[1], [0], [0], [1], [0, 0, 1, 1], [], []>} : vector<4x8xf32>, vector<8x32xf32>, vector<4x32xf32> -> vector<4x32xf32>
    %155 = arith.addf %150, %154 : vector<4x32xf32>
    %c0_182 = arith.constant 0 : index
    %c0_183 = arith.constant 0 : index
    %156 = vector.load %arg12[%c0_182, %c0_183] : memref<4x32xf32, #tpu.memory_space<vmem>>, vector<4x32xf32>
    tpu.vector_store %arg12[%c0_182, %c0_183], %155 {strides = array<i32>} : memref<4x32xf32, #tpu.memory_space<vmem>>, vector<4x32xf32>,
    %c0_184 = arith.constant 0 : index
    %c0_185 = arith.constant 0 : index
    %157 = vector.load %arg12[%c0_184, %c0_185] : memref<4x32xf32, #tpu.memory_space<vmem>>, vector<4x32xf32>
    %c17 = arith.constant 17 : index
    %c0_186 = arith.constant 0 : index
    %c0_187 = arith.constant 0 : index
    %158 = vector.load %arg5[%c17, %c0_186, %c0_187] : memref<21x4x8xf32, #tpu.memory_space<vmem>>, vector<1x4x8xf32>
    %159 = vector.shape_cast %158 : vector<1x4x8xf32> to vector<4x8xf32>
    %c0_188 = arith.constant 0 : index
    %c17_189 = arith.constant 17 : index
    %160 = vector.load %arg10[%c0_188, %c17_189] : memref<8x52xf32, #tpu.memory_space<vmem>>, vector<8x32xf32>
    %cst_190 = arith.constant dense<0.000000e+00> : vector<4x32xf32>
    %161 = tpu.matmul %159, %160, %cst_190 {dimension_numbers = #tpu.dot_dimension_numbers<[1], [0], [0], [1], [0, 0, 1, 1], [], []>} : vector<4x8xf32>, vector<8x32xf32>, vector<4x32xf32> -> vector<4x32xf32>
    %162 = arith.addf %157, %161 : vector<4x32xf32>
    %c0_191 = arith.constant 0 : index
    %c0_192 = arith.constant 0 : index
    %163 = vector.load %arg12[%c0_191, %c0_192] : memref<4x32xf32, #tpu.memory_space<vmem>>, vector<4x32xf32>
    tpu.vector_store %arg12[%c0_191, %c0_192], %162 {strides = array<i32>} : memref<4x32xf32, #tpu.memory_space<vmem>>, vector<4x32xf32>,
    %c0_193 = arith.constant 0 : index
    %c0_194 = arith.constant 0 : index
    %164 = vector.load %arg12[%c0_193, %c0_194] : memref<4x32xf32, #tpu.memory_space<vmem>>, vector<4x32xf32>
    %c18 = arith.constant 18 : index
    %c0_195 = arith.constant 0 : index
    %c0_196 = arith.constant 0 : index
    %165 = vector.load %arg5[%c18, %c0_195, %c0_196] : memref<21x4x8xf32, #tpu.memory_space<vmem>>, vector<1x4x8xf32>
    %166 = vector.shape_cast %165 : vector<1x4x8xf32> to vector<4x8xf32>
    %c0_197 = arith.constant 0 : index
    %c18_198 = arith.constant 18 : index
    %167 = vector.load %arg10[%c0_197, %c18_198] : memref<8x52xf32, #tpu.memory_space<vmem>>, vector<8x32xf32>
    %cst_199 = arith.constant dense<0.000000e+00> : vector<4x32xf32>
    %168 = tpu.matmul %166, %167, %cst_199 {dimension_numbers = #tpu.dot_dimension_numbers<[1], [0], [0], [1], [0, 0, 1, 1], [], []>} : vector<4x8xf32>, vector<8x32xf32>, vector<4x32xf32> -> vector<4x32xf32>
    %169 = arith.addf %164, %168 : vector<4x32xf32>
    %c0_200 = arith.constant 0 : index
    %c0_201 = arith.constant 0 : index
    %170 = vector.load %arg12[%c0_200, %c0_201] : memref<4x32xf32, #tpu.memory_space<vmem>>, vector<4x32xf32>
    tpu.vector_store %arg12[%c0_200, %c0_201], %169 {strides = array<i32>} : memref<4x32xf32, #tpu.memory_space<vmem>>, vector<4x32xf32>,
    %c0_202 = arith.constant 0 : index
    %c0_203 = arith.constant 0 : index
    %171 = vector.load %arg12[%c0_202, %c0_203] : memref<4x32xf32, #tpu.memory_space<vmem>>, vector<4x32xf32>
    %c19 = arith.constant 19 : index
    %c0_204 = arith.constant 0 : index
    %c0_205 = arith.constant 0 : index
    %172 = vector.load %arg5[%c19, %c0_204, %c0_205] : memref<21x4x8xf32, #tpu.memory_space<vmem>>, vector<1x4x8xf32>
    %173 = vector.shape_cast %172 : vector<1x4x8xf32> to vector<4x8xf32>
    %c0_206 = arith.constant 0 : index
    %c19_207 = arith.constant 19 : index
    %174 = vector.load %arg10[%c0_206, %c19_207] : memref<8x52xf32, #tpu.memory_space<vmem>>, vector<8x32xf32>
    %cst_208 = arith.constant dense<0.000000e+00> : vector<4x32xf32>
    %175 = tpu.matmul %173, %174, %cst_208 {dimension_numbers = #tpu.dot_dimension_numbers<[1], [0], [0], [1], [0, 0, 1, 1], [], []>} : vector<4x8xf32>, vector<8x32xf32>, vector<4x32xf32> -> vector<4x32xf32>
    %176 = arith.addf %171, %175 : vector<4x32xf32>
    %c0_209 = arith.constant 0 : index
    %c0_210 = arith.constant 0 : index
    %177 = vector.load %arg12[%c0_209, %c0_210] : memref<4x32xf32, #tpu.memory_space<vmem>>, vector<4x32xf32>
    tpu.vector_store %arg12[%c0_209, %c0_210], %176 {strides = array<i32>} : memref<4x32xf32, #tpu.memory_space<vmem>>, vector<4x32xf32>,
    %c0_211 = arith.constant 0 : index
    %c0_212 = arith.constant 0 : index
    %178 = vector.load %arg12[%c0_211, %c0_212] : memref<4x32xf32, #tpu.memory_space<vmem>>, vector<4x32xf32>
    %c20 = arith.constant 20 : index
    %c0_213 = arith.constant 0 : index
    %c0_214 = arith.constant 0 : index
    %179 = vector.load %arg5[%c20, %c0_213, %c0_214] : memref<21x4x8xf32, #tpu.memory_space<vmem>>, vector<1x4x8xf32>
    %180 = vector.shape_cast %179 : vector<1x4x8xf32> to vector<4x8xf32>
    %c0_215 = arith.constant 0 : index
    %c20_216 = arith.constant 20 : index
    %181 = vector.load %arg10[%c0_215, %c20_216] : memref<8x52xf32, #tpu.memory_space<vmem>>, vector<8x32xf32>
    %cst_217 = arith.constant dense<0.000000e+00> : vector<4x32xf32>
    %182 = tpu.matmul %180, %181, %cst_217 {dimension_numbers = #tpu.dot_dimension_numbers<[1], [0], [0], [1], [0, 0, 1, 1], [], []>} : vector<4x8xf32>, vector<8x32xf32>, vector<4x32xf32> -> vector<4x32xf32>
    %183 = arith.addf %178, %182 : vector<4x32xf32>
    %c0_218 = arith.constant 0 : index
    %c0_219 = arith.constant 0 : index
    %184 = vector.load %arg12[%c0_218, %c0_219] : memref<4x32xf32, #tpu.memory_space<vmem>>, vector<4x32xf32>
    tpu.vector_store %arg12[%c0_218, %c0_219], %183 {strides = array<i32>} : memref<4x32xf32, #tpu.memory_space<vmem>>, vector<4x32xf32>,
    %c0_220 = arith.constant 0 : index
    %c0_221 = arith.constant 0 : index
    %185 = vector.load %arg12[%c0_220, %c0_221] : memref<4x32xf32, #tpu.memory_space<vmem>>, vector<4x32xf32>
    %c0_222 = arith.constant 0 : index
    %c0_223 = arith.constant 0 : index
    %186 = vector.load %arg6[%c0_222, %c0_223] : memref<4x1xf32, #tpu.memory_space<vmem>>, vector<4x1xf32>
    %187 = vector.broadcast %186 : vector<4x1xf32> to vector<4x32xf32>
    %188 = arith.addf %185, %187 : vector<4x32xf32>
    %cst_224 = arith.constant 0.000000e+00 : f32
    %189 = vector.broadcast %cst_224 : f32 to vector<4x32xf32>
    %190 = arith.maximumf %188, %189 : vector<4x32xf32>
    %c0_225 = arith.constant 0 : index
    %c10_226 = arith.constant 10 : index
    %191 = vector.load %arg11[%c0_225, %c10_226] : memref<4x52xf32, #tpu.memory_space<vmem>>, vector<4x32xf32>
    tpu.vector_store %arg11[%c0_225, %c10_226], %190 {strides = array<i32>} : memref<4x52xf32, #tpu.memory_space<vmem>>, vector<4x32xf32>,
    %c0_227 = arith.constant 0 : index
    %c0_228 = arith.constant 0 : index
    %c0_229 = arith.constant 0 : index
    %192 = vector.load %arg7[%c0_227, %c0_228, %c0_229] : memref<21x4x4xf32, #tpu.memory_space<vmem>>, vector<1x4x4xf32>
    %193 = vector.shape_cast %192 : vector<1x4x4xf32> to vector<4x4xf32>
    %c0_230 = arith.constant 0 : index
    %c0_231 = arith.constant 0 : index
    %194 = vector.load %arg11[%c0_230, %c0_231] : memref<4x52xf32, #tpu.memory_space<vmem>>, vector<4x32xf32>
    %cst_232 = arith.constant dense<0.000000e+00> : vector<4x32xf32>
    %195 = tpu.matmul %193, %194, %cst_232 {dimension_numbers = #tpu.dot_dimension_numbers<[1], [0], [0], [1], [0, 0, 1, 1], [], []>} : vector<4x4xf32>, vector<4x32xf32>, vector<4x32xf32> -> vector<4x32xf32>
    %c0_233 = arith.constant 0 : index
    %c0_234 = arith.constant 0 : index
    %196 = vector.load %arg12[%c0_233, %c0_234] : memref<4x32xf32, #tpu.memory_space<vmem>>, vector<4x32xf32>
    tpu.vector_store %arg12[%c0_233, %c0_234], %195 {strides = array<i32>} : memref<4x32xf32, #tpu.memory_space<vmem>>, vector<4x32xf32>,
    %c0_235 = arith.constant 0 : index
    %c0_236 = arith.constant 0 : index
    %197 = vector.load %arg12[%c0_235, %c0_236] : memref<4x32xf32, #tpu.memory_space<vmem>>, vector<4x32xf32>
    %c1_237 = arith.constant 1 : index
    %c0_238 = arith.constant 0 : index
    %c0_239 = arith.constant 0 : index
    %198 = vector.load %arg7[%c1_237, %c0_238, %c0_239] : memref<21x4x4xf32, #tpu.memory_space<vmem>>, vector<1x4x4xf32>
    %199 = vector.shape_cast %198 : vector<1x4x4xf32> to vector<4x4xf32>
    %c0_240 = arith.constant 0 : index
    %c1_241 = arith.constant 1 : index
    %200 = vector.load %arg11[%c0_240, %c1_241] : memref<4x52xf32, #tpu.memory_space<vmem>>, vector<4x32xf32>
    %cst_242 = arith.constant dense<0.000000e+00> : vector<4x32xf32>
    %201 = tpu.matmul %199, %200, %cst_242 {dimension_numbers = #tpu.dot_dimension_numbers<[1], [0], [0], [1], [0, 0, 1, 1], [], []>} : vector<4x4xf32>, vector<4x32xf32>, vector<4x32xf32> -> vector<4x32xf32>
    %202 = arith.addf %197, %201 : vector<4x32xf32>
    %c0_243 = arith.constant 0 : index
    %c0_244 = arith.constant 0 : index
    %203 = vector.load %arg12[%c0_243, %c0_244] : memref<4x32xf32, #tpu.memory_space<vmem>>, vector<4x32xf32>
    tpu.vector_store %arg12[%c0_243, %c0_244], %202 {strides = array<i32>} : memref<4x32xf32, #tpu.memory_space<vmem>>, vector<4x32xf32>,
    %c0_245 = arith.constant 0 : index
    %c0_246 = arith.constant 0 : index
    %204 = vector.load %arg12[%c0_245, %c0_246] : memref<4x32xf32, #tpu.memory_space<vmem>>, vector<4x32xf32>
    %c2_247 = arith.constant 2 : index
    %c0_248 = arith.constant 0 : index
    %c0_249 = arith.constant 0 : index
    %205 = vector.load %arg7[%c2_247, %c0_248, %c0_249] : memref<21x4x4xf32, #tpu.memory_space<vmem>>, vector<1x4x4xf32>
    %206 = vector.shape_cast %205 : vector<1x4x4xf32> to vector<4x4xf32>
    %c0_250 = arith.constant 0 : index
    %c2_251 = arith.constant 2 : index
    %207 = vector.load %arg11[%c0_250, %c2_251] : memref<4x52xf32, #tpu.memory_space<vmem>>, vector<4x32xf32>
    %cst_252 = arith.constant dense<0.000000e+00> : vector<4x32xf32>
    %208 = tpu.matmul %206, %207, %cst_252 {dimension_numbers = #tpu.dot_dimension_numbers<[1], [0], [0], [1], [0, 0, 1, 1], [], []>} : vector<4x4xf32>, vector<4x32xf32>, vector<4x32xf32> -> vector<4x32xf32>
    %209 = arith.addf %204, %208 : vector<4x32xf32>
    %c0_253 = arith.constant 0 : index
    %c0_254 = arith.constant 0 : index
    %210 = vector.load %arg12[%c0_253, %c0_254] : memref<4x32xf32, #tpu.memory_space<vmem>>, vector<4x32xf32>
    tpu.vector_store %arg12[%c0_253, %c0_254], %209 {strides = array<i32>} : memref<4x32xf32, #tpu.memory_space<vmem>>, vector<4x32xf32>,
    %c0_255 = arith.constant 0 : index
    %c0_256 = arith.constant 0 : index
    %211 = vector.load %arg12[%c0_255, %c0_256] : memref<4x32xf32, #tpu.memory_space<vmem>>, vector<4x32xf32>
    %c3_257 = arith.constant 3 : index
    %c0_258 = arith.constant 0 : index
    %c0_259 = arith.constant 0 : index
    %212 = vector.load %arg7[%c3_257, %c0_258, %c0_259] : memref<21x4x4xf32, #tpu.memory_space<vmem>>, vector<1x4x4xf32>
    %213 = vector.shape_cast %212 : vector<1x4x4xf32> to vector<4x4xf32>
    %c0_260 = arith.constant 0 : index
    %c3_261 = arith.constant 3 : index
    %214 = vector.load %arg11[%c0_260, %c3_261] : memref<4x52xf32, #tpu.memory_space<vmem>>, vector<4x32xf32>
    %cst_262 = arith.constant dense<0.000000e+00> : vector<4x32xf32>
    %215 = tpu.matmul %213, %214, %cst_262 {dimension_numbers = #tpu.dot_dimension_numbers<[1], [0], [0], [1], [0, 0, 1, 1], [], []>} : vector<4x4xf32>, vector<4x32xf32>, vector<4x32xf32> -> vector<4x32xf32>
    %216 = arith.addf %211, %215 : vector<4x32xf32>
    %c0_263 = arith.constant 0 : index
    %c0_264 = arith.constant 0 : index
    %217 = vector.load %arg12[%c0_263, %c0_264] : memref<4x32xf32, #tpu.memory_space<vmem>>, vector<4x32xf32>
    tpu.vector_store %arg12[%c0_263, %c0_264], %216 {strides = array<i32>} : memref<4x32xf32, #tpu.memory_space<vmem>>, vector<4x32xf32>,
    %c0_265 = arith.constant 0 : index
    %c0_266 = arith.constant 0 : index
    %218 = vector.load %arg12[%c0_265, %c0_266] : memref<4x32xf32, #tpu.memory_space<vmem>>, vector<4x32xf32>
    %c4_267 = arith.constant 4 : index
    %c0_268 = arith.constant 0 : index
    %c0_269 = arith.constant 0 : index
    %219 = vector.load %arg7[%c4_267, %c0_268, %c0_269] : memref<21x4x4xf32, #tpu.memory_space<vmem>>, vector<1x4x4xf32>
    %220 = vector.shape_cast %219 : vector<1x4x4xf32> to vector<4x4xf32>
    %c0_270 = arith.constant 0 : index
    %c4_271 = arith.constant 4 : index
    %221 = vector.load %arg11[%c0_270, %c4_271] : memref<4x52xf32, #tpu.memory_space<vmem>>, vector<4x32xf32>
    %cst_272 = arith.constant dense<0.000000e+00> : vector<4x32xf32>
    %222 = tpu.matmul %220, %221, %cst_272 {dimension_numbers = #tpu.dot_dimension_numbers<[1], [0], [0], [1], [0, 0, 1, 1], [], []>} : vector<4x4xf32>, vector<4x32xf32>, vector<4x32xf32> -> vector<4x32xf32>
    %223 = arith.addf %218, %222 : vector<4x32xf32>
    %c0_273 = arith.constant 0 : index
    %c0_274 = arith.constant 0 : index
    %224 = vector.load %arg12[%c0_273, %c0_274] : memref<4x32xf32, #tpu.memory_space<vmem>>, vector<4x32xf32>
    tpu.vector_store %arg12[%c0_273, %c0_274], %223 {strides = array<i32>} : memref<4x32xf32, #tpu.memory_space<vmem>>, vector<4x32xf32>,
    %c0_275 = arith.constant 0 : index
    %c0_276 = arith.constant 0 : index
    %225 = vector.load %arg12[%c0_275, %c0_276] : memref<4x32xf32, #tpu.memory_space<vmem>>, vector<4x32xf32>
    %c5_277 = arith.constant 5 : index
    %c0_278 = arith.constant 0 : index
    %c0_279 = arith.constant 0 : index
    %226 = vector.load %arg7[%c5_277, %c0_278, %c0_279] : memref<21x4x4xf32, #tpu.memory_space<vmem>>, vector<1x4x4xf32>
    %227 = vector.shape_cast %226 : vector<1x4x4xf32> to vector<4x4xf32>
    %c0_280 = arith.constant 0 : index
    %c5_281 = arith.constant 5 : index
    %228 = vector.load %arg11[%c0_280, %c5_281] : memref<4x52xf32, #tpu.memory_space<vmem>>, vector<4x32xf32>
    %cst_282 = arith.constant dense<0.000000e+00> : vector<4x32xf32>
    %229 = tpu.matmul %227, %228, %cst_282 {dimension_numbers = #tpu.dot_dimension_numbers<[1], [0], [0], [1], [0, 0, 1, 1], [], []>} : vector<4x4xf32>, vector<4x32xf32>, vector<4x32xf32> -> vector<4x32xf32>
    %230 = arith.addf %225, %229 : vector<4x32xf32>
    %c0_283 = arith.constant 0 : index
    %c0_284 = arith.constant 0 : index
    %231 = vector.load %arg12[%c0_283, %c0_284] : memref<4x32xf32, #tpu.memory_space<vmem>>, vector<4x32xf32>
    tpu.vector_store %arg12[%c0_283, %c0_284], %230 {strides = array<i32>} : memref<4x32xf32, #tpu.memory_space<vmem>>, vector<4x32xf32>,
    %c0_285 = arith.constant 0 : index
    %c0_286 = arith.constant 0 : index
    %232 = vector.load %arg12[%c0_285, %c0_286] : memref<4x32xf32, #tpu.memory_space<vmem>>, vector<4x32xf32>
    %c6_287 = arith.constant 6 : index
    %c0_288 = arith.constant 0 : index
    %c0_289 = arith.constant 0 : index
    %233 = vector.load %arg7[%c6_287, %c0_288, %c0_289] : memref<21x4x4xf32, #tpu.memory_space<vmem>>, vector<1x4x4xf32>
    %234 = vector.shape_cast %233 : vector<1x4x4xf32> to vector<4x4xf32>
    %c0_290 = arith.constant 0 : index
    %c6_291 = arith.constant 6 : index
    %235 = vector.load %arg11[%c0_290, %c6_291] : memref<4x52xf32, #tpu.memory_space<vmem>>, vector<4x32xf32>
    %cst_292 = arith.constant dense<0.000000e+00> : vector<4x32xf32>
    %236 = tpu.matmul %234, %235, %cst_292 {dimension_numbers = #tpu.dot_dimension_numbers<[1], [0], [0], [1], [0, 0, 1, 1], [], []>} : vector<4x4xf32>, vector<4x32xf32>, vector<4x32xf32> -> vector<4x32xf32>
    %237 = arith.addf %232, %236 : vector<4x32xf32>
    %c0_293 = arith.constant 0 : index
    %c0_294 = arith.constant 0 : index
    %238 = vector.load %arg12[%c0_293, %c0_294] : memref<4x32xf32, #tpu.memory_space<vmem>>, vector<4x32xf32>
    tpu.vector_store %arg12[%c0_293, %c0_294], %237 {strides = array<i32>} : memref<4x32xf32, #tpu.memory_space<vmem>>, vector<4x32xf32>,
    %c0_295 = arith.constant 0 : index
    %c0_296 = arith.constant 0 : index
    %239 = vector.load %arg12[%c0_295, %c0_296] : memref<4x32xf32, #tpu.memory_space<vmem>>, vector<4x32xf32>
    %c7_297 = arith.constant 7 : index
    %c0_298 = arith.constant 0 : index
    %c0_299 = arith.constant 0 : index
    %240 = vector.load %arg7[%c7_297, %c0_298, %c0_299] : memref<21x4x4xf32, #tpu.memory_space<vmem>>, vector<1x4x4xf32>
    %241 = vector.shape_cast %240 : vector<1x4x4xf32> to vector<4x4xf32>
    %c0_300 = arith.constant 0 : index
    %c7_301 = arith.constant 7 : index
    %242 = vector.load %arg11[%c0_300, %c7_301] : memref<4x52xf32, #tpu.memory_space<vmem>>, vector<4x32xf32>
    %cst_302 = arith.constant dense<0.000000e+00> : vector<4x32xf32>
    %243 = tpu.matmul %241, %242, %cst_302 {dimension_numbers = #tpu.dot_dimension_numbers<[1], [0], [0], [1], [0, 0, 1, 1], [], []>} : vector<4x4xf32>, vector<4x32xf32>, vector<4x32xf32> -> vector<4x32xf32>
    %244 = arith.addf %239, %243 : vector<4x32xf32>
    %c0_303 = arith.constant 0 : index
    %c0_304 = arith.constant 0 : index
    %245 = vector.load %arg12[%c0_303, %c0_304] : memref<4x32xf32, #tpu.memory_space<vmem>>, vector<4x32xf32>
    tpu.vector_store %arg12[%c0_303, %c0_304], %244 {strides = array<i32>} : memref<4x32xf32, #tpu.memory_space<vmem>>, vector<4x32xf32>,
    %c0_305 = arith.constant 0 : index
    %c0_306 = arith.constant 0 : index
    %246 = vector.load %arg12[%c0_305, %c0_306] : memref<4x32xf32, #tpu.memory_space<vmem>>, vector<4x32xf32>
    %c8_307 = arith.constant 8 : index
    %c0_308 = arith.constant 0 : index
    %c0_309 = arith.constant 0 : index
    %247 = vector.load %arg7[%c8_307, %c0_308, %c0_309] : memref<21x4x4xf32, #tpu.memory_space<vmem>>, vector<1x4x4xf32>
    %248 = vector.shape_cast %247 : vector<1x4x4xf32> to vector<4x4xf32>
    %c0_310 = arith.constant 0 : index
    %c8_311 = arith.constant 8 : index
    %249 = vector.load %arg11[%c0_310, %c8_311] : memref<4x52xf32, #tpu.memory_space<vmem>>, vector<4x32xf32>
    %cst_312 = arith.constant dense<0.000000e+00> : vector<4x32xf32>
    %250 = tpu.matmul %248, %249, %cst_312 {dimension_numbers = #tpu.dot_dimension_numbers<[1], [0], [0], [1], [0, 0, 1, 1], [], []>} : vector<4x4xf32>, vector<4x32xf32>, vector<4x32xf32> -> vector<4x32xf32>
    %251 = arith.addf %246, %250 : vector<4x32xf32>
    %c0_313 = arith.constant 0 : index
    %c0_314 = arith.constant 0 : index
    %252 = vector.load %arg12[%c0_313, %c0_314] : memref<4x32xf32, #tpu.memory_space<vmem>>, vector<4x32xf32>
    tpu.vector_store %arg12[%c0_313, %c0_314], %251 {strides = array<i32>} : memref<4x32xf32, #tpu.memory_space<vmem>>, vector<4x32xf32>,
    %c0_315 = arith.constant 0 : index
    %c0_316 = arith.constant 0 : index
    %253 = vector.load %arg12[%c0_315, %c0_316] : memref<4x32xf32, #tpu.memory_space<vmem>>, vector<4x32xf32>
    %c9_317 = arith.constant 9 : index
    %c0_318 = arith.constant 0 : index
    %c0_319 = arith.constant 0 : index
    %254 = vector.load %arg7[%c9_317, %c0_318, %c0_319] : memref<21x4x4xf32, #tpu.memory_space<vmem>>, vector<1x4x4xf32>
    %255 = vector.shape_cast %254 : vector<1x4x4xf32> to vector<4x4xf32>
    %c0_320 = arith.constant 0 : index
    %c9_321 = arith.constant 9 : index
    %256 = vector.load %arg11[%c0_320, %c9_321] : memref<4x52xf32, #tpu.memory_space<vmem>>, vector<4x32xf32>
    %cst_322 = arith.constant dense<0.000000e+00> : vector<4x32xf32>
    %257 = tpu.matmul %255, %256, %cst_322 {dimension_numbers = #tpu.dot_dimension_numbers<[1], [0], [0], [1], [0, 0, 1, 1], [], []>} : vector<4x4xf32>, vector<4x32xf32>, vector<4x32xf32> -> vector<4x32xf32>
    %258 = arith.addf %253, %257 : vector<4x32xf32>
    %c0_323 = arith.constant 0 : index
    %c0_324 = arith.constant 0 : index
    %259 = vector.load %arg12[%c0_323, %c0_324] : memref<4x32xf32, #tpu.memory_space<vmem>>, vector<4x32xf32>
    tpu.vector_store %arg12[%c0_323, %c0_324], %258 {strides = array<i32>} : memref<4x32xf32, #tpu.memory_space<vmem>>, vector<4x32xf32>,
    %c0_325 = arith.constant 0 : index
    %c0_326 = arith.constant 0 : index
    %260 = vector.load %arg12[%c0_325, %c0_326] : memref<4x32xf32, #tpu.memory_space<vmem>>, vector<4x32xf32>
    %c10_327 = arith.constant 10 : index
    %c0_328 = arith.constant 0 : index
    %c0_329 = arith.constant 0 : index
    %261 = vector.load %arg7[%c10_327, %c0_328, %c0_329] : memref<21x4x4xf32, #tpu.memory_space<vmem>>, vector<1x4x4xf32>
    %262 = vector.shape_cast %261 : vector<1x4x4xf32> to vector<4x4xf32>
    %c0_330 = arith.constant 0 : index
    %c10_331 = arith.constant 10 : index
    %263 = vector.load %arg11[%c0_330, %c10_331] : memref<4x52xf32, #tpu.memory_space<vmem>>, vector<4x32xf32>
    %cst_332 = arith.constant dense<0.000000e+00> : vector<4x32xf32>
    %264 = tpu.matmul %262, %263, %cst_332 {dimension_numbers = #tpu.dot_dimension_numbers<[1], [0], [0], [1], [0, 0, 1, 1], [], []>} : vector<4x4xf32>, vector<4x32xf32>, vector<4x32xf32> -> vector<4x32xf32>
    %265 = arith.addf %260, %264 : vector<4x32xf32>
    %c0_333 = arith.constant 0 : index
    %c0_334 = arith.constant 0 : index
    %266 = vector.load %arg12[%c0_333, %c0_334] : memref<4x32xf32, #tpu.memory_space<vmem>>, vector<4x32xf32>
    tpu.vector_store %arg12[%c0_333, %c0_334], %265 {strides = array<i32>} : memref<4x32xf32, #tpu.memory_space<vmem>>, vector<4x32xf32>,
    %c0_335 = arith.constant 0 : index
    %c0_336 = arith.constant 0 : index
    %267 = vector.load %arg12[%c0_335, %c0_336] : memref<4x32xf32, #tpu.memory_space<vmem>>, vector<4x32xf32>
    %c11_337 = arith.constant 11 : index
    %c0_338 = arith.constant 0 : index
    %c0_339 = arith.constant 0 : index
    %268 = vector.load %arg7[%c11_337, %c0_338, %c0_339] : memref<21x4x4xf32, #tpu.memory_space<vmem>>, vector<1x4x4xf32>
    %269 = vector.shape_cast %268 : vector<1x4x4xf32> to vector<4x4xf32>
    %c0_340 = arith.constant 0 : index
    %c11_341 = arith.constant 11 : index
    %270 = vector.load %arg11[%c0_340, %c11_341] : memref<4x52xf32, #tpu.memory_space<vmem>>, vector<4x32xf32>
    %cst_342 = arith.constant dense<0.000000e+00> : vector<4x32xf32>
    %271 = tpu.matmul %269, %270, %cst_342 {dimension_numbers = #tpu.dot_dimension_numbers<[1], [0], [0], [1], [0, 0, 1, 1], [], []>} : vector<4x4xf32>, vector<4x32xf32>, vector<4x32xf32> -> vector<4x32xf32>
    %272 = arith.addf %267, %271 : vector<4x32xf32>
    %c0_343 = arith.constant 0 : index
    %c0_344 = arith.constant 0 : index
    %273 = vector.load %arg12[%c0_343, %c0_344] : memref<4x32xf32, #tpu.memory_space<vmem>>, vector<4x32xf32>
    tpu.vector_store %arg12[%c0_343, %c0_344], %272 {strides = array<i32>} : memref<4x32xf32, #tpu.memory_space<vmem>>, vector<4x32xf32>,
    %c0_345 = arith.constant 0 : index
    %c0_346 = arith.constant 0 : index
    %274 = vector.load %arg12[%c0_345, %c0_346] : memref<4x32xf32, #tpu.memory_space<vmem>>, vector<4x32xf32>
    %c12_347 = arith.constant 12 : index
    %c0_348 = arith.constant 0 : index
    %c0_349 = arith.constant 0 : index
    %275 = vector.load %arg7[%c12_347, %c0_348, %c0_349] : memref<21x4x4xf32, #tpu.memory_space<vmem>>, vector<1x4x4xf32>
    %276 = vector.shape_cast %275 : vector<1x4x4xf32> to vector<4x4xf32>
    %c0_350 = arith.constant 0 : index
    %c12_351 = arith.constant 12 : index
    %277 = vector.load %arg11[%c0_350, %c12_351] : memref<4x52xf32, #tpu.memory_space<vmem>>, vector<4x32xf32>
    %cst_352 = arith.constant dense<0.000000e+00> : vector<4x32xf32>
    %278 = tpu.matmul %276, %277, %cst_352 {dimension_numbers = #tpu.dot_dimension_numbers<[1], [0], [0], [1], [0, 0, 1, 1], [], []>} : vector<4x4xf32>, vector<4x32xf32>, vector<4x32xf32> -> vector<4x32xf32>
    %279 = arith.addf %274, %278 : vector<4x32xf32>
    %c0_353 = arith.constant 0 : index
    %c0_354 = arith.constant 0 : index
    %280 = vector.load %arg12[%c0_353, %c0_354] : memref<4x32xf32, #tpu.memory_space<vmem>>, vector<4x32xf32>
    tpu.vector_store %arg12[%c0_353, %c0_354], %279 {strides = array<i32>} : memref<4x32xf32, #tpu.memory_space<vmem>>, vector<4x32xf32>,
    %c0_355 = arith.constant 0 : index
    %c0_356 = arith.constant 0 : index
    %281 = vector.load %arg12[%c0_355, %c0_356] : memref<4x32xf32, #tpu.memory_space<vmem>>, vector<4x32xf32>
    %c13_357 = arith.constant 13 : index
    %c0_358 = arith.constant 0 : index
    %c0_359 = arith.constant 0 : index
    %282 = vector.load %arg7[%c13_357, %c0_358, %c0_359] : memref<21x4x4xf32, #tpu.memory_space<vmem>>, vector<1x4x4xf32>
    %283 = vector.shape_cast %282 : vector<1x4x4xf32> to vector<4x4xf32>
    %c0_360 = arith.constant 0 : index
    %c13_361 = arith.constant 13 : index
    %284 = vector.load %arg11[%c0_360, %c13_361] : memref<4x52xf32, #tpu.memory_space<vmem>>, vector<4x32xf32>
    %cst_362 = arith.constant dense<0.000000e+00> : vector<4x32xf32>
    %285 = tpu.matmul %283, %284, %cst_362 {dimension_numbers = #tpu.dot_dimension_numbers<[1], [0], [0], [1], [0, 0, 1, 1], [], []>} : vector<4x4xf32>, vector<4x32xf32>, vector<4x32xf32> -> vector<4x32xf32>
    %286 = arith.addf %281, %285 : vector<4x32xf32>
    %c0_363 = arith.constant 0 : index
    %c0_364 = arith.constant 0 : index
    %287 = vector.load %arg12[%c0_363, %c0_364] : memref<4x32xf32, #tpu.memory_space<vmem>>, vector<4x32xf32>
    tpu.vector_store %arg12[%c0_363, %c0_364], %286 {strides = array<i32>} : memref<4x32xf32, #tpu.memory_space<vmem>>, vector<4x32xf32>,
    %c0_365 = arith.constant 0 : index
    %c0_366 = arith.constant 0 : index
    %288 = vector.load %arg12[%c0_365, %c0_366] : memref<4x32xf32, #tpu.memory_space<vmem>>, vector<4x32xf32>
    %c14_367 = arith.constant 14 : index
    %c0_368 = arith.constant 0 : index
    %c0_369 = arith.constant 0 : index
    %289 = vector.load %arg7[%c14_367, %c0_368, %c0_369] : memref<21x4x4xf32, #tpu.memory_space<vmem>>, vector<1x4x4xf32>
    %290 = vector.shape_cast %289 : vector<1x4x4xf32> to vector<4x4xf32>
    %c0_370 = arith.constant 0 : index
    %c14_371 = arith.constant 14 : index
    %291 = vector.load %arg11[%c0_370, %c14_371] : memref<4x52xf32, #tpu.memory_space<vmem>>, vector<4x32xf32>
    %cst_372 = arith.constant dense<0.000000e+00> : vector<4x32xf32>
    %292 = tpu.matmul %290, %291, %cst_372 {dimension_numbers = #tpu.dot_dimension_numbers<[1], [0], [0], [1], [0, 0, 1, 1], [], []>} : vector<4x4xf32>, vector<4x32xf32>, vector<4x32xf32> -> vector<4x32xf32>
    %293 = arith.addf %288, %292 : vector<4x32xf32>
    %c0_373 = arith.constant 0 : index
    %c0_374 = arith.constant 0 : index
    %294 = vector.load %arg12[%c0_373, %c0_374] : memref<4x32xf32, #tpu.memory_space<vmem>>, vector<4x32xf32>
    tpu.vector_store %arg12[%c0_373, %c0_374], %293 {strides = array<i32>} : memref<4x32xf32, #tpu.memory_space<vmem>>, vector<4x32xf32>,
    %c0_375 = arith.constant 0 : index
    %c0_376 = arith.constant 0 : index
    %295 = vector.load %arg12[%c0_375, %c0_376] : memref<4x32xf32, #tpu.memory_space<vmem>>, vector<4x32xf32>
    %c15_377 = arith.constant 15 : index
    %c0_378 = arith.constant 0 : index
    %c0_379 = arith.constant 0 : index
    %296 = vector.load %arg7[%c15_377, %c0_378, %c0_379] : memref<21x4x4xf32, #tpu.memory_space<vmem>>, vector<1x4x4xf32>
    %297 = vector.shape_cast %296 : vector<1x4x4xf32> to vector<4x4xf32>
    %c0_380 = arith.constant 0 : index
    %c15_381 = arith.constant 15 : index
    %298 = vector.load %arg11[%c0_380, %c15_381] : memref<4x52xf32, #tpu.memory_space<vmem>>, vector<4x32xf32>
    %cst_382 = arith.constant dense<0.000000e+00> : vector<4x32xf32>
    %299 = tpu.matmul %297, %298, %cst_382 {dimension_numbers = #tpu.dot_dimension_numbers<[1], [0], [0], [1], [0, 0, 1, 1], [], []>} : vector<4x4xf32>, vector<4x32xf32>, vector<4x32xf32> -> vector<4x32xf32>
    %300 = arith.addf %295, %299 : vector<4x32xf32>
    %c0_383 = arith.constant 0 : index
    %c0_384 = arith.constant 0 : index
    %301 = vector.load %arg12[%c0_383, %c0_384] : memref<4x32xf32, #tpu.memory_space<vmem>>, vector<4x32xf32>
    tpu.vector_store %arg12[%c0_383, %c0_384], %300 {strides = array<i32>} : memref<4x32xf32, #tpu.memory_space<vmem>>, vector<4x32xf32>,
    %c0_385 = arith.constant 0 : index
    %c0_386 = arith.constant 0 : index
    %302 = vector.load %arg12[%c0_385, %c0_386] : memref<4x32xf32, #tpu.memory_space<vmem>>, vector<4x32xf32>
    %c16_387 = arith.constant 16 : index
    %c0_388 = arith.constant 0 : index
    %c0_389 = arith.constant 0 : index
    %303 = vector.load %arg7[%c16_387, %c0_388, %c0_389] : memref<21x4x4xf32, #tpu.memory_space<vmem>>, vector<1x4x4xf32>
    %304 = vector.shape_cast %303 : vector<1x4x4xf32> to vector<4x4xf32>
    %c0_390 = arith.constant 0 : index
    %c16_391 = arith.constant 16 : index
    %305 = vector.load %arg11[%c0_390, %c16_391] : memref<4x52xf32, #tpu.memory_space<vmem>>, vector<4x32xf32>
    %cst_392 = arith.constant dense<0.000000e+00> : vector<4x32xf32>
    %306 = tpu.matmul %304, %305, %cst_392 {dimension_numbers = #tpu.dot_dimension_numbers<[1], [0], [0], [1], [0, 0, 1, 1], [], []>} : vector<4x4xf32>, vector<4x32xf32>, vector<4x32xf32> -> vector<4x32xf32>
    %307 = arith.addf %302, %306 : vector<4x32xf32>
    %c0_393 = arith.constant 0 : index
    %c0_394 = arith.constant 0 : index
    %308 = vector.load %arg12[%c0_393, %c0_394] : memref<4x32xf32, #tpu.memory_space<vmem>>, vector<4x32xf32>
    tpu.vector_store %arg12[%c0_393, %c0_394], %307 {strides = array<i32>} : memref<4x32xf32, #tpu.memory_space<vmem>>, vector<4x32xf32>,
    %c0_395 = arith.constant 0 : index
    %c0_396 = arith.constant 0 : index
    %309 = vector.load %arg12[%c0_395, %c0_396] : memref<4x32xf32, #tpu.memory_space<vmem>>, vector<4x32xf32>
    %c17_397 = arith.constant 17 : index
    %c0_398 = arith.constant 0 : index
    %c0_399 = arith.constant 0 : index
    %310 = vector.load %arg7[%c17_397, %c0_398, %c0_399] : memref<21x4x4xf32, #tpu.memory_space<vmem>>, vector<1x4x4xf32>
    %311 = vector.shape_cast %310 : vector<1x4x4xf32> to vector<4x4xf32>
    %c0_400 = arith.constant 0 : index
    %c17_401 = arith.constant 17 : index
    %312 = vector.load %arg11[%c0_400, %c17_401] : memref<4x52xf32, #tpu.memory_space<vmem>>, vector<4x32xf32>
    %cst_402 = arith.constant dense<0.000000e+00> : vector<4x32xf32>
    %313 = tpu.matmul %311, %312, %cst_402 {dimension_numbers = #tpu.dot_dimension_numbers<[1], [0], [0], [1], [0, 0, 1, 1], [], []>} : vector<4x4xf32>, vector<4x32xf32>, vector<4x32xf32> -> vector<4x32xf32>
    %314 = arith.addf %309, %313 : vector<4x32xf32>
    %c0_403 = arith.constant 0 : index
    %c0_404 = arith.constant 0 : index
    %315 = vector.load %arg12[%c0_403, %c0_404] : memref<4x32xf32, #tpu.memory_space<vmem>>, vector<4x32xf32>
    tpu.vector_store %arg12[%c0_403, %c0_404], %314 {strides = array<i32>} : memref<4x32xf32, #tpu.memory_space<vmem>>, vector<4x32xf32>,
    %c0_405 = arith.constant 0 : index
    %c0_406 = arith.constant 0 : index
    %316 = vector.load %arg12[%c0_405, %c0_406] : memref<4x32xf32, #tpu.memory_space<vmem>>, vector<4x32xf32>
    %c18_407 = arith.constant 18 : index
    %c0_408 = arith.constant 0 : index
    %c0_409 = arith.constant 0 : index
    %317 = vector.load %arg7[%c18_407, %c0_408, %c0_409] : memref<21x4x4xf32, #tpu.memory_space<vmem>>, vector<1x4x4xf32>
    %318 = vector.shape_cast %317 : vector<1x4x4xf32> to vector<4x4xf32>
    %c0_410 = arith.constant 0 : index
    %c18_411 = arith.constant 18 : index
    %319 = vector.load %arg11[%c0_410, %c18_411] : memref<4x52xf32, #tpu.memory_space<vmem>>, vector<4x32xf32>
    %cst_412 = arith.constant dense<0.000000e+00> : vector<4x32xf32>
    %320 = tpu.matmul %318, %319, %cst_412 {dimension_numbers = #tpu.dot_dimension_numbers<[1], [0], [0], [1], [0, 0, 1, 1], [], []>} : vector<4x4xf32>, vector<4x32xf32>, vector<4x32xf32> -> vector<4x32xf32>
    %321 = arith.addf %316, %320 : vector<4x32xf32>
    %c0_413 = arith.constant 0 : index
    %c0_414 = arith.constant 0 : index
    %322 = vector.load %arg12[%c0_413, %c0_414] : memref<4x32xf32, #tpu.memory_space<vmem>>, vector<4x32xf32>
    tpu.vector_store %arg12[%c0_413, %c0_414], %321 {strides = array<i32>} : memref<4x32xf32, #tpu.memory_space<vmem>>, vector<4x32xf32>,
    %c0_415 = arith.constant 0 : index
    %c0_416 = arith.constant 0 : index
    %323 = vector.load %arg12[%c0_415, %c0_416] : memref<4x32xf32, #tpu.memory_space<vmem>>, vector<4x32xf32>
    %c19_417 = arith.constant 19 : index
    %c0_418 = arith.constant 0 : index
    %c0_419 = arith.constant 0 : index
    %324 = vector.load %arg7[%c19_417, %c0_418, %c0_419] : memref<21x4x4xf32, #tpu.memory_space<vmem>>, vector<1x4x4xf32>
    %325 = vector.shape_cast %324 : vector<1x4x4xf32> to vector<4x4xf32>
    %c0_420 = arith.constant 0 : index
    %c19_421 = arith.constant 19 : index
    %326 = vector.load %arg11[%c0_420, %c19_421] : memref<4x52xf32, #tpu.memory_space<vmem>>, vector<4x32xf32>
    %cst_422 = arith.constant dense<0.000000e+00> : vector<4x32xf32>
    %327 = tpu.matmul %325, %326, %cst_422 {dimension_numbers = #tpu.dot_dimension_numbers<[1], [0], [0], [1], [0, 0, 1, 1], [], []>} : vector<4x4xf32>, vector<4x32xf32>, vector<4x32xf32> -> vector<4x32xf32>
    %328 = arith.addf %323, %327 : vector<4x32xf32>
    %c0_423 = arith.constant 0 : index
    %c0_424 = arith.constant 0 : index
    %329 = vector.load %arg12[%c0_423, %c0_424] : memref<4x32xf32, #tpu.memory_space<vmem>>, vector<4x32xf32>
    tpu.vector_store %arg12[%c0_423, %c0_424], %328 {strides = array<i32>} : memref<4x32xf32, #tpu.memory_space<vmem>>, vector<4x32xf32>,
    %c0_425 = arith.constant 0 : index
    %c0_426 = arith.constant 0 : index
    %330 = vector.load %arg12[%c0_425, %c0_426] : memref<4x32xf32, #tpu.memory_space<vmem>>, vector<4x32xf32>
    %c20_427 = arith.constant 20 : index
    %c0_428 = arith.constant 0 : index
    %c0_429 = arith.constant 0 : index
    %331 = vector.load %arg7[%c20_427, %c0_428, %c0_429] : memref<21x4x4xf32, #tpu.memory_space<vmem>>, vector<1x4x4xf32>
    %332 = vector.shape_cast %331 : vector<1x4x4xf32> to vector<4x4xf32>
    %c0_430 = arith.constant 0 : index
    %c20_431 = arith.constant 20 : index
    %333 = vector.load %arg11[%c0_430, %c20_431] : memref<4x52xf32, #tpu.memory_space<vmem>>, vector<4x32xf32>
    %cst_432 = arith.constant dense<0.000000e+00> : vector<4x32xf32>
    %334 = tpu.matmul %332, %333, %cst_432 {dimension_numbers = #tpu.dot_dimension_numbers<[1], [0], [0], [1], [0, 0, 1, 1], [], []>} : vector<4x4xf32>, vector<4x32xf32>, vector<4x32xf32> -> vector<4x32xf32>
    %335 = arith.addf %330, %334 : vector<4x32xf32>
    %c0_433 = arith.constant 0 : index
    %c0_434 = arith.constant 0 : index
    %336 = vector.load %arg12[%c0_433, %c0_434] : memref<4x32xf32, #tpu.memory_space<vmem>>, vector<4x32xf32>
    tpu.vector_store %arg12[%c0_433, %c0_434], %335 {strides = array<i32>} : memref<4x32xf32, #tpu.memory_space<vmem>>, vector<4x32xf32>,
    %c0_435 = arith.constant 0 : index
    %c0_436 = arith.constant 0 : index
    %337 = vector.load %arg12[%c0_435, %c0_436] : memref<4x32xf32, #tpu.memory_space<vmem>>, vector<4x32xf32>
    %c0_437 = arith.constant 0 : index
    %c0_438 = arith.constant 0 : index
    %338 = vector.load %arg8[%c0_437, %c0_438] : memref<4x1xf32, #tpu.memory_space<vmem>>, vector<4x1xf32>
    %339 = vector.broadcast %338 : vector<4x1xf32> to vector<4x32xf32>
    %340 = arith.addf %337, %339 : vector<4x32xf32>
    %cst_439 = arith.constant 0.000000e+00 : f32
    %341 = vector.broadcast %cst_439 : f32 to vector<4x32xf32>
    %342 = arith.maximumf %340, %341 : vector<4x32xf32>
    %c0_440 = arith.constant 0 : index
    %c0_441 = arith.constant 0 : index
    %c0_442 = arith.constant 0 : index
    %343 = vector.load %arg9[%c0_440, %c0_441, %c0_442] : memref<1x4x32xf32, #tpu.memory_space<vmem>>, vector<1x4x32xf32>
    %344 = vector.shape_cast %343 : vector<1x4x32xf32> to vector<4x32xf32>
    %345 = vector.shape_cast %342 : vector<4x32xf32> to vector<1x4x32xf32>
    tpu.vector_store %arg9[%c0_440, %c0_441, %c0_442], %345 {strides = array<i32>} : memref<1x4x32xf32, #tpu.memory_space<vmem>>, vector<1x4x32xf32>,
    return
  }
  func.func @transform_0(%arg0: i32) -> (i32, i32, i32) {
    %c0_i32 = arith.constant 0 : i32
    %c0_i32_0 = arith.constant 0 : i32
    %c0_i32_1 = arith.constant 0 : i32
    return %arg0, %c0_i32, %c0_i32_0 : i32, i32, i32
  }
  func.func @transform_1(%arg0: i32) -> (i32, i32, i32) {
    %c0_i32 = arith.constant 0 : i32
    %c0_i32_0 = arith.constant 0 : i32
    %c0_i32_1 = arith.constant 0 : i32
    return %arg0, %c0_i32, %c0_i32_0 : i32, i32, i32
  }
  func.func @transform_2(%arg0: i32) -> (i32, i32, i32) {
    %c0_i32 = arith.constant 0 : i32
    %c0_i32_0 = arith.constant 0 : i32
    %c0_i32_1 = arith.constant 0 : i32
    %c0_i32_2 = arith.constant 0 : i32
    return %c0_i32, %c0_i32_0, %c0_i32_1 : i32, i32, i32
  }
  func.func @transform_3(%arg0: i32) -> (i32, i32) {
    %c0_i32 = arith.constant 0 : i32
    %c0_i32_0 = arith.constant 0 : i32
    %c0_i32_1 = arith.constant 0 : i32
    return %c0_i32, %c0_i32_0 : i32, i32
  }
  func.func @transform_4(%arg0: i32) -> (i32, i32, i32) {
    %c0_i32 = arith.constant 0 : i32
    %c0_i32_0 = arith.constant 0 : i32
    %c0_i32_1 = arith.constant 0 : i32
    %c0_i32_2 = arith.constant 0 : i32
    return %c0_i32, %c0_i32_0, %c0_i32_1 : i32, i32, i32
  }
  func.func @transform_5(%arg0: i32) -> (i32, i32) {
    %c0_i32 = arith.constant 0 : i32
    %c0_i32_0 = arith.constant 0 : i32
    %c0_i32_1 = arith.constant 0 : i32
    return %c0_i32, %c0_i32_0 : i32, i32
  }
  func.func @transform_6(%arg0: i32) -> (i32, i32, i32) {
    %c0_i32 = arith.constant 0 : i32
    %c0_i32_0 = arith.constant 0 : i32
    %c0_i32_1 = arith.constant 0 : i32
    %c0_i32_2 = arith.constant 0 : i32
    return %c0_i32, %c0_i32_0, %c0_i32_1 : i32, i32, i32
  }
  func.func @transform_7(%arg0: i32) -> (i32, i32) {
    %c0_i32 = arith.constant 0 : i32
    %c0_i32_0 = arith.constant 0 : i32
    %c0_i32_1 = arith.constant 0 : i32
    return %c0_i32, %c0_i32_0 : i32, i32
  }
  func.func @transform_8(%arg0: i32) -> (i32, i32, i32) {
    %c0_i32 = arith.constant 0 : i32
    %c0_i32_0 = arith.constant 0 : i32
    %c0_i32_1 = arith.constant 0 : i32
    return %arg0, %c0_i32, %c0_i32_0 : i32, i32, i32
  }
}

</mosaic_0001>

<llo_original>
// kernel: tpu_custom_call.1
$region0: #{tpu_custom_call.1}
  #allocation0 [shape = 'u32[]', space=smem, size = 0x4, offset = 0x4, fixed_abs, tag = 'smem constant byte address 0x4 - core index']
  #allocation1 [shape = 'u32[72,128]{1,0:T(1,128)}', space=vmem, size = 0x9000, scoped, tag = 'internal scratch']
  #allocation2 [shape = 'f32[8,52]{1,0:T(8,128)}', space=vmem, size = 0x1000, scoped, tag = 'scratch operand']
  #allocation3 [shape = 'f32[4,52]{1,0:T(4,128)}', space=vmem, size = 0x800, scoped, tag = 'scratch operand']
  #allocation4 [shape = 'f32[4,32]{1,0:T(4,128)}', space=vmem, size = 0x800, scoped, tag = 'scratch operand']
  %s0 = inlined_call_operand.vmem [shape: f32[2,8,16], index: 0, kind: input, shape index: {}]
  %s1 = inlined_call_operand.vmem [shape: f32[2,4,32], index: 1, kind: input, shape index: {}]
  %s2 = inlined_call_operand.vmem [shape: f32[2,4,8], index: 2, kind: input, shape index: {}]
  %s3 = inlined_call_operand.vmem [shape: f32[4,1], index: 3, kind: input, shape index: {}]
  %s4 = inlined_call_operand.vmem [shape: f32[21,4,8], index: 4, kind: input, shape index: {}]
  %s5 = inlined_call_operand.vmem [shape: f32[4,1], index: 5, kind: input, shape index: {}]
  %s6 = inlined_call_operand.vmem [shape: f32[21,4,4], index: 6, kind: input, shape index: {}]
  %s7 = inlined_call_operand.vmem [shape: f32[4,1], index: 7, kind: input, shape index: {}]
  %s8 = inlined_call_operand.hbm [shape: f32[2,4,32], index: 8, kind: output, shape index: {}]
  %s9 = sld [smem:[#allocation0]]
  $region65: #{tpu_custom_call.1} parent=0
    _
  %s11 = ssub.s32 1, %s9
  %s12 = scalar_select 0, %s11, %s9
  $region1: #{tpu_custom_call.1} parent=0
    #allocation5 [shape = 'u8[4096]{0}', space=vmem, size = 0x1000, scoped, tag = 'output window, operand 0']
    #allocation6 [shape = 's32[2]{0}', space=sflag, size = 0x8, scoped, tag = 'scoped memory for tpu_custom_call.1']
    %13 = vsyncpa [#allocation6], 0
    %s14 = scalar_lea.sflag [#allocation6], 1
    %15 = vsyncpa %s14, 0
    loop: start=0, step=1, limit=4
    $region2: #{tpu_custom_call.1} parent=1 // loop_pre_header
      _
    $region3: #{tpu_custom_call.1} parent=1 // loop_header
      %s17 = sphi 0, %s21
      %p18 = scmp.ge.s32.totalorder %s17, 4
      %s27 = sphi 0, %s29
      %s30 = sphi 0, %s27
      %s31 = sphi 0, %s30
      %s47 = sphi 0, %s31
      %s53 = sphi 0, %s55
      %s56 = sphi 0, %s53
      %s57 = sphi 0, %s56
      %s73 = sphi 0, %s57
      %s77 = sphi 0, %s77
      %s79 = sphi 0, %s77
      %s80 = sphi 0, %s79
      %s94 = sphi 0, %s80
      %s98 = sphi 0, %s98
      %s100 = sphi 0, %s98
      %s101 = sphi 0, %s100
      %s115 = sphi 0, %s101
      %s119 = sphi 0, %s119
      %s121 = sphi 0, %s119
      %s122 = sphi 0, %s121
      %s136 = sphi 0, %s122
      %s140 = sphi 0, %s140
      %s142 = sphi 0, %s140
      %s143 = sphi 0, %s142
      %s157 = sphi 0, %s143
      %s161 = sphi 0, %s161
      %s163 = sphi 0, %s161
      %s164 = sphi 0, %s163
      %s178 = sphi 0, %s164
      %s182 = sphi 0, %s182
      %s184 = sphi 0, %s182
      %s185 = sphi 0, %s184
      %s199 = sphi 0, %s185
      %s205 = sphi 0, %s207
      %s208 = sphi 0, %s205
      %s209 = sphi 0, %s208
      %s225 = sphi 0, %s209
    $region4: #{tpu_custom_call.1} parent=1 // loop_header_branch
      %20 = sbr.rel (%p18) target = $region8
    $region5: #{tpu_custom_call.1} parent=1 // loop_body
      %s22 = ssub.s32 %s17, 1
      %s23 = ssub.s32 %s17, 2
      %s24 = sadd.s32 %s17, 1
      %s25 = ssub.s32 %s17, %s24
      %p26 = scmp.eq.s32.totalorder %s25, 0
      %s28 = sadd.s32 %s27, 1
      %s29 = scalar_select %p26, %s27, %s28
      %p32 = pneg %p26
      %p33 = scmp.eq.s32.totalorder %s17, 1
      %p34 = por %p32, %p33
      %p35 = scmp.ne.s32.totalorder %s27, %s30
      %p36 = scmp.eq.s32.totalorder %s17, 0
      %p37 = por %p35, %p36
      %p38 = scmp.ne.s32.totalorder %s27, %s30
      %p39 = scmp.eq.s32.totalorder %s22, 1
      %p40 = por %p38, %p39
      %p41 = scmp.ne.s32.totalorder %s30, %s31
      %p42 = scmp.eq.s32.totalorder %s22, 0
      %p43 = por %p41, %p42
      %p44 = scmp.ne.s32.totalorder %s30, %s31
      %p45 = scmp.eq.s32.totalorder %s23, 1
      %p46 = por %p44, %p45
      %p48 = scmp.ne.s32.totalorder %s31, %s47
      %p49 = scmp.eq.s32.totalorder %s23, 0
      %p50 = por %p48, %p49
      %s51 = ssub.s32 %s17, %s24
      %p52 = scmp.eq.s32.totalorder %s51, 0
      %s54 = sadd.s32 %s53, 1
      %s55 = scalar_select %p52, %s53, %s54
      %p58 = pneg %p52
      %p59 = scmp.eq.s32.totalorder %s17, 1
      %p60 = por %p58, %p59
      %p61 = scmp.ne.s32.totalorder %s53, %s56
      %p62 = scmp.eq.s32.totalorder %s17, 0
      %p63 = por %p61, %p62
      %p64 = scmp.ne.s32.totalorder %s53, %s56
      %p65 = scmp.eq.s32.totalorder %s22, 1
      %p66 = por %p64, %p65
      %p67 = scmp.ne.s32.totalorder %s56, %s57
      %p68 = scmp.eq.s32.totalorder %s22, 0
      %p69 = por %p67, %p68
      %p70 = scmp.ne.s32.totalorder %s56, %s57
      %p71 = scmp.eq.s32.totalorder %s23, 1
      %p72 = por %p70, %p71
      %p74 = scmp.ne.s32.totalorder %s57, %s73
      %p75 = scmp.eq.s32.totalorder %s23, 0
      %p76 = por %p74, %p75
      %s78 = sadd.s32 %s77, 1
      %p81 = scmp.eq.s32.totalorder %s17, 1
      %p82 = scmp.ne.s32.totalorder %s77, %s79
      %p83 = scmp.eq.s32.totalorder %s17, 0
      %p84 = por %p82, %p83
      %p85 = scmp.ne.s32.totalorder %s77, %s79
      %p86 = scmp.eq.s32.totalorder %s22, 1
      %p87 = por %p85, %p86
      %p88 = scmp.ne.s32.totalorder %s79, %s80
      %p89 = scmp.eq.s32.totalorder %s22, 0
      %p90 = por %p88, %p89
      %p91 = scmp.ne.s32.totalorder %s79, %s80
      %p92 = scmp.eq.s32.totalorder %s23, 1
      %p93 = por %p91, %p92
      %p95 = scmp.ne.s32.totalorder %s80, %s94
      %p96 = scmp.eq.s32.totalorder %s23, 0
      %p97 = por %p95, %p96
      %s99 = sadd.s32 %s98, 1
      %p102 = scmp.eq.s32.totalorder %s17, 1
      %p103 = scmp.ne.s32.totalorder %s98, %s100
      %p104 = scmp.eq.s32.totalorder %s17, 0
      %p105 = por %p103, %p104
      %p106 = scmp.ne.s32.totalorder %s98, %s100
      %p107 = scmp.eq.s32.totalorder %s22, 1
      %p108 = por %p106, %p107
      %p109 = scmp.ne.s32.totalorder %s100, %s101
      %p110 = scmp.eq.s32.totalorder %s22, 0
      %p111 = por %p109, %p110
      %p112 = scmp.ne.s32.totalorder %s100, %s101
      %p113 = scmp.eq.s32.totalorder %s23, 1
      %p114 = por %p112, %p113
      %p116 = scmp.ne.s32.totalorder %s101, %s115
      %p117 = scmp.eq.s32.totalorder %s23, 0
      %p118 = por %p116, %p117
      %s120 = sadd.s32 %s119, 1
      %p123 = scmp.eq.s32.totalorder %s17, 1
      %p124 = scmp.ne.s32.totalorder %s119, %s121
      %p125 = scmp.eq.s32.totalorder %s17, 0
      %p126 = por %p124, %p125
      %p127 = scmp.ne.s32.totalorder %s119, %s121
      %p128 = scmp.eq.s32.totalorder %s22, 1
      %p129 = por %p127, %p128
      %p130 = scmp.ne.s32.totalorder %s121, %s122
      %p131 = scmp.eq.s32.totalorder %s22, 0
      %p132 = por %p130, %p131
      %p133 = scmp.ne.s32.totalorder %s121, %s122
      %p134 = scmp.eq.s32.totalorder %s23, 1
      %p135 = por %p133, %p134
      %p137 = scmp.ne.s32.totalorder %s122, %s136
      %p138 = scmp.eq.s32.totalorder %s23, 0
      %p139 = por %p137, %p138
      %s141 = sadd.s32 %s140, 1
      %p144 = scmp.eq.s32.totalorder %s17, 1
      %p145 = scmp.ne.s32.totalorder %s140, %s142
      %p146 = scmp.eq.s32.totalorder %s17, 0
      %p147 = por %p145, %p146
      %p148 = scmp.ne.s32.totalorder %s140, %s142
      %p149 = scmp.eq.s32.totalorder %s22, 1
      %p150 = por %p148, %p149
      %p151 = scmp.ne.s32.totalorder %s142, %s143
      %p152 = scmp.eq.s32.totalorder %s22, 0
      %p153 = por %p151, %p152
      %p154 = scmp.ne.s32.totalorder %s142, %s143
      %p155 = scmp.eq.s32.totalorder %s23, 1
      %p156 = por %p154, %p155
      %p158 = scmp.ne.s32.totalorder %s143, %s157
      %p159 = scmp.eq.s32.totalorder %s23, 0
      %p160 = por %p158, %p159
      %s162 = sadd.s32 %s161, 1
      %p165 = scmp.eq.s32.totalorder %s17, 1
      %p166 = scmp.ne.s32.totalorder %s161, %s163
      %p167 = scmp.eq.s32.totalorder %s17, 0
      %p168 = por %p166, %p167
      %p169 = scmp.ne.s32.totalorder %s161, %s163
      %p170 = scmp.eq.s32.totalorder %s22, 1
      %p171 = por %p169, %p170
      %p172 = scmp.ne.s32.totalorder %s163, %s164
      %p173 = scmp.eq.s32.totalorder %s22, 0
      %p174 = por %p172, %p173
      %p175 = scmp.ne.s32.totalorder %s163, %s164
      %p176 = scmp.eq.s32.totalorder %s23, 1
      %p177 = por %p175, %p176
      %p179 = scmp.ne.s32.totalorder %s164, %s178
      %p180 = scmp.eq.s32.totalorder %s23, 0
      %p181 = por %p179, %p180
      %s183 = sadd.s32 %s182, 1
      %p186 = scmp.eq.s32.totalorder %s17, 1
      %p187 = scmp.ne.s32.totalorder %s182, %s184
      %p188 = scmp.eq.s32.totalorder %s17, 0
      %p189 = por %p187, %p188
      %p190 = scmp.ne.s32.totalorder %s182, %s184
      %p191 = scmp.eq.s32.totalorder %s22, 1
      %p192 = por %p190, %p191
      %p193 = scmp.ne.s32.totalorder %s184, %s185
      %p194 = scmp.eq.s32.totalorder %s22, 0
      %p195 = por %p193, %p194
      %p196 = scmp.ne.s32.totalorder %s184, %s185
      %p197 = scmp.eq.s32.totalorder %s23, 1
      %p198 = por %p196, %p197
      %p200 = scmp.ne.s32.totalorder %s185, %s199
      %p201 = scmp.eq.s32.totalorder %s23, 0
      %p202 = por %p200, %p201
      %s203 = ssub.s32 %s17, %s24
      %p204 = scmp.eq.s32.totalorder %s203, 0
      %s206 = sadd.s32 %s205, 1
      %s207 = scalar_select %p204, %s205, %s206
      %p210 = pneg %p204
      %p211 = scmp.eq.s32.totalorder %s17, 1
      %p212 = por %p210, %p211
      %p213 = scmp.ne.s32.totalorder %s205, %s208
      %p214 = scmp.eq.s32.totalorder %s17, 0
      %p215 = por %p213, %p214
      %p216 = scmp.ne.s32.totalorder %s205, %s208
      %p217 = scmp.eq.s32.totalorder %s22, 1
      %p218 = por %p216, %p217
      %p219 = scmp.ne.s32.totalorder %s208, %s209
      %p220 = scmp.eq.s32.totalorder %s22, 0
      %p221 = por %p219, %p220
      %p222 = scmp.ne.s32.totalorder %s208, %s209
      %p223 = scmp.eq.s32.totalorder %s23, 1
      %p224 = por %p222, %p223
      %p226 = scmp.ne.s32.totalorder %s209, %s225
      %p227 = scmp.eq.s32.totalorder %s23, 0
      %p228 = por %p226, %p227
      %p229 = scmp.le.s32.totalorder 1, %s17
      %p230 = scmp.lt.s32.totalorder %s17, 3
      %p231 = pnand %p229, %p230
      %p232 = pneg %p231
      // Predicated region
      $region9: #{tpu_custom_call.1} parent=5 // pred_check
        _
      $region10: #{tpu_custom_call.1} parent=5 // pred_check_branch
        %234 = sbr.rel (%p231) target = $region12
      $region11: #{tpu_custom_call.1} parent=5 // pred_region
        %s235 = ssub.s32 %s17, 1
        // Predicated region
        $region13: #{tpu_custom_call.1} parent=11 // pred_check
          %p236 = pneg %p90
        $region14: #{tpu_custom_call.1} parent=11 // pred_check_branch
          %238 = sbr.rel (%p236) target = $region16
        $region15: #{tpu_custom_call.1} parent=11 // pred_region
          _
        $region16: #{tpu_custom_call.1} parent=11 // pred_fallthru
          _
        // Predicated region
        $region17: #{tpu_custom_call.1} parent=11 // pred_check
          %p239 = pneg %p111
        $region18: #{tpu_custom_call.1} parent=11 // pred_check_branch
          %241 = sbr.rel (%p239) target = $region20
        $region19: #{tpu_custom_call.1} parent=11 // pred_region
          _
        $region20: #{tpu_custom_call.1} parent=11 // pred_fallthru
          _
        // Predicated region
        $region21: #{tpu_custom_call.1} parent=11 // pred_check
          %p242 = pneg %p132
        $region22: #{tpu_custom_call.1} parent=11 // pred_check_branch
          %244 = sbr.rel (%p242) target = $region24
        $region23: #{tpu_custom_call.1} parent=11 // pred_region
          _
        $region24: #{tpu_custom_call.1} parent=11 // pred_fallthru
          _
        // Predicated region
        $region25: #{tpu_custom_call.1} parent=11 // pred_check
          %p245 = pneg %p153
        $region26: #{tpu_custom_call.1} parent=11 // pred_check_branch
          %247 = sbr.rel (%p245) target = $region28
        $region27: #{tpu_custom_call.1} parent=11 // pred_region
          _
        $region28: #{tpu_custom_call.1} parent=11 // pred_fallthru
          _
        // Predicated region
        $region29: #{tpu_custom_call.1} parent=11 // pred_check
          %p248 = pneg %p174
        $region30: #{tpu_custom_call.1} parent=11 // pred_check_branch
          %250 = sbr.rel (%p248) target = $region32
        $region31: #{tpu_custom_call.1} parent=11 // pred_region
          _
        $region32: #{tpu_custom_call.1} parent=11 // pred_fallthru
          _
        // Predicated region
        $region33: #{tpu_custom_call.1} parent=11 // pred_check
          %p251 = pneg %p195
        $region34: #{tpu_custom_call.1} parent=11 // pred_check_branch
          %253 = sbr.rel (%p251) target = $region36
        $region35: #{tpu_custom_call.1} parent=11 // pred_region
          _
        $region36: #{tpu_custom_call.1} parent=11 // pred_fallthru
          _
      $region12: #{tpu_custom_call.1} parent=5 // pred_fallthru
        _
      %p254 = scmp.lt.s32.totalorder %s17, 2
      // Predicated region
      $region37: #{tpu_custom_call.1} parent=5 // pred_check
        %p255 = pneg %p254
      $region38: #{tpu_custom_call.1} parent=5 // pred_check_branch
        %257 = sbr.rel (%p255) target = $region40
      $region39: #{tpu_custom_call.1} parent=5 // pred_region
        // Predicated region
        $region41: #{tpu_custom_call.1} parent=39 // pred_check
          %p258 = pneg %p37
        $region42: #{tpu_custom_call.1} parent=39 // pred_check_branch
          %260 = sbr.rel (%p258) target = $region44
        $region43: #{tpu_custom_call.1} parent=39 // pred_region
          %p261 = scmp.lt.s32.totalorder %s17, 1
          %s262 = scalar_select %p261, %s17, 1
          %s263 = smul.addr %s262, 8
          %s264 = scalar_lea.vmem %s0, %s263
        $region44: #{tpu_custom_call.1} parent=39 // pred_fallthru
          _
        // Predicated region
        $region45: #{tpu_custom_call.1} parent=39 // pred_check
          %p265 = pneg %p63
        $region46: #{tpu_custom_call.1} parent=39 // pred_check_branch
          %267 = sbr.rel (%p265) target = $region48
        $region47: #{tpu_custom_call.1} parent=39 // pred_region
          %p268 = scmp.lt.s32.totalorder %s17, 1
          %s269 = scalar_select %p268, %s17, 1
          %s270 = smul.addr %s269, 4
          %s271 = scalar_lea.vmem %s1, %s270
        $region48: #{tpu_custom_call.1} parent=39 // pred_fallthru
          _
      $region40: #{tpu_custom_call.1} parent=5 // pred_fallthru
        _
      %p272 = scmp.le.s32.totalorder 1, %s17
      %p273 = scmp.lt.s32.totalorder %s17, 3
      %p274 = pnand %p272, %p273
      %p275 = pneg %p274
      // Predicated region
      $region49: #{tpu_custom_call.1} parent=5 // pred_check
        _
      $region50: #{tpu_custom_call.1} parent=5 // pred_check_branch
        %277 = sbr.rel (%p274) target = $region52
      $region51: #{tpu_custom_call.1} parent=5 // pred_region
        %s278 = ssub.s32 %s17, 1
        %p279 = scmp.lt.s32.totalorder %s22, 1
        %s280 = scalar_select %p279, %s22, 1
        %s281 = smul.addr %s280, 8
        %s282 = scalar_lea.vmem %s0, %s281
        %p283 = pneg %p43
        %p284 = pneg %p40
        %p285 = scmp.lt.s32.totalorder %s22, 1
        %s286 = scalar_select %p285, %s22, 1
        %s287 = smul.addr %s286, 4
        %s288 = scalar_lea.vmem %s1, %s287
        %p289 = pneg %p69
        %p290 = pneg %p66
        %p291 = pneg %p90
        %p292 = pneg %p87
        %p293 = pneg %p111
        %p294 = pneg %p108
        %p295 = pneg %p132
        %p296 = pneg %p129
        %p297 = pneg %p153
        %p298 = pneg %p150
        %p299 = pneg %p174
        %p300 = pneg %p171
        %p301 = pneg %p195
        %p302 = pneg %p192
        %p303 = pneg %p221
        %p304 = pneg %p218
        %s305 = sand.u32 %s208, 1
        %s306 = scalar_lea.sflag [#allocation6], %s305
        %s307 = sand.u32 %s208, 1
        %s308 = smul.addr %s307, 4
        %s309 = scalar_lea.vmem [#allocation5], %s308
        %p310 = scmp.lt.s32.totalorder %s22, 1
        %s311 = scalar_select %p310, %s22, 1
        %s312 = smul.addr %s311, 8
        %s313 = scalar_lea.vmem %s0, %s312
        %p314 = scmp.lt.s32.totalorder %s22, 1
        %s315 = scalar_select %p314, %s22, 1
        %s316 = smul.addr %s315, 4
        %s317 = scalar_lea.vmem %s1, %s316
        %vm318 = vcmask 80896
        %319 = vst.msk [vmem:[#allocation2] sm:$0xff] %vm318, 0.0
        %vm320 = vcmask 425296
        %321 = vst.msk [vmem:[#allocation2] sm:$0xff] %vm320, 0.0
        %vm322 = vcmask 76800
        %323 = vst.msk [vmem:[#allocation3] sm:$0xf] %vm322, 0.0
        %vm324 = vcmask 421200
        %325 = vst.msk [vmem:[#allocation3] sm:$0xf] %vm324, 0.0
        %v326 = vld [vmem:[%s317] sm:$0xf]
        %328 = vrot.lane.b32.xlu0 %v326, 10
        %v329 = vpop.permute.xlu0 %328
        %vm331 = vcmask 339024
        %332 = vst.msk [vmem:[#allocation2] sm:$0xf] %vm331, %v329
        %v333 = vld [vmem:[%s2] sm:$0xf]
        %s334 = scalar_lea.vmem %s2, 4
        %v335 = vld [vmem:[%s334] sm:$0xf]
        %v336 = vld [vmem:[%s3] sm:$0xf]
        %v337 = vlaneseq
        %v338 = vand.u32 %v337, 127
        %v339 = vlaneseq
        %v340 = vshrl.u32 %v339, 7
        %v341 = vadd.s32 %v340, 8
        %v342 = vmul.u32 %v340, 2
        %v343 = vmul.u32 %v341, 2
        %vm344 = vcmp.eq.s32.totalorder %v338, %v342
        %vm345 = vcmp.eq.s32.totalorder %v338, %v343
        %v346 = vsel %vm344, 1, 0
        %v347 = vsel %vm345, 1, 0
        %v348 = vcvt.s32.f32 %v346
        %v349 = vcvt.s32.f32 %v347
        %v350 = vadd.s32 %v342, 1
        %v351 = vadd.s32 %v343, 1
        %vm352 = vcmp.eq.s32.totalorder %v338, %v350
        %vm353 = vcmp.eq.s32.totalorder %v338, %v351
        %v354 = vsel %vm352, 1, 0
        %v355 = vsel %vm353, 1, 0
        %v356 = vcvt.s32.f32 %v354
        %v357 = vcvt.s32.f32 %v355
        %v358 = vld [vmem:[%s313] sm:$0xff]
        %vm359 = vcmask 64512
        %v361 = vsel %vm359, %v333, 0
        %363 = vmatpush.msra.mxu0 0.0
        %364 = vmatpush.msra.mxu0 0.0
        %365 = vmatpush.msra.mxu0 0.0
        %366 = vmatpush.msra.mxu0 0.0
        %367 = vmatpush.msra.mxu0 0.0
        %368 = vmatpush.msra.mxu0 0.0
        %369 = vmatpush.msra.mxu0 0.0
        %370 = vmatpush.msra.mxu0 0.0
        %371 = vmatpush.msra.mxu0 0.0
        %372 = vmatpush.msra.mxu0 0.0
        %373 = vmatpush.msra.mxu0 0.0
        %374 = vmatpush.msra.mxu0 0.0
        %375 = vmatpush.msra.mxu0 0.0
        %376 = vmatpush.msra.mxu0 0.0
        %377 = vmatpush.msra.mxu0 0.0
        %378 = vmatpush.msra.mxu0 %v358
        %379 = vmatmul.f32.gmra.mxu0 %v361
        %v380 = vpop.f32.mrf.mxu0
        %v381 = vadd.f32 0.0, %v380
        %382 = vdwg.mxu0
        %v384 = vsel %vm359, %v335, 0
        %386 = vmatpush.msra.mxu0 0.0
        %387 = vmatpush.msra.mxu0 0.0
        %388 = vmatpush.msra.mxu0 0.0
        %389 = vmatpush.msra.mxu0 0.0
        %390 = vmatpush.msra.mxu0 0.0
        %391 = vmatpush.msra.mxu0 0.0
        %392 = vmatpush.msra.mxu0 0.0
        %393 = vmatpush.msra.mxu0 0.0
        %394 = vmatpush.msra.mxu0 0.0
        %395 = vmatpush.msra.mxu0 0.0
        %396 = vmatpush.msra.mxu0 0.0
        %397 = vmatpush.msra.mxu0 0.0
        %398 = vmatpush.msra.mxu0 0.0
        %399 = vmatpush.msra.mxu0 0.0
        %400 = vmatpush.msra.mxu0 0.0
        %401 = vmatpush.msra.mxu0 %v358
        %402 = vmatmul.f32.gmra.mxu0 %v384
        %v403 = vpop.f32.mrf.mxu0
        %v404 = vadd.f32 0.0, %v403
        %405 = vdwg.mxu0
        %vm406 = vcmask 130048
        %v408 = vsel %vm406, %v404, 0
        %410 = vmatpush.msra.mxu0 0.0
        %411 = vmatpush.msra.mxu0 0.0
        %412 = vmatpush.msra.mxu0 0.0
        %413 = vmatpush.msra.mxu0 0.0
        %414 = vmatpush.msra.mxu0 0.0
        %415 = vmatpush.msra.mxu0 0.0
        %416 = vmatpush.msra.mxu0 0.0
        %417 = vmatpush.msra.mxu0 0.0
        %418 = vmatpush.msra.mxu0 0.0
        %419 = vmatpush.msra.mxu0 0.0
        %420 = vmatpush.msra.mxu0 0.0
        %421 = vmatpush.msra.mxu0 0.0
        %422 = vmatpush.msra.mxu0 0.0
        %423 = vmatpush.msra.mxu0 0.0
        %424 = vmatpush.msra.mxu0 %v357
        %425 = vmatpush.msra.mxu0 %v356
        %426 = vmatmul.f32.gmra.mxu0 %v408
        %v427 = vpop.f32.mrf.mxu0
        %v428 = vadd.f32 0.0, %v427
        %429 = vdwg.mxu0
        %v431 = vsel %vm406, %v381, 0
        %433 = vmatpush.msra.mxu0 0.0
        %434 = vmatpush.msra.mxu0 0.0
        %435 = vmatpush.msra.mxu0 0.0
        %436 = vmatpush.msra.mxu0 0.0
        %437 = vmatpush.msra.mxu0 0.0
        %438 = vmatpush.msra.mxu0 0.0
        %439 = vmatpush.msra.mxu0 0.0
        %440 = vmatpush.msra.mxu0 0.0
        %441 = vmatpush.msra.mxu0 0.0
        %442 = vmatpush.msra.mxu0 0.0
        %443 = vmatpush.msra.mxu0 0.0
        %444 = vmatpush.msra.mxu0 0.0
        %445 = vmatpush.msra.mxu0 0.0
        %446 = vmatpush.msra.mxu0 0.0
        %447 = vmatpush.msra.mxu0 %v349
        %448 = vmatpush.msra.mxu0 %v348
        %449 = vmatmul.f32.gmra.mxu0 %v431
        %v450 = vpop.f32.mrf.mxu0
        %v451 = vadd.f32 %v428, %v450
        %452 = vdwg.mxu0
        %454 = vset.pattern.permute.xlu0 0
        %455 = vperm.xlu0 %454, %v336
        %v456 = vpop.permute.xlu0 %455
        %v458 = vadd.f32 %v451, %v456
        %460 = vrot.lane.b32.xlu0 %v458, 10
        %v461 = vpop.permute.xlu0 %460
        %463 = vst.msk [vmem:[#allocation2 + $0x4] sm:$0xf] %vm331, %v461
        %v464 = vld [vmem:[%s4] sm:$0xf]
        %v465 = vld [vmem:[#allocation2] sm:$0xff]
        %v467 = vsel %vm359, %v464, 0
        %469 = vmatpush.msra.mxu0 0.0
        %470 = vmatpush.msra.mxu0 0.0
        %471 = vmatpush.msra.mxu0 0.0
        %472 = vmatpush.msra.mxu0 0.0
        %473 = vmatpush.msra.mxu0 0.0
        %474 = vmatpush.msra.mxu0 0.0
        %475 = vmatpush.msra.mxu0 0.0
        %476 = vmatpush.msra.mxu0 0.0
        %477 = vmatpush.msra.mxu0 0.0
        %478 = vmatpush.msra.mxu0 0.0
        %479 = vmatpush.msra.mxu0 0.0
        %480 = vmatpush.msra.mxu0 0.0
        %481 = vmatpush.msra.mxu0 0.0
        %482 = vmatpush.msra.mxu0 0.0
        %483 = vmatpush.msra.mxu0 0.0
        %484 = vmatpush.msra.mxu0 %v465
        %485 = vmatmul.f32.gmra.mxu0 %v467
        %v486 = vpop.f32.mrf.mxu0
        %v487 = vadd.f32 0.0, %v486
        %488 = vdwg.mxu0
        %vm489 = vcmask 257024
        %490 = vst.msk [vmem:[#allocation4] sm:$0xf] %vm489, %v487
        %v491 = vld [vmem:[#allocation4] sm:$0xf]
        %s492 = scalar_lea.vmem %s4, 4
        %v493 = vld [vmem:[%s492] sm:$0xf]
        %v494 = vld [vmem:[#allocation2] sm:$0xff]
        %496 = vrot.lane.b32.xlu0 %v494, 127
        %v497 = vpop.permute.xlu0 %496
        %v500 = vsel %vm359, %v493, 0
        %502 = vmatpush.msra.mxu0 0.0
        %503 = vmatpush.msra.mxu0 0.0
        %504 = vmatpush.msra.mxu0 0.0
        %505 = vmatpush.msra.mxu0 0.0
        %506 = vmatpush.msra.mxu0 0.0
        %507 = vmatpush.msra.mxu0 0.0
        %508 = vmatpush.msra.mxu0 0.0
        %509 = vmatpush.msra.mxu0 0.0
        %510 = vmatpush.msra.mxu0 0.0
        %511 = vmatpush.msra.mxu0 0.0
        %512 = vmatpush.msra.mxu0 0.0
        %513 = vmatpush.msra.mxu0 0.0
        %514 = vmatpush.msra.mxu0 0.0
        %515 = vmatpush.msra.mxu0 0.0
        %516 = vmatpush.msra.mxu0 0.0
        %517 = vmatpush.msra.mxu0 %v497
        %518 = vmatmul.f32.gmra.mxu0 %v500
        %v519 = vpop.f32.mrf.mxu0
        %v520 = vadd.f32 0.0, %v519
        %521 = vdwg.mxu0
        %v522 = vadd.f32 %v491, %v520
        %523 = vst.msk [vmem:[#allocation4] sm:$0xf] %vm489, %v522
        %v524 = vld [vmem:[#allocation4] sm:$0xf]
        %s525 = scalar_lea.vmem %s4, 8
        %v526 = vld [vmem:[%s525] sm:$0xf]
        %v527 = vld [vmem:[#allocation2] sm:$0xff]
        %529 = vrot.lane.b32.xlu0 %v527, 126
        %v530 = vpop.permute.xlu0 %529
        %v533 = vsel %vm359, %v526, 0
        %535 = vmatpush.msra.mxu0 0.0
        %536 = vmatpush.msra.mxu0 0.0
        %537 = vmatpush.msra.mxu0 0.0
        %538 = vmatpush.msra.mxu0 0.0
        %539 = vmatpush.msra.mxu0 0.0
        %540 = vmatpush.msra.mxu0 0.0
        %541 = vmatpush.msra.mxu0 0.0
        %542 = vmatpush.msra.mxu0 0.0
        %543 = vmatpush.msra.mxu0 0.0
        %544 = vmatpush.msra.mxu0 0.0
        %545 = vmatpush.msra.mxu0 0.0
        %546 = vmatpush.msra.mxu0 0.0
        %547 = vmatpush.msra.mxu0 0.0
        %548 = vmatpush.msra.mxu0 0.0
        %549 = vmatpush.msra.mxu0 0.0
        %550 = vmatpush.msra.mxu0 %v530
        %551 = vmatmul.f32.gmra.mxu0 %v533
        %v552 = vpop.f32.mrf.mxu0
        %v553 = vadd.f32 0.0, %v552
        %554 = vdwg.mxu0
        %v555 = vadd.f32 %v524, %v553
        %556 = vst.msk [vmem:[#allocation4] sm:$0xf] %vm489, %v555
        %v557 = vld [vmem:[#allocation4] sm:$0xf]
        %s558 = scalar_lea.vmem %s4, 12
        %v559 = vld [vmem:[%s558] sm:$0xf]
        %v560 = vld [vmem:[#allocation2] sm:$0xff]
        %562 = vrot.lane.b32.xlu0 %v560, 125
        %v563 = vpop.permute.xlu0 %562
        %v566 = vsel %vm359, %v559, 0
        %568 = vmatpush.msra.mxu0 0.0
        %569 = vmatpush.msra.mxu0 0.0
        %570 = vmatpush.msra.mxu0 0.0
        %571 = vmatpush.msra.mxu0 0.0
        %572 = vmatpush.msra.mxu0 0.0
        %573 = vmatpush.msra.mxu0 0.0
        %574 = vmatpush.msra.mxu0 0.0
        %575 = vmatpush.msra.mxu0 0.0
        %576 = vmatpush.msra.mxu0 0.0
        %577 = vmatpush.msra.mxu0 0.0
        %578 = vmatpush.msra.mxu0 0.0
        %579 = vmatpush.msra.mxu0 0.0
        %580 = vmatpush.msra.mxu0 0.0
        %581 = vmatpush.msra.mxu0 0.0
        %582 = vmatpush.msra.mxu0 0.0
        %583 = vmatpush.msra.mxu0 %v563
        %584 = vmatmul.f32.gmra.mxu0 %v566
        %v585 = vpop.f32.mrf.mxu0
        %v586 = vadd.f32 0.0, %v585
        %587 = vdwg.mxu0
        %v588 = vadd.f32 %v557, %v586
        %589 = vst.msk [vmem:[#allocation4] sm:$0xf] %vm489, %v588
        %v590 = vld [vmem:[#allocation4] sm:$0xf]
        %s591 = scalar_lea.vmem %s4, 16
        %v592 = vld [vmem:[%s591] sm:$0xf]
        %v593 = vld [vmem:[#allocation2] sm:$0xff]
        %595 = vrot.lane.b32.xlu0 %v593, 124
        %v596 = vpop.permute.xlu0 %595
        %v599 = vsel %vm359, %v592, 0
        %601 = vmatpush.msra.mxu0 0.0
        %602 = vmatpush.msra.mxu0 0.0
        %603 = vmatpush.msra.mxu0 0.0
        %604 = vmatpush.msra.mxu0 0.0
        %605 = vmatpush.msra.mxu0 0.0
        %606 = vmatpush.msra.mxu0 0.0
        %607 = vmatpush.msra.mxu0 0.0
        %608 = vmatpush.msra.mxu0 0.0
        %609 = vmatpush.msra.mxu0 0.0
        %610 = vmatpush.msra.mxu0 0.0
        %611 = vmatpush.msra.mxu0 0.0
        %612 = vmatpush.msra.mxu0 0.0
        %613 = vmatpush.msra.mxu0 0.0
        %614 = vmatpush.msra.mxu0 0.0
        %615 = vmatpush.msra.mxu0 0.0
        %616 = vmatpush.msra.mxu0 %v596
        %617 = vmatmul.f32.gmra.mxu0 %v599
        %v618 = vpop.f32.mrf.mxu0
        %v619 = vadd.f32 0.0, %v618
        %620 = vdwg.mxu0
        %v621 = vadd.f32 %v590, %v619
        %622 = vst.msk [vmem:[#allocation4] sm:$0xf] %vm489, %v621
        %v623 = vld [vmem:[#allocation4] sm:$0xf]
        %s624 = scalar_lea.vmem %s4, 20
        %v625 = vld [vmem:[%s624] sm:$0xf]
        %v626 = vld [vmem:[#allocation2] sm:$0xff]
        %628 = vrot.lane.b32.xlu0 %v626, 123
        %v629 = vpop.permute.xlu0 %628
        %v632 = vsel %vm359, %v625, 0
        %634 = vmatpush.msra.mxu0 0.0
        %635 = vmatpush.msra.mxu0 0.0
        %636 = vmatpush.msra.mxu0 0.0
        %637 = vmatpush.msra.mxu0 0.0
        %638 = vmatpush.msra.mxu0 0.0
        %639 = vmatpush.msra.mxu0 0.0
        %640 = vmatpush.msra.mxu0 0.0
        %641 = vmatpush.msra.mxu0 0.0
        %642 = vmatpush.msra.mxu0 0.0
        %643 = vmatpush.msra.mxu0 0.0
        %644 = vmatpush.msra.mxu0 0.0
        %645 = vmatpush.msra.mxu0 0.0
        %646 = vmatpush.msra.mxu0 0.0
        %647 = vmatpush.msra.mxu0 0.0
        %648 = vmatpush.msra.mxu0 0.0
        %649 = vmatpush.msra.mxu0 %v629
        %650 = vmatmul.f32.gmra.mxu0 %v632
        %v651 = vpop.f32.mrf.mxu0
        %v652 = vadd.f32 0.0, %v651
        %653 = vdwg.mxu0
        %v654 = vadd.f32 %v623, %v652
        %655 = vst.msk [vmem:[#allocation4] sm:$0xf] %vm489, %v654
        %v656 = vld [vmem:[#allocation4] sm:$0xf]
        %s657 = scalar_lea.vmem %s4, 24
        %v658 = vld [vmem:[%s657] sm:$0xf]
        %v659 = vld [vmem:[#allocation2] sm:$0xff]
        %661 = vrot.lane.b32.xlu0 %v659, 122
        %v662 = vpop.permute.xlu0 %661
        %v665 = vsel %vm359, %v658, 0
        %667 = vmatpush.msra.mxu0 0.0
        %668 = vmatpush.msra.mxu0 0.0
        %669 = vmatpush.msra.mxu0 0.0
        %670 = vmatpush.msra.mxu0 0.0
        %671 = vmatpush.msra.mxu0 0.0
        %672 = vmatpush.msra.mxu0 0.0
        %673 = vmatpush.msra.mxu0 0.0
        %674 = vmatpush.msra.mxu0 0.0
        %675 = vmatpush.msra.mxu0 0.0
        %676 = vmatpush.msra.mxu0 0.0
        %677 = vmatpush.msra.mxu0 0.0
        %678 = vmatpush.msra.mxu0 0.0
        %679 = vmatpush.msra.mxu0 0.0
        %680 = vmatpush.msra.mxu0 0.0
        %681 = vmatpush.msra.mxu0 0.0
        %682 = vmatpush.msra.mxu0 %v662
        %683 = vmatmul.f32.gmra.mxu0 %v665
        %v684 = vpop.f32.mrf.mxu0
        %v685 = vadd.f32 0.0, %v684
        %686 = vdwg.mxu0
        %v687 = vadd.f32 %v656, %v685
        %688 = vst.msk [vmem:[#allocation4] sm:$0xf] %vm489, %v687
        %v689 = vld [vmem:[#allocation4] sm:$0xf]
        %s690 = scalar_lea.vmem %s4, 28
        %v691 = vld [vmem:[%s690] sm:$0xf]
        %v692 = vld [vmem:[#allocation2] sm:$0xff]
        %694 = vrot.lane.b32.xlu0 %v692, 121
        %v695 = vpop.permute.xlu0 %694
        %v698 = vsel %vm359, %v691, 0
        %700 = vmatpush.msra.mxu0 0.0
        %701 = vmatpush.msra.mxu0 0.0
        %702 = vmatpush.msra.mxu0 0.0
        %703 = vmatpush.msra.mxu0 0.0
        %704 = vmatpush.msra.mxu0 0.0
        %705 = vmatpush.msra.mxu0 0.0
        %706 = vmatpush.msra.mxu0 0.0
        %707 = vmatpush.msra.mxu0 0.0
        %708 = vmatpush.msra.mxu0 0.0
        %709 = vmatpush.msra.mxu0 0.0
        %710 = vmatpush.msra.mxu0 0.0
        %711 = vmatpush.msra.mxu0 0.0
        %712 = vmatpush.msra.mxu0 0.0
        %713 = vmatpush.msra.mxu0 0.0
        %714 = vmatpush.msra.mxu0 0.0
        %715 = vmatpush.msra.mxu0 %v695
        %716 = vmatmul.f32.gmra.mxu0 %v698
        %v717 = vpop.f32.mrf.mxu0
        %v718 = vadd.f32 0.0, %v717
        %719 = vdwg.mxu0
        %v720 = vadd.f32 %v689, %v718
        %721 = vst.msk [vmem:[#allocation4] sm:$0xf] %vm489, %v720
        %v722 = vld [vmem:[#allocation4] sm:$0xf]
        %s723 = scalar_lea.vmem %s4, 32
        %v724 = vld [vmem:[%s723] sm:$0xf]
        %v725 = vld [vmem:[#allocation2] sm:$0xff]
        %727 = vrot.lane.b32.xlu0 %v725, 120
        %v728 = vpop.permute.xlu0 %727
        %v731 = vsel %vm359, %v724, 0
        %733 = vmatpush.msra.mxu0 0.0
        %734 = vmatpush.msra.mxu0 0.0
        %735 = vmatpush.msra.mxu0 0.0
        %736 = vmatpush.msra.mxu0 0.0
        %737 = vmatpush.msra.mxu0 0.0
        %738 = vmatpush.msra.mxu0 0.0
        %739 = vmatpush.msra.mxu0 0.0
        %740 = vmatpush.msra.mxu0 0.0
        %741 = vmatpush.msra.mxu0 0.0
        %742 = vmatpush.msra.mxu0 0.0
        %743 = vmatpush.msra.mxu0 0.0
        %744 = vmatpush.msra.mxu0 0.0
        %745 = vmatpush.msra.mxu0 0.0
        %746 = vmatpush.msra.mxu0 0.0
        %747 = vmatpush.msra.mxu0 0.0
        %748 = vmatpush.msra.mxu0 %v728
        %749 = vmatmul.f32.gmra.mxu0 %v731
        %v750 = vpop.f32.mrf.mxu0
        %v751 = vadd.f32 0.0, %v750
        %752 = vdwg.mxu0
        %v753 = vadd.f32 %v722, %v751
        %754 = vst.msk [vmem:[#allocation4] sm:$0xf] %vm489, %v753
        %v755 = vld [vmem:[#allocation4] sm:$0xf]
        %s756 = scalar_lea.vmem %s4, 36
        %v757 = vld [vmem:[%s756] sm:$0xf]
        %v758 = vld [vmem:[#allocation2] sm:$0xff]
        %760 = vrot.lane.b32.xlu0 %v758, 119
        %v761 = vpop.permute.xlu0 %760
        %v764 = vsel %vm359, %v757, 0
        %766 = vmatpush.msra.mxu0 0.0
        %767 = vmatpush.msra.mxu0 0.0
        %768 = vmatpush.msra.mxu0 0.0
        %769 = vmatpush.msra.mxu0 0.0
        %770 = vmatpush.msra.mxu0 0.0
        %771 = vmatpush.msra.mxu0 0.0
        %772 = vmatpush.msra.mxu0 0.0
        %773 = vmatpush.msra.mxu0 0.0
        %774 = vmatpush.msra.mxu0 0.0
        %775 = vmatpush.msra.mxu0 0.0
        %776 = vmatpush.msra.mxu0 0.0
        %777 = vmatpush.msra.mxu0 0.0
        %778 = vmatpush.msra.mxu0 0.0
        %779 = vmatpush.msra.mxu0 0.0
        %780 = vmatpush.msra.mxu0 0.0
        %781 = vmatpush.msra.mxu0 %v761
        %782 = vmatmul.f32.gmra.mxu0 %v764
        %v783 = vpop.f32.mrf.mxu0
        %v784 = vadd.f32 0.0, %v783
        %785 = vdwg.mxu0
        %v786 = vadd.f32 %v755, %v784
        %787 = vst.msk [vmem:[#allocation4] sm:$0xf] %vm489, %v786
        %v788 = vld [vmem:[#allocation4] sm:$0xf]
        %s789 = scalar_lea.vmem %s4, 40
        %v790 = vld [vmem:[%s789] sm:$0xf]
        %v791 = vld [vmem:[#allocation2] sm:$0xff]
        %793 = vrot.lane.b32.xlu0 %v791, 118
        %v794 = vpop.permute.xlu0 %793
        %v797 = vsel %vm359, %v790, 0
        %799 = vmatpush.msra.mxu0 0.0
        %800 = vmatpush.msra.mxu0 0.0
        %801 = vmatpush.msra.mxu0 0.0
        %802 = vmatpush.msra.mxu0 0.0
        %803 = vmatpush.msra.mxu0 0.0
        %804 = vmatpush.msra.mxu0 0.0
        %805 = vmatpush.msra.mxu0 0.0
        %806 = vmatpush.msra.mxu0 0.0
        %807 = vmatpush.msra.mxu0 0.0
        %808 = vmatpush.msra.mxu0 0.0
        %809 = vmatpush.msra.mxu0 0.0
        %810 = vmatpush.msra.mxu0 0.0
        %811 = vmatpush.msra.mxu0 0.0
        %812 = vmatpush.msra.mxu0 0.0
        %813 = vmatpush.msra.mxu0 0.0
        %814 = vmatpush.msra.mxu0 %v794
        %815 = vmatmul.f32.gmra.mxu0 %v797
        %v816 = vpop.f32.mrf.mxu0
        %v817 = vadd.f32 0.0, %v816
        %818 = vdwg.mxu0
        %v819 = vadd.f32 %v788, %v817
        %820 = vst.msk [vmem:[#allocation4] sm:$0xf] %vm489, %v819
        %v821 = vld [vmem:[#allocation4] sm:$0xf]
        %s822 = scalar_lea.vmem %s4, 44
        %v823 = vld [vmem:[%s822] sm:$0xf]
        %v824 = vld [vmem:[#allocation2] sm:$0xff]
        %826 = vrot.lane.b32.xlu0 %v824, 117
        %v827 = vpop.permute.xlu0 %826
        %v830 = vsel %vm359, %v823, 0
        %832 = vmatpush.msra.mxu0 0.0
        %833 = vmatpush.msra.mxu0 0.0
        %834 = vmatpush.msra.mxu0 0.0
        %835 = vmatpush.msra.mxu0 0.0
        %836 = vmatpush.msra.mxu0 0.0
        %837 = vmatpush.msra.mxu0 0.0
        %838 = vmatpush.msra.mxu0 0.0
        %839 = vmatpush.msra.mxu0 0.0
        %840 = vmatpush.msra.mxu0 0.0
        %841 = vmatpush.msra.mxu0 0.0
        %842 = vmatpush.msra.mxu0 0.0
        %843 = vmatpush.msra.mxu0 0.0
        %844 = vmatpush.msra.mxu0 0.0
        %845 = vmatpush.msra.mxu0 0.0
        %846 = vmatpush.msra.mxu0 0.0
        %847 = vmatpush.msra.mxu0 %v827
        %848 = vmatmul.f32.gmra.mxu0 %v830
        %v849 = vpop.f32.mrf.mxu0
        %v850 = vadd.f32 0.0, %v849
        %851 = vdwg.mxu0
        %v852 = vadd.f32 %v821, %v850
        %853 = vst.msk [vmem:[#allocation4] sm:$0xf] %vm489, %v852
        %v854 = vld [vmem:[#allocation4] sm:$0xf]
        %s855 = scalar_lea.vmem %s4, 48
        %v856 = vld [vmem:[%s855] sm:$0xf]
        %v857 = vld [vmem:[#allocation2] sm:$0xff]
        %859 = vrot.lane.b32.xlu0 %v857, 116
        %v860 = vpop.permute.xlu0 %859
        %v863 = vsel %vm359, %v856, 0
        %865 = vmatpush.msra.mxu0 0.0
        %866 = vmatpush.msra.mxu0 0.0
        %867 = vmatpush.msra.mxu0 0.0
        %868 = vmatpush.msra.mxu0 0.0
        %869 = vmatpush.msra.mxu0 0.0
        %870 = vmatpush.msra.mxu0 0.0
        %871 = vmatpush.msra.mxu0 0.0
        %872 = vmatpush.msra.mxu0 0.0
        %873 = vmatpush.msra.mxu0 0.0
        %874 = vmatpush.msra.mxu0 0.0
        %875 = vmatpush.msra.mxu0 0.0
        %876 = vmatpush.msra.mxu0 0.0
        %877 = vmatpush.msra.mxu0 0.0
        %878 = vmatpush.msra.mxu0 0.0
        %879 = vmatpush.msra.mxu0 0.0
        %880 = vmatpush.msra.mxu0 %v860
        %881 = vmatmul.f32.gmra.mxu0 %v863
        %v882 = vpop.f32.mrf.mxu0
        %v883 = vadd.f32 0.0, %v882
        %884 = vdwg.mxu0
        %v885 = vadd.f32 %v854, %v883
        %886 = vst.msk [vmem:[#allocation4] sm:$0xf] %vm489, %v885
        %v887 = vld [vmem:[#allocation4] sm:$0xf]
        %s888 = scalar_lea.vmem %s4, 52
        %v889 = vld [vmem:[%s888] sm:$0xf]
        %v890 = vld [vmem:[#allocation2] sm:$0xff]
        %892 = vrot.lane.b32.xlu0 %v890, 115
        %v893 = vpop.permute.xlu0 %892
        %v896 = vsel %vm359, %v889, 0
        %898 = vmatpush.msra.mxu0 0.0
        %899 = vmatpush.msra.mxu0 0.0
        %900 = vmatpush.msra.mxu0 0.0
        %901 = vmatpush.msra.mxu0 0.0
        %902 = vmatpush.msra.mxu0 0.0
        %903 = vmatpush.msra.mxu0 0.0
        %904 = vmatpush.msra.mxu0 0.0
        %905 = vmatpush.msra.mxu0 0.0
        %906 = vmatpush.msra.mxu0 0.0
        %907 = vmatpush.msra.mxu0 0.0
        %908 = vmatpush.msra.mxu0 0.0
        %909 = vmatpush.msra.mxu0 0.0
        %910 = vmatpush.msra.mxu0 0.0
        %911 = vmatpush.msra.mxu0 0.0
        %912 = vmatpush.msra.mxu0 0.0
        %913 = vmatpush.msra.mxu0 %v893
        %914 = vmatmul.f32.gmra.mxu0 %v896
        %v915 = vpop.f32.mrf.mxu0
        %v916 = vadd.f32 0.0, %v915
        %917 = vdwg.mxu0
        %v918 = vadd.f32 %v887, %v916
        %919 = vst.msk [vmem:[#allocation4] sm:$0xf] %vm489, %v918
        %v920 = vld [vmem:[#allocation4] sm:$0xf]
        %s921 = scalar_lea.vmem %s4, 56
        %v922 = vld [vmem:[%s921] sm:$0xf]
        %v923 = vld [vmem:[#allocation2] sm:$0xff]
        %925 = vrot.lane.b32.xlu0 %v923, 114
        %v926 = vpop.permute.xlu0 %925
        %v929 = vsel %vm359, %v922, 0
        %931 = vmatpush.msra.mxu0 0.0
        %932 = vmatpush.msra.mxu0 0.0
        %933 = vmatpush.msra.mxu0 0.0
        %934 = vmatpush.msra.mxu0 0.0
        %935 = vmatpush.msra.mxu0 0.0
        %936 = vmatpush.msra.mxu0 0.0
        %937 = vmatpush.msra.mxu0 0.0
        %938 = vmatpush.msra.mxu0 0.0
        %939 = vmatpush.msra.mxu0 0.0
        %940 = vmatpush.msra.mxu0 0.0
        %941 = vmatpush.msra.mxu0 0.0
        %942 = vmatpush.msra.mxu0 0.0
        %943 = vmatpush.msra.mxu0 0.0
        %944 = vmatpush.msra.mxu0 0.0
        %945 = vmatpush.msra.mxu0 0.0
        %946 = vmatpush.msra.mxu0 %v926
        %947 = vmatmul.f32.gmra.mxu0 %v929
        %v948 = vpop.f32.mrf.mxu0
        %v949 = vadd.f32 0.0, %v948
        %950 = vdwg.mxu0
        %v951 = vadd.f32 %v920, %v949
        %952 = vst.msk [vmem:[#allocation4] sm:$0xf] %vm489, %v951
        %v953 = vld [vmem:[#allocation4] sm:$0xf]
        %s954 = scalar_lea.vmem %s4, 60
        %v955 = vld [vmem:[%s954] sm:$0xf]
        %v956 = vld [vmem:[#allocation2] sm:$0xff]
        %958 = vrot.lane.b32.xlu0 %v956, 113
        %v959 = vpop.permute.xlu0 %958
        %v962 = vsel %vm359, %v955, 0
        %964 = vmatpush.msra.mxu0 0.0
        %965 = vmatpush.msra.mxu0 0.0
        %966 = vmatpush.msra.mxu0 0.0
        %967 = vmatpush.msra.mxu0 0.0
        %968 = vmatpush.msra.mxu0 0.0
        %969 = vmatpush.msra.mxu0 0.0
        %970 = vmatpush.msra.mxu0 0.0
        %971 = vmatpush.msra.mxu0 0.0
        %972 = vmatpush.msra.mxu0 0.0
        %973 = vmatpush.msra.mxu0 0.0
        %974 = vmatpush.msra.mxu0 0.0
        %975 = vmatpush.msra.mxu0 0.0
        %976 = vmatpush.msra.mxu0 0.0
        %977 = vmatpush.msra.mxu0 0.0
        %978 = vmatpush.msra.mxu0 0.0
        %979 = vmatpush.msra.mxu0 %v959
        %980 = vmatmul.f32.gmra.mxu0 %v962
        %v981 = vpop.f32.mrf.mxu0
        %v982 = vadd.f32 0.0, %v981
        %983 = vdwg.mxu0
        %v984 = vadd.f32 %v953, %v982
        %985 = vst.msk [vmem:[#allocation4] sm:$0xf] %vm489, %v984
        %v986 = vld [vmem:[#allocation4] sm:$0xf]
        %s987 = scalar_lea.vmem %s4, 64
        %v988 = vld [vmem:[%s987] sm:$0xf]
        %v989 = vld [vmem:[#allocation2] sm:$0xff]
        %991 = vrot.lane.b32.xlu0 %v989, 112
        %v992 = vpop.permute.xlu0 %991
        %v995 = vsel %vm359, %v988, 0
        %997 = vmatpush.msra.mxu0 0.0
        %998 = vmatpush.msra.mxu0 0.0
        %999 = vmatpush.msra.mxu0 0.0
        %1000 = vmatpush.msra.mxu0 0.0
        %1001 = vmatpush.msra.mxu0 0.0
        %1002 = vmatpush.msra.mxu0 0.0
        %1003 = vmatpush.msra.mxu0 0.0
        %1004 = vmatpush.msra.mxu0 0.0
        %1005 = vmatpush.msra.mxu0 0.0
        %1006 = vmatpush.msra.mxu0 0.0
        %1007 = vmatpush.msra.mxu0 0.0
        %1008 = vmatpush.msra.mxu0 0.0
        %1009 = vmatpush.msra.mxu0 0.0
        %1010 = vmatpush.msra.mxu0 0.0
        %1011 = vmatpush.msra.mxu0 0.0
        %1012 = vmatpush.msra.mxu0 %v992
        %1013 = vmatmul.f32.gmra.mxu0 %v995
        %v1014 = vpop.f32.mrf.mxu0
        %v1015 = vadd.f32 0.0, %v1014
        %1016 = vdwg.mxu0
        %v1017 = vadd.f32 %v986, %v1015
        %1018 = vst.msk [vmem:[#allocation4] sm:$0xf] %vm489, %v1017
        %v1019 = vld [vmem:[#allocation4] sm:$0xf]
        %s1020 = scalar_lea.vmem %s4, 68
        %v1021 = vld [vmem:[%s1020] sm:$0xf]
        %v1022 = vld [vmem:[#allocation2] sm:$0xff]
        %1024 = vrot.lane.b32.xlu0 %v1022, 111
        %v1025 = vpop.permute.xlu0 %1024
        %v1028 = vsel %vm359, %v1021, 0
        %1030 = vmatpush.msra.mxu0 0.0
        %1031 = vmatpush.msra.mxu0 0.0
        %1032 = vmatpush.msra.mxu0 0.0
        %1033 = vmatpush.msra.mxu0 0.0
        %1034 = vmatpush.msra.mxu0 0.0
        %1035 = vmatpush.msra.mxu0 0.0
        %1036 = vmatpush.msra.mxu0 0.0
        %1037 = vmatpush.msra.mxu0 0.0
        %1038 = vmatpush.msra.mxu0 0.0
        %1039 = vmatpush.msra.mxu0 0.0
        %1040 = vmatpush.msra.mxu0 0.0
        %1041 = vmatpush.msra.mxu0 0.0
        %1042 = vmatpush.msra.mxu0 0.0
        %1043 = vmatpush.msra.mxu0 0.0
        %1044 = vmatpush.msra.mxu0 0.0
        %1045 = vmatpush.msra.mxu0 %v1025
        %1046 = vmatmul.f32.gmra.mxu0 %v1028
        %v1047 = vpop.f32.mrf.mxu0
        %v1048 = vadd.f32 0.0, %v1047
        %1049 = vdwg.mxu0
        %v1050 = vadd.f32 %v1019, %v1048
        %1051 = vst.msk [vmem:[#allocation4] sm:$0xf] %vm489, %v1050
        %v1052 = vld [vmem:[#allocation4] sm:$0xf]
        %s1053 = scalar_lea.vmem %s4, 72
        %v1054 = vld [vmem:[%s1053] sm:$0xf]
        %v1055 = vld [vmem:[#allocation2] sm:$0xff]
        %1057 = vrot.lane.b32.xlu0 %v1055, 110
        %v1058 = vpop.permute.xlu0 %1057
        %v1061 = vsel %vm359, %v1054, 0
        %1063 = vmatpush.msra.mxu0 0.0
        %1064 = vmatpush.msra.mxu0 0.0
        %1065 = vmatpush.msra.mxu0 0.0
        %1066 = vmatpush.msra.mxu0 0.0
        %1067 = vmatpush.msra.mxu0 0.0
        %1068 = vmatpush.msra.mxu0 0.0
        %1069 = vmatpush.msra.mxu0 0.0
        %1070 = vmatpush.msra.mxu0 0.0
        %1071 = vmatpush.msra.mxu0 0.0
        %1072 = vmatpush.msra.mxu0 0.0
        %1073 = vmatpush.msra.mxu0 0.0
        %1074 = vmatpush.msra.mxu0 0.0
        %1075 = vmatpush.msra.mxu0 0.0
        %1076 = vmatpush.msra.mxu0 0.0
        %1077 = vmatpush.msra.mxu0 0.0
        %1078 = vmatpush.msra.mxu0 %v1058
        %1079 = vmatmul.f32.gmra.mxu0 %v1061
        %v1080 = vpop.f32.mrf.mxu0
        %v1081 = vadd.f32 0.0, %v1080
        %1082 = vdwg.mxu0
        %v1083 = vadd.f32 %v1052, %v1081
        %1084 = vst.msk [vmem:[#allocation4] sm:$0xf] %vm489, %v1083
        %v1085 = vld [vmem:[#allocation4] sm:$0xf]
        %s1086 = scalar_lea.vmem %s4, 76
        %v1087 = vld [vmem:[%s1086] sm:$0xf]
        %v1088 = vld [vmem:[#allocation2] sm:$0xff]
        %1090 = vrot.lane.b32.xlu0 %v1088, 109
        %v1091 = vpop.permute.xlu0 %1090
        %v1094 = vsel %vm359, %v1087, 0
        %1096 = vmatpush.msra.mxu0 0.0
        %1097 = vmatpush.msra.mxu0 0.0
        %1098 = vmatpush.msra.mxu0 0.0
        %1099 = vmatpush.msra.mxu0 0.0
        %1100 = vmatpush.msra.mxu0 0.0
        %1101 = vmatpush.msra.mxu0 0.0
        %1102 = vmatpush.msra.mxu0 0.0
        %1103 = vmatpush.msra.mxu0 0.0
        %1104 = vmatpush.msra.mxu0 0.0
        %1105 = vmatpush.msra.mxu0 0.0
        %1106 = vmatpush.msra.mxu0 0.0
        %1107 = vmatpush.msra.mxu0 0.0
        %1108 = vmatpush.msra.mxu0 0.0
        %1109 = vmatpush.msra.mxu0 0.0
        %1110 = vmatpush.msra.mxu0 0.0
        %1111 = vmatpush.msra.mxu0 %v1091
        %1112 = vmatmul.f32.gmra.mxu0 %v1094
        %v1113 = vpop.f32.mrf.mxu0
        %v1114 = vadd.f32 0.0, %v1113
        %1115 = vdwg.mxu0
        %v1116 = vadd.f32 %v1085, %v1114
        %1117 = vst.msk [vmem:[#allocation4] sm:$0xf] %vm489, %v1116
        %v1118 = vld [vmem:[#allocation4] sm:$0xf]
        %s1119 = scalar_lea.vmem %s4, 80
        %v1120 = vld [vmem:[%s1119] sm:$0xf]
        %v1121 = vld [vmem:[#allocation2] sm:$0xff]
        %1123 = vrot.lane.b32.xlu0 %v1121, 108
        %v1124 = vpop.permute.xlu0 %1123
        %v1127 = vsel %vm359, %v1120, 0
        %1129 = vmatpush.msra.mxu0 0.0
        %1130 = vmatpush.msra.mxu0 0.0
        %1131 = vmatpush.msra.mxu0 0.0
        %1132 = vmatpush.msra.mxu0 0.0
        %1133 = vmatpush.msra.mxu0 0.0
        %1134 = vmatpush.msra.mxu0 0.0
        %1135 = vmatpush.msra.mxu0 0.0
        %1136 = vmatpush.msra.mxu0 0.0
        %1137 = vmatpush.msra.mxu0 0.0
        %1138 = vmatpush.msra.mxu0 0.0
        %1139 = vmatpush.msra.mxu0 0.0
        %1140 = vmatpush.msra.mxu0 0.0
        %1141 = vmatpush.msra.mxu0 0.0
        %1142 = vmatpush.msra.mxu0 0.0
        %1143 = vmatpush.msra.mxu0 0.0
        %1144 = vmatpush.msra.mxu0 %v1124
        %1145 = vmatmul.f32.gmra.mxu0 %v1127
        %v1146 = vpop.f32.mrf.mxu0
        %v1147 = vadd.f32 0.0, %v1146
        %1148 = vdwg.mxu0
        %v1149 = vadd.f32 %v1118, %v1147
        %1150 = vst.msk [vmem:[#allocation4] sm:$0xf] %vm489, %v1149
        %v1151 = vld [vmem:[#allocation4] sm:$0xf]
        %v1152 = vld [vmem:[%s5] sm:$0xf]
        %1154 = vset.pattern.permute.xlu0 0
        %1155 = vperm.xlu0 %1154, %v1152
        %v1156 = vpop.permute.xlu0 %1155
        %v1158 = vadd.f32 %v1151, %v1156
        %v1159 = vmax.f32 %v1158, 0.0
        %1161 = vrot.lane.b32.xlu0 %v1159, 10
        %v1162 = vpop.permute.xlu0 %1161
        %1164 = vst.msk [vmem:[#allocation3] sm:$0xf] %vm331, %v1162
        %v1165 = vld [vmem:[%s6] sm:$0xf]
        %v1166 = vld [vmem:[#allocation3] sm:$0xf]
        %vm1167 = vcmask 31744
        %v1169 = vsel %vm1167, %v1165, 0
        %vm1171 = vcmask 1043456
        %v1173 = vsel %vm1171, %v1166, 0
        %1175 = vmatpush.msra.mxu0 0.0
        %1176 = vmatpush.msra.mxu0 0.0
        %1177 = vmatpush.msra.mxu0 0.0
        %1178 = vmatpush.msra.mxu0 0.0
        %1179 = vmatpush.msra.mxu0 0.0
        %1180 = vmatpush.msra.mxu0 0.0
        %1181 = vmatpush.msra.mxu0 0.0
        %1182 = vmatpush.msra.mxu0 0.0
        %1183 = vmatpush.msra.mxu0 0.0
        %1184 = vmatpush.msra.mxu0 0.0
        %1185 = vmatpush.msra.mxu0 0.0
        %1186 = vmatpush.msra.mxu0 0.0
        %1187 = vmatpush.msra.mxu0 0.0
        %1188 = vmatpush.msra.mxu0 0.0
        %1189 = vmatpush.msra.mxu0 0.0
        %1190 = vmatpush.msra.mxu0 %v1173
        %1191 = vmatmul.f32.gmra.mxu0 %v1169
        %v1192 = vpop.f32.mrf.mxu0
        %v1193 = vadd.f32 0.0, %v1192
        %1194 = vdwg.mxu0
        %1195 = vst.msk [vmem:[#allocation4] sm:$0xf] %vm489, %v1193
        %v1196 = vld [vmem:[#allocation4] sm:$0xf]
        %s1197 = scalar_lea.vmem %s6, 4
        %v1198 = vld [vmem:[%s1197] sm:$0xf]
        %v1199 = vld [vmem:[#allocation3] sm:$0xf]
        %1201 = vrot.lane.b32.xlu0 %v1199, 127
        %v1202 = vpop.permute.xlu0 %1201
        %v1204 = vsel %vm1167, %v1198, 0
        %v1206 = vsel %vm1171, %v1202, 0
        %1208 = vmatpush.msra.mxu0 0.0
        %1209 = vmatpush.msra.mxu0 0.0
        %1210 = vmatpush.msra.mxu0 0.0
        %1211 = vmatpush.msra.mxu0 0.0
        %1212 = vmatpush.msra.mxu0 0.0
        %1213 = vmatpush.msra.mxu0 0.0
        %1214 = vmatpush.msra.mxu0 0.0
        %1215 = vmatpush.msra.mxu0 0.0
        %1216 = vmatpush.msra.mxu0 0.0
        %1217 = vmatpush.msra.mxu0 0.0
        %1218 = vmatpush.msra.mxu0 0.0
        %1219 = vmatpush.msra.mxu0 0.0
        %1220 = vmatpush.msra.mxu0 0.0
        %1221 = vmatpush.msra.mxu0 0.0
        %1222 = vmatpush.msra.mxu0 0.0
        %1223 = vmatpush.msra.mxu0 %v1206
        %1224 = vmatmul.f32.gmra.mxu0 %v1204
        %v1225 = vpop.f32.mrf.mxu0
        %v1226 = vadd.f32 0.0, %v1225
        %1227 = vdwg.mxu0
        %v1228 = vadd.f32 %v1196, %v1226
        %1229 = vst.msk [vmem:[#allocation4] sm:$0xf] %vm489, %v1228
        %v1230 = vld [vmem:[#allocation4] sm:$0xf]
        %s1231 = scalar_lea.vmem %s6, 8
        %v1232 = vld [vmem:[%s1231] sm:$0xf]
        %v1233 = vld [vmem:[#allocation3] sm:$0xf]
        %1235 = vrot.lane.b32.xlu0 %v1233, 126
        %v1236 = vpop.permute.xlu0 %1235
        %v1238 = vsel %vm1167, %v1232, 0
        %v1240 = vsel %vm1171, %v1236, 0
        %1242 = vmatpush.msra.mxu0 0.0
        %1243 = vmatpush.msra.mxu0 0.0
        %1244 = vmatpush.msra.mxu0 0.0
        %1245 = vmatpush.msra.mxu0 0.0
        %1246 = vmatpush.msra.mxu0 0.0
        %1247 = vmatpush.msra.mxu0 0.0
        %1248 = vmatpush.msra.mxu0 0.0
        %1249 = vmatpush.msra.mxu0 0.0
        %1250 = vmatpush.msra.mxu0 0.0
        %1251 = vmatpush.msra.mxu0 0.0
        %1252 = vmatpush.msra.mxu0 0.0
        %1253 = vmatpush.msra.mxu0 0.0
        %1254 = vmatpush.msra.mxu0 0.0
        %1255 = vmatpush.msra.mxu0 0.0
        %1256 = vmatpush.msra.mxu0 0.0
        %1257 = vmatpush.msra.mxu0 %v1240
        %1258 = vmatmul.f32.gmra.mxu0 %v1238
        %v1259 = vpop.f32.mrf.mxu0
        %v1260 = vadd.f32 0.0, %v1259
        %1261 = vdwg.mxu0
        %v1262 = vadd.f32 %v1230, %v1260
        %1263 = vst.msk [vmem:[#allocation4] sm:$0xf] %vm489, %v1262
        %v1264 = vld [vmem:[#allocation4] sm:$0xf]
        %s1265 = scalar_lea.vmem %s6, 12
        %v1266 = vld [vmem:[%s1265] sm:$0xf]
        %v1267 = vld [vmem:[#allocation3] sm:$0xf]
        %1269 = vrot.lane.b32.xlu0 %v1267, 125
        %v1270 = vpop.permute.xlu0 %1269
        %v1272 = vsel %vm1167, %v1266, 0
        %v1274 = vsel %vm1171, %v1270, 0
        %1276 = vmatpush.msra.mxu0 0.0
        %1277 = vmatpush.msra.mxu0 0.0
        %1278 = vmatpush.msra.mxu0 0.0
        %1279 = vmatpush.msra.mxu0 0.0
        %1280 = vmatpush.msra.mxu0 0.0
        %1281 = vmatpush.msra.mxu0 0.0
        %1282 = vmatpush.msra.mxu0 0.0
        %1283 = vmatpush.msra.mxu0 0.0
        %1284 = vmatpush.msra.mxu0 0.0
        %1285 = vmatpush.msra.mxu0 0.0
        %1286 = vmatpush.msra.mxu0 0.0
        %1287 = vmatpush.msra.mxu0 0.0
        %1288 = vmatpush.msra.mxu0 0.0
        %1289 = vmatpush.msra.mxu0 0.0
        %1290 = vmatpush.msra.mxu0 0.0
        %1291 = vmatpush.msra.mxu0 %v1274
        %1292 = vmatmul.f32.gmra.mxu0 %v1272
        %v1293 = vpop.f32.mrf.mxu0
        %v1294 = vadd.f32 0.0, %v1293
        %1295 = vdwg.mxu0
        %v1296 = vadd.f32 %v1264, %v1294
        %1297 = vst.msk [vmem:[#allocation4] sm:$0xf] %vm489, %v1296
        %v1298 = vld [vmem:[#allocation4] sm:$0xf]
        %s1299 = scalar_lea.vmem %s6, 16
        %v1300 = vld [vmem:[%s1299] sm:$0xf]
        %v1301 = vld [vmem:[#allocation3] sm:$0xf]
        %1303 = vrot.lane.b32.xlu0 %v1301, 124
        %v1304 = vpop.permute.xlu0 %1303
        %v1306 = vsel %vm1167, %v1300, 0
        %v1308 = vsel %vm1171, %v1304, 0
        %1310 = vmatpush.msra.mxu0 0.0
        %1311 = vmatpush.msra.mxu0 0.0
        %1312 = vmatpush.msra.mxu0 0.0
        %1313 = vmatpush.msra.mxu0 0.0
        %1314 = vmatpush.msra.mxu0 0.0
        %1315 = vmatpush.msra.mxu0 0.0
        %1316 = vmatpush.msra.mxu0 0.0
        %1317 = vmatpush.msra.mxu0 0.0
        %1318 = vmatpush.msra.mxu0 0.0
        %1319 = vmatpush.msra.mxu0 0.0
        %1320 = vmatpush.msra.mxu0 0.0
        %1321 = vmatpush.msra.mxu0 0.0
        %1322 = vmatpush.msra.mxu0 0.0
        %1323 = vmatpush.msra.mxu0 0.0
        %1324 = vmatpush.msra.mxu0 0.0
        %1325 = vmatpush.msra.mxu0 %v1308
        %1326 = vmatmul.f32.gmra.mxu0 %v1306
        %v1327 = vpop.f32.mrf.mxu0
        %v1328 = vadd.f32 0.0, %v1327
        %1329 = vdwg.mxu0
        %v1330 = vadd.f32 %v1298, %v1328
        %1331 = vst.msk [vmem:[#allocation4] sm:$0xf] %vm489, %v1330
        %v1332 = vld [vmem:[#allocation4] sm:$0xf]
        %s1333 = scalar_lea.vmem %s6, 20
        %v1334 = vld [vmem:[%s1333] sm:$0xf]
        %v1335 = vld [vmem:[#allocation3] sm:$0xf]
        %1337 = vrot.lane.b32.xlu0 %v1335, 123
        %v1338 = vpop.permute.xlu0 %1337
        %v1340 = vsel %vm1167, %v1334, 0
        %v1342 = vsel %vm1171, %v1338, 0
        %1344 = vmatpush.msra.mxu0 0.0
        %1345 = vmatpush.msra.mxu0 0.0
        %1346 = vmatpush.msra.mxu0 0.0
        %1347 = vmatpush.msra.mxu0 0.0
        %1348 = vmatpush.msra.mxu0 0.0
        %1349 = vmatpush.msra.mxu0 0.0
        %1350 = vmatpush.msra.mxu0 0.0
        %1351 = vmatpush.msra.mxu0 0.0
        %1352 = vmatpush.msra.mxu0 0.0
        %1353 = vmatpush.msra.mxu0 0.0
        %1354 = vmatpush.msra.mxu0 0.0
        %1355 = vmatpush.msra.mxu0 0.0
        %1356 = vmatpush.msra.mxu0 0.0
        %1357 = vmatpush.msra.mxu0 0.0
        %1358 = vmatpush.msra.mxu0 0.0
        %1359 = vmatpush.msra.mxu0 %v1342
        %1360 = vmatmul.f32.gmra.mxu0 %v1340
        %v1361 = vpop.f32.mrf.mxu0
        %v1362 = vadd.f32 0.0, %v1361
        %1363 = vdwg.mxu0
        %v1364 = vadd.f32 %v1332, %v1362
        %1365 = vst.msk [vmem:[#allocation4] sm:$0xf] %vm489, %v1364
        %v1366 = vld [vmem:[#allocation4] sm:$0xf]
        %s1367 = scalar_lea.vmem %s6, 24
        %v1368 = vld [vmem:[%s1367] sm:$0xf]
        %v1369 = vld [vmem:[#allocation3] sm:$0xf]
        %1371 = vrot.lane.b32.xlu0 %v1369, 122
        %v1372 = vpop.permute.xlu0 %1371
        %v1374 = vsel %vm1167, %v1368, 0
        %v1376 = vsel %vm1171, %v1372, 0
        %1378 = vmatpush.msra.mxu0 0.0
        %1379 = vmatpush.msra.mxu0 0.0
        %1380 = vmatpush.msra.mxu0 0.0
        %1381 = vmatpush.msra.mxu0 0.0
        %1382 = vmatpush.msra.mxu0 0.0
        %1383 = vmatpush.msra.mxu0 0.0
        %1384 = vmatpush.msra.mxu0 0.0
        %1385 = vmatpush.msra.mxu0 0.0
        %1386 = vmatpush.msra.mxu0 0.0
        %1387 = vmatpush.msra.mxu0 0.0
        %1388 = vmatpush.msra.mxu0 0.0
        %1389 = vmatpush.msra.mxu0 0.0
        %1390 = vmatpush.msra.mxu0 0.0
        %1391 = vmatpush.msra.mxu0 0.0
        %1392 = vmatpush.msra.mxu0 0.0
        %1393 = vmatpush.msra.mxu0 %v1376
        %1394 = vmatmul.f32.gmra.mxu0 %v1374
        %v1395 = vpop.f32.mrf.mxu0
        %v1396 = vadd.f32 0.0, %v1395
        %1397 = vdwg.mxu0
        %v1398 = vadd.f32 %v1366, %v1396
        %1399 = vst.msk [vmem:[#allocation4] sm:$0xf] %vm489, %v1398
        %v1400 = vld [vmem:[#allocation4] sm:$0xf]
        %s1401 = scalar_lea.vmem %s6, 28
        %v1402 = vld [vmem:[%s1401] sm:$0xf]
        %v1403 = vld [vmem:[#allocation3] sm:$0xf]
        %1405 = vrot.lane.b32.xlu0 %v1403, 121
        %v1406 = vpop.permute.xlu0 %1405
        %v1408 = vsel %vm1167, %v1402, 0
        %v1410 = vsel %vm1171, %v1406, 0
        %1412 = vmatpush.msra.mxu0 0.0
        %1413 = vmatpush.msra.mxu0 0.0
        %1414 = vmatpush.msra.mxu0 0.0
        %1415 = vmatpush.msra.mxu0 0.0
        %1416 = vmatpush.msra.mxu0 0.0
        %1417 = vmatpush.msra.mxu0 0.0
        %1418 = vmatpush.msra.mxu0 0.0
        %1419 = vmatpush.msra.mxu0 0.0
        %1420 = vmatpush.msra.mxu0 0.0
        %1421 = vmatpush.msra.mxu0 0.0
        %1422 = vmatpush.msra.mxu0 0.0
        %1423 = vmatpush.msra.mxu0 0.0
        %1424 = vmatpush.msra.mxu0 0.0
        %1425 = vmatpush.msra.mxu0 0.0
        %1426 = vmatpush.msra.mxu0 0.0
        %1427 = vmatpush.msra.mxu0 %v1410
        %1428 = vmatmul.f32.gmra.mxu0 %v1408
        %v1429 = vpop.f32.mrf.mxu0
        %v1430 = vadd.f32 0.0, %v1429
        %1431 = vdwg.mxu0
        %v1432 = vadd.f32 %v1400, %v1430
        %1433 = vst.msk [vmem:[#allocation4] sm:$0xf] %vm489, %v1432
        %v1434 = vld [vmem:[#allocation4] sm:$0xf]
        %s1435 = scalar_lea.vmem %s6, 32
        %v1436 = vld [vmem:[%s1435] sm:$0xf]
        %v1437 = vld [vmem:[#allocation3] sm:$0xf]
        %1439 = vrot.lane.b32.xlu0 %v1437, 120
        %v1440 = vpop.permute.xlu0 %1439
        %v1442 = vsel %vm1167, %v1436, 0
        %v1444 = vsel %vm1171, %v1440, 0
        %1446 = vmatpush.msra.mxu0 0.0
        %1447 = vmatpush.msra.mxu0 0.0
        %1448 = vmatpush.msra.mxu0 0.0
        %1449 = vmatpush.msra.mxu0 0.0
        %1450 = vmatpush.msra.mxu0 0.0
        %1451 = vmatpush.msra.mxu0 0.0
        %1452 = vmatpush.msra.mxu0 0.0
        %1453 = vmatpush.msra.mxu0 0.0
        %1454 = vmatpush.msra.mxu0 0.0
        %1455 = vmatpush.msra.mxu0 0.0
        %1456 = vmatpush.msra.mxu0 0.0
        %1457 = vmatpush.msra.mxu0 0.0
        %1458 = vmatpush.msra.mxu0 0.0
        %1459 = vmatpush.msra.mxu0 0.0
        %1460 = vmatpush.msra.mxu0 0.0
        %1461 = vmatpush.msra.mxu0 %v1444
        %1462 = vmatmul.f32.gmra.mxu0 %v1442
        %v1463 = vpop.f32.mrf.mxu0
        %v1464 = vadd.f32 0.0, %v1463
        %1465 = vdwg.mxu0
        %v1466 = vadd.f32 %v1434, %v1464
        %1467 = vst.msk [vmem:[#allocation4] sm:$0xf] %vm489, %v1466
        %v1468 = vld [vmem:[#allocation4] sm:$0xf]
        %s1469 = scalar_lea.vmem %s6, 36
        %v1470 = vld [vmem:[%s1469] sm:$0xf]
        %v1471 = vld [vmem:[#allocation3] sm:$0xf]
        %1473 = vrot.lane.b32.xlu0 %v1471, 119
        %v1474 = vpop.permute.xlu0 %1473
        %v1476 = vsel %vm1167, %v1470, 0
        %v1478 = vsel %vm1171, %v1474, 0
        %1480 = vmatpush.msra.mxu0 0.0
        %1481 = vmatpush.msra.mxu0 0.0
        %1482 = vmatpush.msra.mxu0 0.0
        %1483 = vmatpush.msra.mxu0 0.0
        %1484 = vmatpush.msra.mxu0 0.0
        %1485 = vmatpush.msra.mxu0 0.0
        %1486 = vmatpush.msra.mxu0 0.0
        %1487 = vmatpush.msra.mxu0 0.0
        %1488 = vmatpush.msra.mxu0 0.0
        %1489 = vmatpush.msra.mxu0 0.0
        %1490 = vmatpush.msra.mxu0 0.0
        %1491 = vmatpush.msra.mxu0 0.0
        %1492 = vmatpush.msra.mxu0 0.0
        %1493 = vmatpush.msra.mxu0 0.0
        %1494 = vmatpush.msra.mxu0 0.0
        %1495 = vmatpush.msra.mxu0 %v1478
        %1496 = vmatmul.f32.gmra.mxu0 %v1476
        %v1497 = vpop.f32.mrf.mxu0
        %v1498 = vadd.f32 0.0, %v1497
        %1499 = vdwg.mxu0
        %v1500 = vadd.f32 %v1468, %v1498
        %1501 = vst.msk [vmem:[#allocation4] sm:$0xf] %vm489, %v1500
        %v1502 = vld [vmem:[#allocation4] sm:$0xf]
        %s1503 = scalar_lea.vmem %s6, 40
        %v1504 = vld [vmem:[%s1503] sm:$0xf]
        %v1505 = vld [vmem:[#allocation3] sm:$0xf]
        %1507 = vrot.lane.b32.xlu0 %v1505, 118
        %v1508 = vpop.permute.xlu0 %1507
        %v1510 = vsel %vm1167, %v1504, 0
        %v1512 = vsel %vm1171, %v1508, 0
        %1514 = vmatpush.msra.mxu0 0.0
        %1515 = vmatpush.msra.mxu0 0.0
        %1516 = vmatpush.msra.mxu0 0.0
        %1517 = vmatpush.msra.mxu0 0.0
        %1518 = vmatpush.msra.mxu0 0.0
        %1519 = vmatpush.msra.mxu0 0.0
        %1520 = vmatpush.msra.mxu0 0.0
        %1521 = vmatpush.msra.mxu0 0.0
        %1522 = vmatpush.msra.mxu0 0.0
        %1523 = vmatpush.msra.mxu0 0.0
        %1524 = vmatpush.msra.mxu0 0.0
        %1525 = vmatpush.msra.mxu0 0.0
        %1526 = vmatpush.msra.mxu0 0.0
        %1527 = vmatpush.msra.mxu0 0.0
        %1528 = vmatpush.msra.mxu0 0.0
        %1529 = vmatpush.msra.mxu0 %v1512
        %1530 = vmatmul.f32.gmra.mxu0 %v1510
        %v1531 = vpop.f32.mrf.mxu0
        %v1532 = vadd.f32 0.0, %v1531
        %1533 = vdwg.mxu0
        %v1534 = vadd.f32 %v1502, %v1532
        %1535 = vst.msk [vmem:[#allocation4] sm:$0xf] %vm489, %v1534
        %v1536 = vld [vmem:[#allocation4] sm:$0xf]
        %s1537 = scalar_lea.vmem %s6, 44
        %v1538 = vld [vmem:[%s1537] sm:$0xf]
        %v1539 = vld [vmem:[#allocation3] sm:$0xf]
        %1541 = vrot.lane.b32.xlu0 %v1539, 117
        %v1542 = vpop.permute.xlu0 %1541
        %v1544 = vsel %vm1167, %v1538, 0
        %v1546 = vsel %vm1171, %v1542, 0
        %1548 = vmatpush.msra.mxu0 0.0
        %1549 = vmatpush.msra.mxu0 0.0
        %1550 = vmatpush.msra.mxu0 0.0
        %1551 = vmatpush.msra.mxu0 0.0
        %1552 = vmatpush.msra.mxu0 0.0
        %1553 = vmatpush.msra.mxu0 0.0
        %1554 = vmatpush.msra.mxu0 0.0
        %1555 = vmatpush.msra.mxu0 0.0
        %1556 = vmatpush.msra.mxu0 0.0
        %1557 = vmatpush.msra.mxu0 0.0
        %1558 = vmatpush.msra.mxu0 0.0
        %1559 = vmatpush.msra.mxu0 0.0
        %1560 = vmatpush.msra.mxu0 0.0
        %1561 = vmatpush.msra.mxu0 0.0
        %1562 = vmatpush.msra.mxu0 0.0
        %1563 = vmatpush.msra.mxu0 %v1546
        %1564 = vmatmul.f32.gmra.mxu0 %v1544
        %v1565 = vpop.f32.mrf.mxu0
        %v1566 = vadd.f32 0.0, %v1565
        %1567 = vdwg.mxu0
        %v1568 = vadd.f32 %v1536, %v1566
        %1569 = vst.msk [vmem:[#allocation4] sm:$0xf] %vm489, %v1568
        %v1570 = vld [vmem:[#allocation4] sm:$0xf]
        %s1571 = scalar_lea.vmem %s6, 48
        %v1572 = vld [vmem:[%s1571] sm:$0xf]
        %v1573 = vld [vmem:[#allocation3] sm:$0xf]
        %1575 = vrot.lane.b32.xlu0 %v1573, 116
        %v1576 = vpop.permute.xlu0 %1575
        %v1578 = vsel %vm1167, %v1572, 0
        %v1580 = vsel %vm1171, %v1576, 0
        %1582 = vmatpush.msra.mxu0 0.0
        %1583 = vmatpush.msra.mxu0 0.0
        %1584 = vmatpush.msra.mxu0 0.0
        %1585 = vmatpush.msra.mxu0 0.0
        %1586 = vmatpush.msra.mxu0 0.0
        %1587 = vmatpush.msra.mxu0 0.0
        %1588 = vmatpush.msra.mxu0 0.0
        %1589 = vmatpush.msra.mxu0 0.0
        %1590 = vmatpush.msra.mxu0 0.0
        %1591 = vmatpush.msra.mxu0 0.0
        %1592 = vmatpush.msra.mxu0 0.0
        %1593 = vmatpush.msra.mxu0 0.0
        %1594 = vmatpush.msra.mxu0 0.0
        %1595 = vmatpush.msra.mxu0 0.0
        %1596 = vmatpush.msra.mxu0 0.0
        %1597 = vmatpush.msra.mxu0 %v1580
        %1598 = vmatmul.f32.gmra.mxu0 %v1578
        %v1599 = vpop.f32.mrf.mxu0
        %v1600 = vadd.f32 0.0, %v1599
        %1601 = vdwg.mxu0
        %v1602 = vadd.f32 %v1570, %v1600
        %1603 = vst.msk [vmem:[#allocation4] sm:$0xf] %vm489, %v1602
        %v1604 = vld [vmem:[#allocation4] sm:$0xf]
        %s1605 = scalar_lea.vmem %s6, 52
        %v1606 = vld [vmem:[%s1605] sm:$0xf]
        %v1607 = vld [vmem:[#allocation3] sm:$0xf]
        %1609 = vrot.lane.b32.xlu0 %v1607, 115
        %v1610 = vpop.permute.xlu0 %1609
        %v1612 = vsel %vm1167, %v1606, 0
        %v1614 = vsel %vm1171, %v1610, 0
        %1616 = vmatpush.msra.mxu0 0.0
        %1617 = vmatpush.msra.mxu0 0.0
        %1618 = vmatpush.msra.mxu0 0.0
        %1619 = vmatpush.msra.mxu0 0.0
        %1620 = vmatpush.msra.mxu0 0.0
        %1621 = vmatpush.msra.mxu0 0.0
        %1622 = vmatpush.msra.mxu0 0.0
        %1623 = vmatpush.msra.mxu0 0.0
        %1624 = vmatpush.msra.mxu0 0.0
        %1625 = vmatpush.msra.mxu0 0.0
        %1626 = vmatpush.msra.mxu0 0.0
        %1627 = vmatpush.msra.mxu0 0.0
        %1628 = vmatpush.msra.mxu0 0.0
        %1629 = vmatpush.msra.mxu0 0.0
        %1630 = vmatpush.msra.mxu0 0.0
        %1631 = vmatpush.msra.mxu0 %v1614
        %1632 = vmatmul.f32.gmra.mxu0 %v1612
        %v1633 = vpop.f32.mrf.mxu0
        %v1634 = vadd.f32 0.0, %v1633
        %1635 = vdwg.mxu0
        %v1636 = vadd.f32 %v1604, %v1634
        %1637 = vst.msk [vmem:[#allocation4] sm:$0xf] %vm489, %v1636
        %v1638 = vld [vmem:[#allocation4] sm:$0xf]
        %s1639 = scalar_lea.vmem %s6, 56
        %v1640 = vld [vmem:[%s1639] sm:$0xf]
        %v1641 = vld [vmem:[#allocation3] sm:$0xf]
        %1643 = vrot.lane.b32.xlu0 %v1641, 114
        %v1644 = vpop.permute.xlu0 %1643
        %v1646 = vsel %vm1167, %v1640, 0
        %v1648 = vsel %vm1171, %v1644, 0
        %1650 = vmatpush.msra.mxu0 0.0
        %1651 = vmatpush.msra.mxu0 0.0
        %1652 = vmatpush.msra.mxu0 0.0
        %1653 = vmatpush.msra.mxu0 0.0
        %1654 = vmatpush.msra.mxu0 0.0
        %1655 = vmatpush.msra.mxu0 0.0
        %1656 = vmatpush.msra.mxu0 0.0
        %1657 = vmatpush.msra.mxu0 0.0
        %1658 = vmatpush.msra.mxu0 0.0
        %1659 = vmatpush.msra.mxu0 0.0
        %1660 = vmatpush.msra.mxu0 0.0
        %1661 = vmatpush.msra.mxu0 0.0
        %1662 = vmatpush.msra.mxu0 0.0
        %1663 = vmatpush.msra.mxu0 0.0
        %1664 = vmatpush.msra.mxu0 0.0
        %1665 = vmatpush.msra.mxu0 %v1648
        %1666 = vmatmul.f32.gmra.mxu0 %v1646
        %v1667 = vpop.f32.mrf.mxu0
        %v1668 = vadd.f32 0.0, %v1667
        %1669 = vdwg.mxu0
        %v1670 = vadd.f32 %v1638, %v1668
        %1671 = vst.msk [vmem:[#allocation4] sm:$0xf] %vm489, %v1670
        %v1672 = vld [vmem:[#allocation4] sm:$0xf]
        %s1673 = scalar_lea.vmem %s6, 60
        %v1674 = vld [vmem:[%s1673] sm:$0xf]
        %v1675 = vld [vmem:[#allocation3] sm:$0xf]
        %1677 = vrot.lane.b32.xlu0 %v1675, 113
        %v1678 = vpop.permute.xlu0 %1677
        %v1680 = vsel %vm1167, %v1674, 0
        %v1682 = vsel %vm1171, %v1678, 0
        %1684 = vmatpush.msra.mxu0 0.0
        %1685 = vmatpush.msra.mxu0 0.0
        %1686 = vmatpush.msra.mxu0 0.0
        %1687 = vmatpush.msra.mxu0 0.0
        %1688 = vmatpush.msra.mxu0 0.0
        %1689 = vmatpush.msra.mxu0 0.0
        %1690 = vmatpush.msra.mxu0 0.0
        %1691 = vmatpush.msra.mxu0 0.0
        %1692 = vmatpush.msra.mxu0 0.0
        %1693 = vmatpush.msra.mxu0 0.0
        %1694 = vmatpush.msra.mxu0 0.0
        %1695 = vmatpush.msra.mxu0 0.0
        %1696 = vmatpush.msra.mxu0 0.0
        %1697 = vmatpush.msra.mxu0 0.0
        %1698 = vmatpush.msra.mxu0 0.0
        %1699 = vmatpush.msra.mxu0 %v1682
        %1700 = vmatmul.f32.gmra.mxu0 %v1680
        %v1701 = vpop.f32.mrf.mxu0
        %v1702 = vadd.f32 0.0, %v1701
        %1703 = vdwg.mxu0
        %v1704 = vadd.f32 %v1672, %v1702
        %1705 = vst.msk [vmem:[#allocation4] sm:$0xf] %vm489, %v1704
        %v1706 = vld [vmem:[#allocation4] sm:$0xf]
        %s1707 = scalar_lea.vmem %s6, 64
        %v1708 = vld [vmem:[%s1707] sm:$0xf]
        %v1709 = vld [vmem:[#allocation3] sm:$0xf]
        %1711 = vrot.lane.b32.xlu0 %v1709, 112
        %v1712 = vpop.permute.xlu0 %1711
        %v1714 = vsel %vm1167, %v1708, 0
        %v1716 = vsel %vm1171, %v1712, 0
        %1718 = vmatpush.msra.mxu0 0.0
        %1719 = vmatpush.msra.mxu0 0.0
        %1720 = vmatpush.msra.mxu0 0.0
        %1721 = vmatpush.msra.mxu0 0.0
        %1722 = vmatpush.msra.mxu0 0.0
        %1723 = vmatpush.msra.mxu0 0.0
        %1724 = vmatpush.msra.mxu0 0.0
        %1725 = vmatpush.msra.mxu0 0.0
        %1726 = vmatpush.msra.mxu0 0.0
        %1727 = vmatpush.msra.mxu0 0.0
        %1728 = vmatpush.msra.mxu0 0.0
        %1729 = vmatpush.msra.mxu0 0.0
        %1730 = vmatpush.msra.mxu0 0.0
        %1731 = vmatpush.msra.mxu0 0.0
        %1732 = vmatpush.msra.mxu0 0.0
        %1733 = vmatpush.msra.mxu0 %v1716
        %1734 = vmatmul.f32.gmra.mxu0 %v1714
        %v1735 = vpop.f32.mrf.mxu0
        %v1736 = vadd.f32 0.0, %v1735
        %1737 = vdwg.mxu0
        %v1738 = vadd.f32 %v1706, %v1736
        %1739 = vst.msk [vmem:[#allocation4] sm:$0xf] %vm489, %v1738
        %v1740 = vld [vmem:[#allocation4] sm:$0xf]
        %s1741 = scalar_lea.vmem %s6, 68
        %v1742 = vld [vmem:[%s1741] sm:$0xf]
        %v1743 = vld [vmem:[#allocation3] sm:$0xf]
        %1745 = vrot.lane.b32.xlu0 %v1743, 111
        %v1746 = vpop.permute.xlu0 %1745
        %v1748 = vsel %vm1167, %v1742, 0
        %v1750 = vsel %vm1171, %v1746, 0
        %1752 = vmatpush.msra.mxu0 0.0
        %1753 = vmatpush.msra.mxu0 0.0
        %1754 = vmatpush.msra.mxu0 0.0
        %1755 = vmatpush.msra.mxu0 0.0
        %1756 = vmatpush.msra.mxu0 0.0
        %1757 = vmatpush.msra.mxu0 0.0
        %1758 = vmatpush.msra.mxu0 0.0
        %1759 = vmatpush.msra.mxu0 0.0
        %1760 = vmatpush.msra.mxu0 0.0
        %1761 = vmatpush.msra.mxu0 0.0
        %1762 = vmatpush.msra.mxu0 0.0
        %1763 = vmatpush.msra.mxu0 0.0
        %1764 = vmatpush.msra.mxu0 0.0
        %1765 = vmatpush.msra.mxu0 0.0
        %1766 = vmatpush.msra.mxu0 0.0
        %1767 = vmatpush.msra.mxu0 %v1750
        %1768 = vmatmul.f32.gmra.mxu0 %v1748
        %v1769 = vpop.f32.mrf.mxu0
        %v1770 = vadd.f32 0.0, %v1769
        %1771 = vdwg.mxu0
        %v1772 = vadd.f32 %v1740, %v1770
        %1773 = vst.msk [vmem:[#allocation4] sm:$0xf] %vm489, %v1772
        %v1774 = vld [vmem:[#allocation4] sm:$0xf]
        %s1775 = scalar_lea.vmem %s6, 72
        %v1776 = vld [vmem:[%s1775] sm:$0xf]
        %v1777 = vld [vmem:[#allocation3] sm:$0xf]
        %1779 = vrot.lane.b32.xlu0 %v1777, 110
        %v1780 = vpop.permute.xlu0 %1779
        %v1782 = vsel %vm1167, %v1776, 0
        %v1784 = vsel %vm1171, %v1780, 0
        %1786 = vmatpush.msra.mxu0 0.0
        %1787 = vmatpush.msra.mxu0 0.0
        %1788 = vmatpush.msra.mxu0 0.0
        %1789 = vmatpush.msra.mxu0 0.0
        %1790 = vmatpush.msra.mxu0 0.0
        %1791 = vmatpush.msra.mxu0 0.0
        %1792 = vmatpush.msra.mxu0 0.0
        %1793 = vmatpush.msra.mxu0 0.0
        %1794 = vmatpush.msra.mxu0 0.0
        %1795 = vmatpush.msra.mxu0 0.0
        %1796 = vmatpush.msra.mxu0 0.0
        %1797 = vmatpush.msra.mxu0 0.0
        %1798 = vmatpush.msra.mxu0 0.0
        %1799 = vmatpush.msra.mxu0 0.0
        %1800 = vmatpush.msra.mxu0 0.0
        %1801 = vmatpush.msra.mxu0 %v1784
        %1802 = vmatmul.f32.gmra.mxu0 %v1782
        %v1803 = vpop.f32.mrf.mxu0
        %v1804 = vadd.f32 0.0, %v1803
        %1805 = vdwg.mxu0
        %v1806 = vadd.f32 %v1774, %v1804
        %1807 = vst.msk [vmem:[#allocation4] sm:$0xf] %vm489, %v1806
        %v1808 = vld [vmem:[#allocation4] sm:$0xf]
        %s1809 = scalar_lea.vmem %s6, 76
        %v1810 = vld [vmem:[%s1809] sm:$0xf]
        %v1811 = vld [vmem:[#allocation3] sm:$0xf]
        %1813 = vrot.lane.b32.xlu0 %v1811, 109
        %v1814 = vpop.permute.xlu0 %1813
        %v1816 = vsel %vm1167, %v1810, 0
        %v1818 = vsel %vm1171, %v1814, 0
        %1820 = vmatpush.msra.mxu0 0.0
        %1821 = vmatpush.msra.mxu0 0.0
        %1822 = vmatpush.msra.mxu0 0.0
        %1823 = vmatpush.msra.mxu0 0.0
        %1824 = vmatpush.msra.mxu0 0.0
        %1825 = vmatpush.msra.mxu0 0.0
        %1826 = vmatpush.msra.mxu0 0.0
        %1827 = vmatpush.msra.mxu0 0.0
        %1828 = vmatpush.msra.mxu0 0.0
        %1829 = vmatpush.msra.mxu0 0.0
        %1830 = vmatpush.msra.mxu0 0.0
        %1831 = vmatpush.msra.mxu0 0.0
        %1832 = vmatpush.msra.mxu0 0.0
        %1833 = vmatpush.msra.mxu0 0.0
        %1834 = vmatpush.msra.mxu0 0.0
        %1835 = vmatpush.msra.mxu0 %v1818
        %1836 = vmatmul.f32.gmra.mxu0 %v1816
        %v1837 = vpop.f32.mrf.mxu0
        %v1838 = vadd.f32 0.0, %v1837
        %1839 = vdwg.mxu0
        %v1840 = vadd.f32 %v1808, %v1838
        %1841 = vst.msk [vmem:[#allocation4] sm:$0xf] %vm489, %v1840
        %v1842 = vld [vmem:[#allocation4] sm:$0xf]
        %s1843 = scalar_lea.vmem %s6, 80
        %v1844 = vld [vmem:[%s1843] sm:$0xf]
        %v1845 = vld [vmem:[#allocation3] sm:$0xf]
        %1847 = vrot.lane.b32.xlu0 %v1845, 108
        %v1848 = vpop.permute.xlu0 %1847
        %v1850 = vsel %vm1167, %v1844, 0
        %v1852 = vsel %vm1171, %v1848, 0
        %1854 = vmatpush.msra.mxu0 0.0
        %1855 = vmatpush.msra.mxu0 0.0
        %1856 = vmatpush.msra.mxu0 0.0
        %1857 = vmatpush.msra.mxu0 0.0
        %1858 = vmatpush.msra.mxu0 0.0
        %1859 = vmatpush.msra.mxu0 0.0
        %1860 = vmatpush.msra.mxu0 0.0
        %1861 = vmatpush.msra.mxu0 0.0
        %1862 = vmatpush.msra.mxu0 0.0
        %1863 = vmatpush.msra.mxu0 0.0
        %1864 = vmatpush.msra.mxu0 0.0
        %1865 = vmatpush.msra.mxu0 0.0
        %1866 = vmatpush.msra.mxu0 0.0
        %1867 = vmatpush.msra.mxu0 0.0
        %1868 = vmatpush.msra.mxu0 0.0
        %1869 = vmatpush.msra.mxu0 %v1852
        %1870 = vmatmul.f32.gmra.mxu0 %v1850
        %v1871 = vpop.f32.mrf.mxu0
        %v1872 = vadd.f32 0.0, %v1871
        %1873 = vdwg.mxu0
        %v1874 = vadd.f32 %v1842, %v1872
        %1875 = vst.msk [vmem:[#allocation4] sm:$0xf] %vm489, %v1874
        %v1876 = vld [vmem:[#allocation4] sm:$0xf]
        %v1877 = vld [vmem:[%s7] sm:$0xf]
        %1879 = vset.pattern.permute.xlu0 0
        %1880 = vperm.xlu0 %1879, %v1877
        %v1881 = vpop.permute.xlu0 %1880
        %v1883 = vadd.f32 %v1876, %v1881
        %v1884 = vmax.f32 %v1883, 0.0
        %1885 = vst.msk [vmem:[%s309] sm:$0xf] %vm489, %v1884
        %s1886 = sand.u32 %s208, 1
        %s1887 = scalar_lea.sflag [#allocation6], %s1886
        %s1888 = sand.u32 %s208, 1
        %s1889 = smul.addr %s1888, 4
        %s1890 = scalar_lea.vmem [#allocation5], %s1889
        // Predicated region
        $region53: #{tpu_custom_call.1} parent=51 // pred_check
          %p1891 = pneg %p218
        $region54: #{tpu_custom_call.1} parent=51 // pred_check_branch
          %1893 = sbr.rel (%p1891) target = $region56
        $region55: #{tpu_custom_call.1} parent=51 // pred_region
          %1895 = vsyncadd %s1887, 0
          %s1896 = smul.addr %s22, 4
          %s1897 = scalar_lea.hbm %s8, %s1896
          %s1899 = sshll.u32 %s1890, 4
          %s1900 = int_to_ptr.vmem [resolvable:$true] %s1899
          %s1901 = sshll.u32 %s1897, 4
          %s1902 = int_to_ptr.hbm [resolvable:$true] %s1901
          %1904 = dma.vmem_to_hbm [thread:$0]  %s1900, 64, %s1902, %s1887
        $region56: #{tpu_custom_call.1} parent=51 // pred_fallthru
          _
      $region52: #{tpu_custom_call.1} parent=5 // pred_fallthru
        _
      %p1905 = scmp.le.s32.totalorder 2, %s17
      // Predicated region
      $region57: #{tpu_custom_call.1} parent=5 // pred_check
        %p1906 = pneg %p1905
      $region58: #{tpu_custom_call.1} parent=5 // pred_check_branch
        %1908 = sbr.rel (%p1906) target = $region60
      $region59: #{tpu_custom_call.1} parent=5 // pred_region
        %s1909 = ssub.s32 %s17, 2
        // Predicated region
        $region61: #{tpu_custom_call.1} parent=59 // pred_check
          %p1910 = pneg %p224
        $region62: #{tpu_custom_call.1} parent=59 // pred_check_branch
          %1912 = sbr.rel (%p1910) target = $region64
        $region63: #{tpu_custom_call.1} parent=59 // pred_region
          %s1913 = sand.u32 %s209, 1
          %s1914 = scalar_lea.sflag [#allocation6], %s1913
          %s1915 = sand.u32 %s209, 1
          %s1916 = smul.addr %s1915, 4
          %s1917 = scalar_lea.vmem [#allocation5], %s1916
          %1919 = dma.done %s1914, 64
        $region64: #{tpu_custom_call.1} parent=59 // pred_fallthru
          _
      $region60: #{tpu_custom_call.1} parent=5 // pred_fallthru
        _
    $region6: #{tpu_custom_call.1} parent=1 // loop_footer
      %s21 = sadd.s32 1, %s17
    $region7: #{tpu_custom_call.1} parent=1 // loop_footer_branch
      %16 = sbr.rel target = $region3
    $region8: #{tpu_custom_call.1} parent=1 // loop_exit
      _
    %1920 = vsyncpa [#allocation6], 1
    %s1921 = scalar_lea.sflag [#allocation6], 1
    %1922 = vsyncpa %s1921, 1

</llo_original>
